<compile_context>
chip_gen: v7x
topology: tpu7x:2x2x1
jax: 0.10.0
libtpu: 0.0.40
codegen_flags: <defaults>
</compile_context>

<pallas_src>
import functools

import jax
import jax.numpy as jnp
from jax.experimental import pallas as pl
from jax.experimental.pallas import tpu as pltpu

EPS = 1e-6
NEG_INF = -1e9
BF = jnp.bfloat16   # MXU operand dtype (accumulation stays f32)


# --------------------------------------------------------------------------------
# Kernel
# --------------------------------------------------------------------------------
def decoder_block_kernel(
    x_ref,
    wqkv_ref, bqkv_ref,          # fused QKV: (H, 3H) bf16, (1, 3H) f32
    wfc_ref, bfc_ref,            # fc weight as head row-blocks: (NH, dk, H) bf16, (1, H) f32
    w1_ref, b1_ref,              # FFN gate  (H, I) bf16, (1, I) f32
    w2_ref, b2_ref,              # FFN up    (H, I) bf16, (1, I) f32
    w3_ref, b3_ref,              # FFN down  (I, H) bf16, (1, H) f32
    out_ref,
    *, num_heads):
    BT, L, H = x_ref.shape
    dk = H // num_heads

    # Fold batch into the GEMM M dimension (leading-dim merge only: layout-free).
    x = x_ref[...].reshape(BT * L, H)

    # ------------- shared RMSNorm (gains folded into weight rows on the host) -----
    inv = jax.lax.rsqrt(jnp.mean(x * x, axis=-1, keepdims=True) + EPS)   # f32 stats
    xn = (x * inv).astype(BF)

    # ------------- fused Q|K|V projection: one MXU pass, 3x wider N ----------------
    # 1/sqrt(dk) is already folded into the Wq/bq columns.
    qkv = jnp.dot(xn, wqkv_ref[...], preferred_element_type=jnp.float32) + bqkv_ref[...]
    q = qkv[:, 0 * H:1 * H].reshape(BT, L, H)
    k = qkv[:, 1 * H:2 * H].reshape(BT, L, H)
    v = qkv[:, 2 * H:3 * H].reshape(BT, L, H)

    # ------------- causal mask generated in-kernel (no HBM DMA) --------------------
    row = jax.lax.broadcasted_iota(jnp.int32, (L, L), 0)
    col = jax.lax.broadcasted_iota(jnp.int32, (L, L), 1)
    mask = jnp.where(row >= col, 0.0, NEG_INF).astype(jnp.float32)       # (L, L)

    # ------------- attention: per-head, fc fold -> lane-dense f32 accumulator ------
    # concat_h(o_h) @ Wfc == sum_h o_h @ Wfc[h*dk:(h+1)*dk, :]  (Wfc shipped as
    # (NH, dk, H) so each row-block is a clean leading-axis index, no masked stores).
    attn_fc = jnp.zeros((BT * L, H), jnp.float32)
    for h in range(num_heads):
        sl = slice(h * dk, (h + 1) * dk)
        qh = q[:, :, sl].astype(BF)                       # (BT, L, dk)
        kh = k[:, :, sl].astype(BF)
        vh = v[:, :, sl].astype(BF)
        s = jnp.einsum('bqd,bkd->bqk', qh, kh,
                       preferred_element_type=jnp.float32) + mask        # (BT, L, L)
        s = s - jnp.max(s, axis=-1, keepdims=True)                       # f32 softmax
        p = jnp.exp(s)
        p = p * pl.reciprocal(jnp.sum(p, axis=-1, keepdims=True), approx=True)
        o = jnp.einsum('bqk,bkd->bqd', p.astype(BF), vh,
                       preferred_element_type=jnp.float32)               # (BT, L, dk)
        attn_fc = attn_fc + jnp.dot(o.reshape(BT * L, dk).astype(BF), wfc_ref[h],
                                    preferred_element_type=jnp.float32)

    x1 = attn_fc + bfc_ref[...] + x      # fc bias + residual (dropout = identity, eval)

    # ------------- FFN: RMSNorm (gain folded into W1/W2) -> SwiGLU -> proj ---------
    inv1 = jax.lax.rsqrt(jnp.mean(x1 * x1, axis=-1, keepdims=True) + EPS)
    x1n = (x1 * inv1).astype(BF)
    gate = jnp.dot(x1n, w1_ref[...], preferred_element_type=jnp.float32) + b1_ref[...]
    gate = gate * jax.nn.sigmoid(gate)                                   # SiLU in f32 (EUP)
    up = jnp.dot(x1n, w2_ref[...], preferred_element_type=jnp.float32) + b2_ref[...]
    y = jnp.dot((up * gate).astype(BF), w3_ref[...],
                preferred_element_type=jnp.float32) + b3_ref[...]
    out_ref[...] = (y + x1).reshape(BT, L, H)            # residual (dropout = identity)


# --------------------------------------------------------------------------------
# Host-side parameter preparation (one-time, at load): norm/scale folding + bf16.
# --------------------------------------------------------------------------------
def prepare_decoder_params(p, num_heads, weight_dtype=BF):
    H = p["wq"].shape[0]
    dk = H // num_heads
    scale = 1.0 / (dk ** 0.5)

    # rmsnorm(x, g) @ W == (x * inv_rms) @ (diag(g) @ W)  -> fold g into weight rows.
    wq = p["qn"].reshape(H, 1) * p["wq"] * scale          # also fold 1/sqrt(dk)
    wk = p["kn"].reshape(H, 1) * p["wk"]
    wv = p["vn"].reshape(H, 1) * p["wv"]
    wqkv = jnp.concatenate([wq, wk, wv], axis=1).astype(weight_dtype)     # (H, 3H)
    bqkv = jnp.concatenate([p["bq"] * scale, p["bk"], p["bv"]], axis=1).astype(jnp.float32)

    wfc_heads = p["wfc"].reshape(num_heads, dk, H).astype(weight_dtype)   # row-blocks
    w1 = (p["fn"].reshape(H, 1) * p["w1"]).astype(weight_dtype)
    w2 = (p["fn"].reshape(H, 1) * p["w2"]).astype(weight_dtype)
    w3 = p["w3"].astype(weight_dtype)

    return dict(
        wqkv=wqkv, bqkv=bqkv,
        wfc=wfc_heads, bfc=p["bfc"].astype(jnp.float32),
        w1=w1, b1=p["b1"].astype(jnp.float32),
        w2=w2, b2=p["b2"].astype(jnp.float32),
        w3=w3, b3=p["b3"].astype(jnp.float32),
    )


# --------------------------------------------------------------------------------
# Wrapper
# --------------------------------------------------------------------------------
def _vmem_capacity_bytes():
    # Per-generation budget (v5e/v6e: 128 MiB, v7x: 64 MiB); guarded fallback for
    # JAX versions without the query API.
    try:
        return int(pltpu.get_tpu_info().vmem_capacity_bytes)
    except Exception:
        return 128 * 1024 * 1024


def _pick_b_tile(B, L, target_rows):
    bt = 1
    for d in range(1, B + 1):
        if B % d == 0 and d * L <= max(target_rows, L):
            bt = d
    # Guarantee >= 2 grid steps so the "parallel" axis can shard across the two v7x
    # TensorCores (and keep the x/out pipeline overlapped on v5e/v6e).
    if B >= 2:
        bt = min(bt, B // 2)
        while B % bt:
            bt -= 1
    return max(bt, 1)


def decoder_block(x, prep, num_heads, b_tile=None, single_buffer_weights=True):
    B, L, H = x.shape
    I = prep["w1"].shape[1]
    dk = H // num_heads

    vmem_cap = _vmem_capacity_bytes()
    vmem_limit = max(32 * 1024 * 1024, min(int(0.75 * vmem_cap), 96 * 1024 * 1024))
    target_rows = 2048 if vmem_cap >= 96 * 1024 * 1024 else 1024
    if b_tile is None:
        b_tile = _pick_b_tile(B, L, target_rows)
    assert B % b_tile == 0

    def wspec(shape):
        # Grid-invariant operand: constant block index, block == full array.
        # Single-buffer it (default double-buffering wastes VMEM on weights that
        # never change across the grid).
        idx = lambda b: (0,) * len(shape)
        if single_buffer_weights and hasattr(pl, "Buffered"):
            return pl.BlockSpec(shape, idx, pipeline_mode=pl.Buffered(1))
        return pl.BlockSpec(shape, idx)

    in_specs = [
        pl.BlockSpec((b_tile, L, H), lambda b: (b, 0, 0)),   # x slab
        wspec((H, 3 * H)), wspec((1, 3 * H)),                # fused Wqkv, bqkv
        wspec((num_heads, dk, H)), wspec((1, H)),            # Wfc (head blocks), bfc
        wspec((H, I)), wspec((1, I)),                        # W1, b1
        wspec((H, I)), wspec((1, I)),                        # W2, b2
        wspec((I, H)), wspec((1, H)),                        # W3, b3
    ]

    kernel = functools.partial(decoder_block_kernel, num_heads=num_heads)
    grid_spec = pltpu.PrefetchScalarGridSpec(
        num_scalar_prefetch=0,
        grid=(B // b_tile,),
        in_specs=in_specs,
        out_specs=pl.BlockSpec((b_tile, L, H), lambda b: (b, 0, 0)),
    )
    return pl.pallas_call(
        kernel,
        out_shape=jax.ShapeDtypeStruct((B, L, H), jnp.float32),
        grid_spec=grid_spec,
        compiler_params=pltpu.CompilerParams(
            dimension_semantics=("parallel",),
            vmem_limit_bytes=vmem_limit,
        ),
    )(
        x,
        prep["wqkv"], prep["bqkv"],
        prep["wfc"], prep["bfc"],
        prep["w1"], prep["b1"],
        prep["w2"], prep["b2"],
        prep["w3"], prep["b3"],
    )


# --------------------------------------------------------------------------------
# Pure-JAX f32 reference (mirrors the PyTorch forward exactly)
# --------------------------------------------------------------------------------
def reference(x, mask, p, num_heads):
    def rmsnorm(t, w):
        rms = jnp.sqrt(jnp.mean(t * t, axis=-1, keepdims=True) + EPS)
        return (t / rms) * w

    B, L, H = x.shape
    dk = H // num_heads
    q = rmsnorm(x, p["qn"]) @ p["wq"] + p["bq"]
    k = rmsnorm(x, p["kn"]) @ p["wk"] + p["bk"]
    v = rmsnorm(x, p["vn"]) @ p["wv"] + p["bv"]
    q = q.reshape(B, L, num_heads, dk).transpose(0, 2, 1, 3)
    k = k.reshape(B, L, num_heads, dk).transpose(0, 2, 1, 3)
    v = v.reshape(B, L, num_heads, dk).transpose(0, 2, 1, 3)
    s = jnp.einsum("bhqd,bhkd->bhqk", q, k) / (dk ** 0.5) + mask
    a = jax.nn.softmax(s, axis=-1)
    o = jnp.einsum("bhqk,bhkd->bhqd", a, v)
    o = o.transpose(0, 2, 1, 3).reshape(B, L, H)
    x1 = o @ p["wfc"] + p["bfc"] + x
    xn = rmsnorm(x1, p["fn"])
    g = xn @ p["w1"] + p["b1"]
    g = g * jax.nn.sigmoid(g)
    u = xn @ p["w2"] + p["b2"]
    return (g * u) @ p["w3"] + p["b3"] + x1


if __name__ == "__main__":
    # config: hidden_size=32, num_attention_heads=4, intermediate_size=64,
    # eps=1e-6, dropout=0.0 (eval), flash_attn=False
    B, L, H, NH, I = 2, 8, 32, 4, 64

    key = jax.random.PRNGKey(0)
    keys = jax.random.split(key, 16)

    def lin(kw, kb, din, dout):
        W = jax.random.normal(kw, (din, dout), jnp.float32) * 0.05
        b = jax.random.normal(kb, (1, dout), jnp.float32) * 0.01
        return W, b

    wq, bq = lin(keys[0], keys[1], H, H)
    wk, bk = lin(keys[2], keys[3], H, H)
    wv, bv = lin(keys[4], keys[5], H, H)
    wfc, bfc = lin(keys[6], keys[7], H, H)
    w1, b1 = lin(keys[8], keys[9], H, I)
    w2, b2 = lin(keys[10], keys[11], H, I)
    w3, b3 = lin(keys[12], keys[13], I, H)

    params = dict(
        qn=1.0 + 0.1 * jax.random.normal(keys[14], (1, H), jnp.float32),
        kn=jnp.ones((1, H), jnp.float32),
        vn=jnp.ones((1, H), jnp.float32),
        fn=1.0 + 0.05 * jax.random.normal(keys[15], (1, H), jnp.float32),
        wq=wq, bq=bq, wk=wk, bk=bk, wv=wv, bv=bv, wfc=wfc, bfc=bfc,
        w1=w1, b1=b1, w2=w2, b2=b2, w3=w3, b3=b3,
    )

    x = jax.random.normal(jax.random.PRNGKey(42), (B, L, H), jnp.float32)

    # Explicit causal mask for the pure-JAX reference only; the kernel builds the same
    # additive causal mask in-kernel via broadcasted_iota.
    row = jnp.arange(L)[:, None]
    col = jnp.arange(L)[None, :]
    causal_mask = jnp.where(row >= col, 0.0, NEG_INF).astype(jnp.float32)  # (L, L)

    prepared = prepare_decoder_params(params, NH)

    try:
        out = jax.block_until_ready(
            decoder_block(x, prepared, NH, single_buffer_weights=True))
    except Exception:
        # Installed JAX lacks BlockSpec(pipeline_mode=pl.Buffered(1)); use default
        # double-buffered weight specs instead.
        out = jax.block_until_ready(
            decoder_block(x, prepared, NH, single_buffer_weights=False))

    ref = reference(x, causal_mask, params, NH)
    assert out.shape == (B, L, H)
    # Tolerance accounts for bf16 MXU operands (weights + activations at GEMM sites)
    # and the approximate (EUP) reciprocal in the softmax denominator; RMSNorm stats,
    # softmax and residuals stay in f32 inside the kernel.
    assert jnp.allclose(out, ref, rtol=2e-2, atol=2e-2), (
        f"max abs err = {jnp.max(jnp.abs(out - ref))}")
    print("KERNEL_OK")
</pallas_src>

<mosaic_0001>
module attributes {stable_mosaic.version = 11 : i64} {
  func.func @decoder_block_kernel(%arg0: i32, %arg1: memref<1x8x32xf32, #tpu.memory_space<vmem>>, %arg2: memref<32x96xbf16, #tpu.memory_space<vmem>>, %arg3: memref<1x96xf32, #tpu.memory_space<vmem>>, %arg4: memref<4x8x32xbf16, #tpu.memory_space<vmem>>, %arg5: memref<1x32xf32, #tpu.memory_space<vmem>>, %arg6: memref<32x64xbf16, #tpu.memory_space<vmem>>, %arg7: memref<1x64xf32, #tpu.memory_space<vmem>>, %arg8: memref<32x64xbf16, #tpu.memory_space<vmem>>, %arg9: memref<1x64xf32, #tpu.memory_space<vmem>>, %arg10: memref<64x32xbf16, #tpu.memory_space<vmem>>, %arg11: memref<1x32xf32, #tpu.memory_space<vmem>>, %arg12: memref<1x8x32xf32, #tpu.memory_space<vmem>>) attributes {dimension_semantics = [#tpu.dimension_semantics<parallel>], iteration_bounds = array<i64: 2>, scalar_prefetch = 0 : i64, scratch_operands = 0 : i64, tpu.core_type = #tpu.core_type<tc>, window_params = [{transform_indices = @transform_0, window_bounds = array<i64: 1, 8, 32>}, {pipeline_mode = #tpu.pipeline_mode<synchronous>, transform_indices = @transform_1, window_bounds = array<i64: 32, 96>}, {pipeline_mode = #tpu.pipeline_mode<synchronous>, transform_indices = @transform_2, window_bounds = array<i64: 1, 96>}, {pipeline_mode = #tpu.pipeline_mode<synchronous>, transform_indices = @transform_3, window_bounds = array<i64: 4, 8, 32>}, {pipeline_mode = #tpu.pipeline_mode<synchronous>, transform_indices = @transform_4, window_bounds = array<i64: 1, 32>}, {pipeline_mode = #tpu.pipeline_mode<synchronous>, transform_indices = @transform_5, window_bounds = array<i64: 32, 64>}, {pipeline_mode = #tpu.pipeline_mode<synchronous>, transform_indices = @transform_6, window_bounds = array<i64: 1, 64>}, {pipeline_mode = #tpu.pipeline_mode<synchronous>, transform_indices = @transform_7, window_bounds = array<i64: 32, 64>}, {pipeline_mode = #tpu.pipeline_mode<synchronous>, transform_indices = @transform_8, window_bounds = array<i64: 1, 64>}, {pipeline_mode = #tpu.pipeline_mode<synchronous>, transform_indices = @transform_9, window_bounds = array<i64: 64, 32>}, {pipeline_mode = #tpu.pipeline_mode<synchronous>, transform_indices = @transform_10, window_bounds = array<i64: 1, 32>}, {transform_indices = @transform_11, window_bounds = array<i64: 1, 8, 32>}]} {
    %c0 = arith.constant 0 : index
    %c0_0 = arith.constant 0 : index
    %c0_1 = arith.constant 0 : index
    %0 = vector.load %arg1[%c0, %c0_0, %c0_1] : memref<1x8x32xf32, #tpu.memory_space<vmem>>, vector<1x8x32xf32>
    %1 = vector.shape_cast %0 : vector<1x8x32xf32> to vector<8x32xf32>
    %2 = arith.mulf %1, %1 : vector<8x32xf32>
    %cst = arith.constant dense<0.000000e+00> : vector<8xf32>
    %3 = vector.multi_reduction <add>, %2, %cst [1] : vector<8x32xf32> to vector<8xf32>
    %4 = vector.shape_cast %3 : vector<8xf32> to vector<8x1xf32>
    %cst_2 = arith.constant 3.200000e+01 : f32
    %5 = vector.broadcast %cst_2 : f32 to vector<8x1xf32>
    %6 = arith.divf %4, %5 : vector<8x1xf32>
    %cst_3 = arith.constant 9.99999997E-7 : f32
    %7 = vector.broadcast %cst_3 : f32 to vector<8x1xf32>
    %8 = arith.addf %6, %7 : vector<8x1xf32>
    %9 = math.rsqrt %8 : vector<8x1xf32>
    %10 = vector.broadcast %9 : vector<8x1xf32> to vector<8x32xf32>
    %11 = arith.mulf %1, %10 : vector<8x32xf32>
    %12 = arith.truncf %11 : vector<8x32xf32> to vector<8x32xbf16>
    %c0_4 = arith.constant 0 : index
    %c0_5 = arith.constant 0 : index
    %13 = vector.load %arg2[%c0_4, %c0_5] : memref<32x96xbf16, #tpu.memory_space<vmem>>, vector<32x96xbf16>
    %cst_6 = arith.constant dense<0.000000e+00> : vector<8x96xf32>
    %14 = tpu.matmul %12, %13, %cst_6 {dimension_numbers = #tpu.dot_dimension_numbers<[1], [0], [0], [1], [0, 0, 1, 1], [], []>} : vector<8x32xbf16>, vector<32x96xbf16>, vector<8x96xf32> -> vector<8x96xf32>
    %c0_7 = arith.constant 0 : index
    %c0_8 = arith.constant 0 : index
    %15 = vector.load %arg3[%c0_7, %c0_8] : memref<1x96xf32, #tpu.memory_space<vmem>>, vector<1x96xf32>
    %16 = vector.broadcast %15 : vector<1x96xf32> to vector<8x96xf32>
    %17 = arith.addf %14, %16 : vector<8x96xf32>
    %18 = vector.extract_strided_slice %17 {offsets = [0, 0], sizes = [8, 32], strides = [1, 1]} : vector<8x96xf32> to vector<8x32xf32>
    %19 = vector.shape_cast %18 : vector<8x32xf32> to vector<1x8x32xf32>
    %20 = vector.extract_strided_slice %17 {offsets = [0, 32], sizes = [8, 32], strides = [1, 1]} : vector<8x96xf32> to vector<8x32xf32>
    %21 = vector.shape_cast %20 : vector<8x32xf32> to vector<1x8x32xf32>
    %22 = vector.extract_strided_slice %17 {offsets = [0, 64], sizes = [8, 32], strides = [1, 1]} : vector<8x96xf32> to vector<8x32xf32>
    %23 = vector.shape_cast %22 : vector<8x32xf32> to vector<1x8x32xf32>
    %24 = tpu.iota {dimensions = array<i32: 0>} : vector<8x8xi32>
    %25 = tpu.iota {dimensions = array<i32: 1>} : vector<8x8xi32>
    %26 = arith.cmpi sge, %24, %25 : vector<8x8xi32>
    %cst_9 = arith.constant 0.000000e+00 : f32
    %cst_10 = arith.constant -1.000000e+09 : f32
    %27 = vector.broadcast %cst_9 : f32 to vector<8x8xf32>
    %28 = vector.broadcast %cst_10 : f32 to vector<8x8xf32>
    %29 = arith.select %26, %27, %28 : vector<8x8xi1>, vector<8x8xf32>
    %cst_11 = arith.constant 0.000000e+00 : f32
    %30 = vector.broadcast %cst_11 : f32 to vector<8x32xf32>
    %31 = vector.extract_strided_slice %19 {offsets = [0, 0, 0], sizes = [1, 8, 8], strides = [1, 1, 1]} : vector<1x8x32xf32> to vector<1x8x8xf32>
    %32 = arith.truncf %31 : vector<1x8x8xf32> to vector<1x8x8xbf16>
    %33 = vector.extract_strided_slice %21 {offsets = [0, 0, 0], sizes = [1, 8, 8], strides = [1, 1, 1]} : vector<1x8x32xf32> to vector<1x8x8xf32>
    %34 = arith.truncf %33 : vector<1x8x8xf32> to vector<1x8x8xbf16>
    %35 = vector.extract_strided_slice %23 {offsets = [0, 0, 0], sizes = [1, 8, 8], strides = [1, 1, 1]} : vector<1x8x32xf32> to vector<1x8x8xf32>
    %36 = arith.truncf %35 : vector<1x8x8xf32> to vector<1x8x8xbf16>
    "tpu.trace_start"() <{level = 10 : i32, message = "bqd,bkd->bqk"}> : () -> ()
    %cst_12 = arith.constant dense<0.000000e+00> : vector<1x8x8xf32>
    %37 = tpu.matmul %32, %34, %cst_12 {dimension_numbers = #tpu.dot_dimension_numbers<[2], [2], [1], [1], [0, 0, 0, 1, 1, 1], [0], [0]>} : vector<1x8x8xbf16>, vector<1x8x8xbf16>, vector<1x8x8xf32> -> vector<1x8x8xf32>
    "tpu.trace_stop"() : () -> ()
    %38 = vector.shape_cast %29 : vector<8x8xf32> to vector<1x8x8xf32>
    %39 = arith.addf %37, %38 : vector<1x8x8xf32>
    %cst_13 = arith.constant dense<0xFF800000> : vector<1x8xf32>
    %40 = vector.multi_reduction <maximumf>, %39, %cst_13 [2] : vector<1x8x8xf32> to vector<1x8xf32>
    %41 = vector.shape_cast %40 : vector<1x8xf32> to vector<1x8x1xf32>
    %42 = vector.broadcast %41 : vector<1x8x1xf32> to vector<1x8x8xf32>
    %43 = arith.subf %39, %42 : vector<1x8x8xf32>
    %44 = math.exp %43 : vector<1x8x8xf32>
    %cst_14 = arith.constant dense<0.000000e+00> : vector<1x8xf32>
    %45 = vector.multi_reduction <add>, %44, %cst_14 [2] : vector<1x8x8xf32> to vector<1x8xf32>
    %46 = vector.shape_cast %45 : vector<1x8xf32> to vector<1x8x1xf32>
    %47 = tpu.reciprocal %46 {approx = true} : vector<1x8x1xf32> -> vector<1x8x1xf32>
    %48 = vector.broadcast %47 : vector<1x8x1xf32> to vector<1x8x8xf32>
    %49 = arith.mulf %44, %48 : vector<1x8x8xf32>
    %50 = arith.truncf %49 : vector<1x8x8xf32> to vector<1x8x8xbf16>
    "tpu.trace_start"() <{level = 10 : i32, message = "bqk,bkd->bqd"}> : () -> ()
    %cst_15 = arith.constant dense<0.000000e+00> : vector<1x8x8xf32>
    %51 = tpu.matmul %50, %36, %cst_15 {dimension_numbers = #tpu.dot_dimension_numbers<[2], [1], [1], [2], [0, 0, 0, 1, 1, 2], [0], [0]>} : vector<1x8x8xbf16>, vector<1x8x8xbf16>, vector<1x8x8xf32> -> vector<1x8x8xf32>
    "tpu.trace_stop"() : () -> ()
    %52 = vector.shape_cast %51 : vector<1x8x8xf32> to vector<8x8xf32>
    %53 = arith.truncf %52 : vector<8x8xf32> to vector<8x8xbf16>
    %c0_16 = arith.constant 0 : index
    %c0_17 = arith.constant 0 : index
    %c0_18 = arith.constant 0 : index
    %54 = vector.load %arg4[%c0_16, %c0_17, %c0_18] : memref<4x8x32xbf16, #tpu.memory_space<vmem>>, vector<1x8x32xbf16>
    %55 = vector.shape_cast %54 : vector<1x8x32xbf16> to vector<8x32xbf16>
    %cst_19 = arith.constant dense<0.000000e+00> : vector<8x32xf32>
    %56 = tpu.matmul %53, %55, %cst_19 {dimension_numbers = #tpu.dot_dimension_numbers<[1], [0], [0], [1], [0, 0, 1, 1], [], []>} : vector<8x8xbf16>, vector<8x32xbf16>, vector<8x32xf32> -> vector<8x32xf32>
    %57 = arith.addf %30, %56 : vector<8x32xf32>
    %58 = vector.extract_strided_slice %19 {offsets = [0, 0, 8], sizes = [1, 8, 8], strides = [1, 1, 1]} : vector<1x8x32xf32> to vector<1x8x8xf32>
    %59 = arith.truncf %58 : vector<1x8x8xf32> to vector<1x8x8xbf16>
    %60 = vector.extract_strided_slice %21 {offsets = [0, 0, 8], sizes = [1, 8, 8], strides = [1, 1, 1]} : vector<1x8x32xf32> to vector<1x8x8xf32>
    %61 = arith.truncf %60 : vector<1x8x8xf32> to vector<1x8x8xbf16>
    %62 = vector.extract_strided_slice %23 {offsets = [0, 0, 8], sizes = [1, 8, 8], strides = [1, 1, 1]} : vector<1x8x32xf32> to vector<1x8x8xf32>
    %63 = arith.truncf %62 : vector<1x8x8xf32> to vector<1x8x8xbf16>
    "tpu.trace_start"() <{level = 10 : i32, message = "bqd,bkd->bqk"}> : () -> ()
    %cst_20 = arith.constant dense<0.000000e+00> : vector<1x8x8xf32>
    %64 = tpu.matmul %59, %61, %cst_20 {dimension_numbers = #tpu.dot_dimension_numbers<[2], [2], [1], [1], [0, 0, 0, 1, 1, 1], [0], [0]>} : vector<1x8x8xbf16>, vector<1x8x8xbf16>, vector<1x8x8xf32> -> vector<1x8x8xf32>
    "tpu.trace_stop"() : () -> ()
    %65 = vector.shape_cast %29 : vector<8x8xf32> to vector<1x8x8xf32>
    %66 = arith.addf %64, %65 : vector<1x8x8xf32>
    %cst_21 = arith.constant dense<0xFF800000> : vector<1x8xf32>
    %67 = vector.multi_reduction <maximumf>, %66, %cst_21 [2] : vector<1x8x8xf32> to vector<1x8xf32>
    %68 = vector.shape_cast %67 : vector<1x8xf32> to vector<1x8x1xf32>
    %69 = vector.broadcast %68 : vector<1x8x1xf32> to vector<1x8x8xf32>
    %70 = arith.subf %66, %69 : vector<1x8x8xf32>
    %71 = math.exp %70 : vector<1x8x8xf32>
    %cst_22 = arith.constant dense<0.000000e+00> : vector<1x8xf32>
    %72 = vector.multi_reduction <add>, %71, %cst_22 [2] : vector<1x8x8xf32> to vector<1x8xf32>
    %73 = vector.shape_cast %72 : vector<1x8xf32> to vector<1x8x1xf32>
    %74 = tpu.reciprocal %73 {approx = true} : vector<1x8x1xf32> -> vector<1x8x1xf32>
    %75 = vector.broadcast %74 : vector<1x8x1xf32> to vector<1x8x8xf32>
    %76 = arith.mulf %71, %75 : vector<1x8x8xf32>
    %77 = arith.truncf %76 : vector<1x8x8xf32> to vector<1x8x8xbf16>
    "tpu.trace_start"() <{level = 10 : i32, message = "bqk,bkd->bqd"}> : () -> ()
    %cst_23 = arith.constant dense<0.000000e+00> : vector<1x8x8xf32>
    %78 = tpu.matmul %77, %63, %cst_23 {dimension_numbers = #tpu.dot_dimension_numbers<[2], [1], [1], [2], [0, 0, 0, 1, 1, 2], [0], [0]>} : vector<1x8x8xbf16>, vector<1x8x8xbf16>, vector<1x8x8xf32> -> vector<1x8x8xf32>
    "tpu.trace_stop"() : () -> ()
    %79 = vector.shape_cast %78 : vector<1x8x8xf32> to vector<8x8xf32>
    %80 = arith.truncf %79 : vector<8x8xf32> to vector<8x8xbf16>
    %c1 = arith.constant 1 : index
    %c0_24 = arith.constant 0 : index
    %c0_25 = arith.constant 0 : index
    %81 = vector.load %arg4[%c1, %c0_24, %c0_25] : memref<4x8x32xbf16, #tpu.memory_space<vmem>>, vector<1x8x32xbf16>
    %82 = vector.shape_cast %81 : vector<1x8x32xbf16> to vector<8x32xbf16>
    %cst_26 = arith.constant dense<0.000000e+00> : vector<8x32xf32>
    %83 = tpu.matmul %80, %82, %cst_26 {dimension_numbers = #tpu.dot_dimension_numbers<[1], [0], [0], [1], [0, 0, 1, 1], [], []>} : vector<8x8xbf16>, vector<8x32xbf16>, vector<8x32xf32> -> vector<8x32xf32>
    %84 = arith.addf %57, %83 : vector<8x32xf32>
    %85 = vector.extract_strided_slice %19 {offsets = [0, 0, 16], sizes = [1, 8, 8], strides = [1, 1, 1]} : vector<1x8x32xf32> to vector<1x8x8xf32>
    %86 = arith.truncf %85 : vector<1x8x8xf32> to vector<1x8x8xbf16>
    %87 = vector.extract_strided_slice %21 {offsets = [0, 0, 16], sizes = [1, 8, 8], strides = [1, 1, 1]} : vector<1x8x32xf32> to vector<1x8x8xf32>
    %88 = arith.truncf %87 : vector<1x8x8xf32> to vector<1x8x8xbf16>
    %89 = vector.extract_strided_slice %23 {offsets = [0, 0, 16], sizes = [1, 8, 8], strides = [1, 1, 1]} : vector<1x8x32xf32> to vector<1x8x8xf32>
    %90 = arith.truncf %89 : vector<1x8x8xf32> to vector<1x8x8xbf16>
    "tpu.trace_start"() <{level = 10 : i32, message = "bqd,bkd->bqk"}> : () -> ()
    %cst_27 = arith.constant dense<0.000000e+00> : vector<1x8x8xf32>
    %91 = tpu.matmul %86, %88, %cst_27 {dimension_numbers = #tpu.dot_dimension_numbers<[2], [2], [1], [1], [0, 0, 0, 1, 1, 1], [0], [0]>} : vector<1x8x8xbf16>, vector<1x8x8xbf16>, vector<1x8x8xf32> -> vector<1x8x8xf32>
    "tpu.trace_stop"() : () -> ()
    %92 = vector.shape_cast %29 : vector<8x8xf32> to vector<1x8x8xf32>
    %93 = arith.addf %91, %92 : vector<1x8x8xf32>
    %cst_28 = arith.constant dense<0xFF800000> : vector<1x8xf32>
    %94 = vector.multi_reduction <maximumf>, %93, %cst_28 [2] : vector<1x8x8xf32> to vector<1x8xf32>
    %95 = vector.shape_cast %94 : vector<1x8xf32> to vector<1x8x1xf32>
    %96 = vector.broadcast %95 : vector<1x8x1xf32> to vector<1x8x8xf32>
    %97 = arith.subf %93, %96 : vector<1x8x8xf32>
    %98 = math.exp %97 : vector<1x8x8xf32>
    %cst_29 = arith.constant dense<0.000000e+00> : vector<1x8xf32>
    %99 = vector.multi_reduction <add>, %98, %cst_29 [2] : vector<1x8x8xf32> to vector<1x8xf32>
    %100 = vector.shape_cast %99 : vector<1x8xf32> to vector<1x8x1xf32>
    %101 = tpu.reciprocal %100 {approx = true} : vector<1x8x1xf32> -> vector<1x8x1xf32>
    %102 = vector.broadcast %101 : vector<1x8x1xf32> to vector<1x8x8xf32>
    %103 = arith.mulf %98, %102 : vector<1x8x8xf32>
    %104 = arith.truncf %103 : vector<1x8x8xf32> to vector<1x8x8xbf16>
    "tpu.trace_start"() <{level = 10 : i32, message = "bqk,bkd->bqd"}> : () -> ()
    %cst_30 = arith.constant dense<0.000000e+00> : vector<1x8x8xf32>
    %105 = tpu.matmul %104, %90, %cst_30 {dimension_numbers = #tpu.dot_dimension_numbers<[2], [1], [1], [2], [0, 0, 0, 1, 1, 2], [0], [0]>} : vector<1x8x8xbf16>, vector<1x8x8xbf16>, vector<1x8x8xf32> -> vector<1x8x8xf32>
    "tpu.trace_stop"() : () -> ()
    %106 = vector.shape_cast %105 : vector<1x8x8xf32> to vector<8x8xf32>
    %107 = arith.truncf %106 : vector<8x8xf32> to vector<8x8xbf16>
    %c2 = arith.constant 2 : index
    %c0_31 = arith.constant 0 : index
    %c0_32 = arith.constant 0 : index
    %108 = vector.load %arg4[%c2, %c0_31, %c0_32] : memref<4x8x32xbf16, #tpu.memory_space<vmem>>, vector<1x8x32xbf16>
    %109 = vector.shape_cast %108 : vector<1x8x32xbf16> to vector<8x32xbf16>
    %cst_33 = arith.constant dense<0.000000e+00> : vector<8x32xf32>
    %110 = tpu.matmul %107, %109, %cst_33 {dimension_numbers = #tpu.dot_dimension_numbers<[1], [0], [0], [1], [0, 0, 1, 1], [], []>} : vector<8x8xbf16>, vector<8x32xbf16>, vector<8x32xf32> -> vector<8x32xf32>
    %111 = arith.addf %84, %110 : vector<8x32xf32>
    %112 = vector.extract_strided_slice %19 {offsets = [0, 0, 24], sizes = [1, 8, 8], strides = [1, 1, 1]} : vector<1x8x32xf32> to vector<1x8x8xf32>
    %113 = arith.truncf %112 : vector<1x8x8xf32> to vector<1x8x8xbf16>
    %114 = vector.extract_strided_slice %21 {offsets = [0, 0, 24], sizes = [1, 8, 8], strides = [1, 1, 1]} : vector<1x8x32xf32> to vector<1x8x8xf32>
    %115 = arith.truncf %114 : vector<1x8x8xf32> to vector<1x8x8xbf16>
    %116 = vector.extract_strided_slice %23 {offsets = [0, 0, 24], sizes = [1, 8, 8], strides = [1, 1, 1]} : vector<1x8x32xf32> to vector<1x8x8xf32>
    %117 = arith.truncf %116 : vector<1x8x8xf32> to vector<1x8x8xbf16>
    "tpu.trace_start"() <{level = 10 : i32, message = "bqd,bkd->bqk"}> : () -> ()
    %cst_34 = arith.constant dense<0.000000e+00> : vector<1x8x8xf32>
    %118 = tpu.matmul %113, %115, %cst_34 {dimension_numbers = #tpu.dot_dimension_numbers<[2], [2], [1], [1], [0, 0, 0, 1, 1, 1], [0], [0]>} : vector<1x8x8xbf16>, vector<1x8x8xbf16>, vector<1x8x8xf32> -> vector<1x8x8xf32>
    "tpu.trace_stop"() : () -> ()
    %119 = vector.shape_cast %29 : vector<8x8xf32> to vector<1x8x8xf32>
    %120 = arith.addf %118, %119 : vector<1x8x8xf32>
    %cst_35 = arith.constant dense<0xFF800000> : vector<1x8xf32>
    %121 = vector.multi_reduction <maximumf>, %120, %cst_35 [2] : vector<1x8x8xf32> to vector<1x8xf32>
    %122 = vector.shape_cast %121 : vector<1x8xf32> to vector<1x8x1xf32>
    %123 = vector.broadcast %122 : vector<1x8x1xf32> to vector<1x8x8xf32>
    %124 = arith.subf %120, %123 : vector<1x8x8xf32>
    %125 = math.exp %124 : vector<1x8x8xf32>
    %cst_36 = arith.constant dense<0.000000e+00> : vector<1x8xf32>
    %126 = vector.multi_reduction <add>, %125, %cst_36 [2] : vector<1x8x8xf32> to vector<1x8xf32>
    %127 = vector.shape_cast %126 : vector<1x8xf32> to vector<1x8x1xf32>
    %128 = tpu.reciprocal %127 {approx = true} : vector<1x8x1xf32> -> vector<1x8x1xf32>
    %129 = vector.broadcast %128 : vector<1x8x1xf32> to vector<1x8x8xf32>
    %130 = arith.mulf %125, %129 : vector<1x8x8xf32>
    %131 = arith.truncf %130 : vector<1x8x8xf32> to vector<1x8x8xbf16>
    "tpu.trace_start"() <{level = 10 : i32, message = "bqk,bkd->bqd"}> : () -> ()
    %cst_37 = arith.constant dense<0.000000e+00> : vector<1x8x8xf32>
    %132 = tpu.matmul %131, %117, %cst_37 {dimension_numbers = #tpu.dot_dimension_numbers<[2], [1], [1], [2], [0, 0, 0, 1, 1, 2], [0], [0]>} : vector<1x8x8xbf16>, vector<1x8x8xbf16>, vector<1x8x8xf32> -> vector<1x8x8xf32>
    "tpu.trace_stop"() : () -> ()
    %133 = vector.shape_cast %132 : vector<1x8x8xf32> to vector<8x8xf32>
    %134 = arith.truncf %133 : vector<8x8xf32> to vector<8x8xbf16>
    %c3 = arith.constant 3 : index
    %c0_38 = arith.constant 0 : index
    %c0_39 = arith.constant 0 : index
    %135 = vector.load %arg4[%c3, %c0_38, %c0_39] : memref<4x8x32xbf16, #tpu.memory_space<vmem>>, vector<1x8x32xbf16>
    %136 = vector.shape_cast %135 : vector<1x8x32xbf16> to vector<8x32xbf16>
    %cst_40 = arith.constant dense<0.000000e+00> : vector<8x32xf32>
    %137 = tpu.matmul %134, %136, %cst_40 {dimension_numbers = #tpu.dot_dimension_numbers<[1], [0], [0], [1], [0, 0, 1, 1], [], []>} : vector<8x8xbf16>, vector<8x32xbf16>, vector<8x32xf32> -> vector<8x32xf32>
    %138 = arith.addf %111, %137 : vector<8x32xf32>
    %c0_41 = arith.constant 0 : index
    %c0_42 = arith.constant 0 : index
    %139 = vector.load %arg5[%c0_41, %c0_42] : memref<1x32xf32, #tpu.memory_space<vmem>>, vector<1x32xf32>
    %140 = vector.broadcast %139 : vector<1x32xf32> to vector<8x32xf32>
    %141 = arith.addf %138, %140 : vector<8x32xf32>
    %142 = arith.addf %141, %1 : vector<8x32xf32>
    %143 = arith.mulf %142, %142 : vector<8x32xf32>
    %cst_43 = arith.constant dense<0.000000e+00> : vector<8xf32>
    %144 = vector.multi_reduction <add>, %143, %cst_43 [1] : vector<8x32xf32> to vector<8xf32>
    %145 = vector.shape_cast %144 : vector<8xf32> to vector<8x1xf32>
    %cst_44 = arith.constant 3.200000e+01 : f32
    %146 = vector.broadcast %cst_44 : f32 to vector<8x1xf32>
    %147 = arith.divf %145, %146 : vector<8x1xf32>
    %cst_45 = arith.constant 9.99999997E-7 : f32
    %148 = vector.broadcast %cst_45 : f32 to vector<8x1xf32>
    %149 = arith.addf %147, %148 : vector<8x1xf32>
    %150 = math.rsqrt %149 : vector<8x1xf32>
    %151 = vector.broadcast %150 : vector<8x1xf32> to vector<8x32xf32>
    %152 = arith.mulf %142, %151 : vector<8x32xf32>
    %153 = arith.truncf %152 : vector<8x32xf32> to vector<8x32xbf16>
    %c0_46 = arith.constant 0 : index
    %c0_47 = arith.constant 0 : index
    %154 = vector.load %arg6[%c0_46, %c0_47] : memref<32x64xbf16, #tpu.memory_space<vmem>>, vector<32x64xbf16>
    %cst_48 = arith.constant dense<0.000000e+00> : vector<8x64xf32>
    %155 = tpu.matmul %153, %154, %cst_48 {dimension_numbers = #tpu.dot_dimension_numbers<[1], [0], [0], [1], [0, 0, 1, 1], [], []>} : vector<8x32xbf16>, vector<32x64xbf16>, vector<8x64xf32> -> vector<8x64xf32>
    %c0_49 = arith.constant 0 : index
    %c0_50 = arith.constant 0 : index
    %156 = vector.load %arg7[%c0_49, %c0_50] : memref<1x64xf32, #tpu.memory_space<vmem>>, vector<1x64xf32>
    %157 = vector.broadcast %156 : vector<1x64xf32> to vector<8x64xf32>
    %158 = arith.addf %155, %157 : vector<8x64xf32>
    %159 = arith.negf %158 : vector<8x64xf32>
    %160 = math.exp %159 : vector<8x64xf32>
    %cst_51 = arith.constant 1.000000e+00 : f32
    %161 = vector.broadcast %cst_51 : f32 to vector<8x64xf32>
    %162 = arith.addf %161, %160 : vector<8x64xf32>
    %163 = arith.divf %161, %162 : vector<8x64xf32>
    %164 = arith.mulf %158, %163 : vector<8x64xf32>
    %c0_52 = arith.constant 0 : index
    %c0_53 = arith.constant 0 : index
    %165 = vector.load %arg8[%c0_52, %c0_53] : memref<32x64xbf16, #tpu.memory_space<vmem>>, vector<32x64xbf16>
    %cst_54 = arith.constant dense<0.000000e+00> : vector<8x64xf32>
    %166 = tpu.matmul %153, %165, %cst_54 {dimension_numbers = #tpu.dot_dimension_numbers<[1], [0], [0], [1], [0, 0, 1, 1], [], []>} : vector<8x32xbf16>, vector<32x64xbf16>, vector<8x64xf32> -> vector<8x64xf32>
    %c0_55 = arith.constant 0 : index
    %c0_56 = arith.constant 0 : index
    %167 = vector.load %arg9[%c0_55, %c0_56] : memref<1x64xf32, #tpu.memory_space<vmem>>, vector<1x64xf32>
    %168 = vector.broadcast %167 : vector<1x64xf32> to vector<8x64xf32>
    %169 = arith.addf %166, %168 : vector<8x64xf32>
    %170 = arith.mulf %169, %164 : vector<8x64xf32>
    %171 = arith.truncf %170 : vector<8x64xf32> to vector<8x64xbf16>
    %c0_57 = arith.constant 0 : index
    %c0_58 = arith.constant 0 : index
    %172 = vector.load %arg10[%c0_57, %c0_58] : memref<64x32xbf16, #tpu.memory_space<vmem>>, vector<64x32xbf16>
    %cst_59 = arith.constant dense<0.000000e+00> : vector<8x32xf32>
    %173 = tpu.matmul %171, %172, %cst_59 {dimension_numbers = #tpu.dot_dimension_numbers<[1], [0], [0], [1], [0, 0, 1, 1], [], []>} : vector<8x64xbf16>, vector<64x32xbf16>, vector<8x32xf32> -> vector<8x32xf32>
    %c0_60 = arith.constant 0 : index
    %c0_61 = arith.constant 0 : index
    %174 = vector.load %arg11[%c0_60, %c0_61] : memref<1x32xf32, #tpu.memory_space<vmem>>, vector<1x32xf32>
    %175 = vector.broadcast %174 : vector<1x32xf32> to vector<8x32xf32>
    %176 = arith.addf %173, %175 : vector<8x32xf32>
    %177 = arith.addf %176, %142 : vector<8x32xf32>
    %178 = vector.shape_cast %177 : vector<8x32xf32> to vector<1x8x32xf32>
    %c0_62 = arith.constant 0 : index
    %c0_63 = arith.constant 0 : index
    %c0_64 = arith.constant 0 : index
    %179 = vector.load %arg12[%c0_62, %c0_63, %c0_64] : memref<1x8x32xf32, #tpu.memory_space<vmem>>, vector<1x8x32xf32>
    tpu.vector_store %arg12[%c0_62, %c0_63, %c0_64], %178 {strides = array<i32>} : memref<1x8x32xf32, #tpu.memory_space<vmem>>, vector<1x8x32xf32>,
    return
  }
  func.func @transform_0(%arg0: i32) -> (i32, i32, i32) {
    %c0_i32 = arith.constant 0 : i32
    %c0_i32_0 = arith.constant 0 : i32
    %c0_i32_1 = arith.constant 0 : i32
    return %arg0, %c0_i32, %c0_i32_0 : i32, i32, i32
  }
  func.func @transform_1(%arg0: i32) -> (i32, i32) {
    %c0_i32 = arith.constant 0 : i32
    %c0_i32_0 = arith.constant 0 : i32
    %c0_i32_1 = arith.constant 0 : i32
    return %c0_i32, %c0_i32_0 : i32, i32
  }
  func.func @transform_2(%arg0: i32) -> (i32, i32) {
    %c0_i32 = arith.constant 0 : i32
    %c0_i32_0 = arith.constant 0 : i32
    %c0_i32_1 = arith.constant 0 : i32
    return %c0_i32, %c0_i32_0 : i32, i32
  }
  func.func @transform_3(%arg0: i32) -> (i32, i32, i32) {
    %c0_i32 = arith.constant 0 : i32
    %c0_i32_0 = arith.constant 0 : i32
    %c0_i32_1 = arith.constant 0 : i32
    %c0_i32_2 = arith.constant 0 : i32
    return %c0_i32, %c0_i32_0, %c0_i32_1 : i32, i32, i32
  }
  func.func @transform_4(%arg0: i32) -> (i32, i32) {
    %c0_i32 = arith.constant 0 : i32
    %c0_i32_0 = arith.constant 0 : i32
    %c0_i32_1 = arith.constant 0 : i32
    return %c0_i32, %c0_i32_0 : i32, i32
  }
  func.func @transform_5(%arg0: i32) -> (i32, i32) {
    %c0_i32 = arith.constant 0 : i32
    %c0_i32_0 = arith.constant 0 : i32
    %c0_i32_1 = arith.constant 0 : i32
    return %c0_i32, %c0_i32_0 : i32, i32
  }
  func.func @transform_6(%arg0: i32) -> (i32, i32) {
    %c0_i32 = arith.constant 0 : i32
    %c0_i32_0 = arith.constant 0 : i32
    %c0_i32_1 = arith.constant 0 : i32
    return %c0_i32, %c0_i32_0 : i32, i32
  }
  func.func @transform_7(%arg0: i32) -> (i32, i32) {
    %c0_i32 = arith.constant 0 : i32
    %c0_i32_0 = arith.constant 0 : i32
    %c0_i32_1 = arith.constant 0 : i32
    return %c0_i32, %c0_i32_0 : i32, i32
  }
  func.func @transform_8(%arg0: i32) -> (i32, i32) {
    %c0_i32 = arith.constant 0 : i32
    %c0_i32_0 = arith.constant 0 : i32
    %c0_i32_1 = arith.constant 0 : i32
    return %c0_i32, %c0_i32_0 : i32, i32
  }
  func.func @transform_9(%arg0: i32) -> (i32, i32) {
    %c0_i32 = arith.constant 0 : i32
    %c0_i32_0 = arith.constant 0 : i32
    %c0_i32_1 = arith.constant 0 : i32
    return %c0_i32, %c0_i32_0 : i32, i32
  }
  func.func @transform_10(%arg0: i32) -> (i32, i32) {
    %c0_i32 = arith.constant 0 : i32
    %c0_i32_0 = arith.constant 0 : i32
    %c0_i32_1 = arith.constant 0 : i32
    return %c0_i32, %c0_i32_0 : i32, i32
  }
  func.func @transform_11(%arg0: i32) -> (i32, i32, i32) {
    %c0_i32 = arith.constant 0 : i32
    %c0_i32_0 = arith.constant 0 : i32
    %c0_i32_1 = arith.constant 0 : i32
    return %arg0, %c0_i32, %c0_i32_0 : i32, i32, i32
  }
}

module attributes {stable_mosaic.version = 11 : i64} {
  func.func @decoder_block_kernel(%arg0: i32, %arg1: memref<1x8x32xf32, #tpu.memory_space<vmem>>, %arg2: memref<32x96xbf16, #tpu.memory_space<vmem>>, %arg3: memref<1x96xf32, #tpu.memory_space<vmem>>, %arg4: memref<4x8x32xbf16, #tpu.memory_space<vmem>>, %arg5: memref<1x32xf32, #tpu.memory_space<vmem>>, %arg6: memref<32x64xbf16, #tpu.memory_space<vmem>>, %arg7: memref<1x64xf32, #tpu.memory_space<vmem>>, %arg8: memref<32x64xbf16, #tpu.memory_space<vmem>>, %arg9: memref<1x64xf32, #tpu.memory_space<vmem>>, %arg10: memref<64x32xbf16, #tpu.memory_space<vmem>>, %arg11: memref<1x32xf32, #tpu.memory_space<vmem>>, %arg12: memref<1x8x32xf32, #tpu.memory_space<vmem>>) attributes {dimension_semantics = [#tpu.dimension_semantics<parallel>], iteration_bounds = array<i64: 2>, scalar_prefetch = 0 : i64, scratch_operands = 0 : i64, tpu.core_type = #tpu.core_type<tc>, window_params = [{transform_indices = @transform_0, window_bounds = array<i64: 1, 8, 32>}, {pipeline_mode = #tpu.pipeline_mode<synchronous>, transform_indices = @transform_1, window_bounds = array<i64: 32, 96>}, {pipeline_mode = #tpu.pipeline_mode<synchronous>, transform_indices = @transform_2, window_bounds = array<i64: 1, 96>}, {pipeline_mode = #tpu.pipeline_mode<synchronous>, transform_indices = @transform_3, window_bounds = array<i64: 4, 8, 32>}, {pipeline_mode = #tpu.pipeline_mode<synchronous>, transform_indices = @transform_4, window_bounds = array<i64: 1, 32>}, {pipeline_mode = #tpu.pipeline_mode<synchronous>, transform_indices = @transform_5, window_bounds = array<i64: 32, 64>}, {pipeline_mode = #tpu.pipeline_mode<synchronous>, transform_indices = @transform_6, window_bounds = array<i64: 1, 64>}, {pipeline_mode = #tpu.pipeline_mode<synchronous>, transform_indices = @transform_7, window_bounds = array<i64: 32, 64>}, {pipeline_mode = #tpu.pipeline_mode<synchronous>, transform_indices = @transform_8, window_bounds = array<i64: 1, 64>}, {pipeline_mode = #tpu.pipeline_mode<synchronous>, transform_indices = @transform_9, window_bounds = array<i64: 64, 32>}, {pipeline_mode = #tpu.pipeline_mode<synchronous>, transform_indices = @transform_10, window_bounds = array<i64: 1, 32>}, {transform_indices = @transform_11, window_bounds = array<i64: 1, 8, 32>}]} {
    %c0 = arith.constant 0 : index
    %c0_0 = arith.constant 0 : index
    %c0_1 = arith.constant 0 : index
    %0 = vector.load %arg1[%c0, %c0_0, %c0_1] : memref<1x8x32xf32, #tpu.memory_space<vmem>>, vector<1x8x32xf32>
    %1 = vector.shape_cast %0 : vector<1x8x32xf32> to vector<8x32xf32>
    %2 = arith.mulf %1, %1 : vector<8x32xf32>
    %cst = arith.constant dense<0.000000e+00> : vector<8xf32>
    %3 = vector.multi_reduction <add>, %2, %cst [1] : vector<8x32xf32> to vector<8xf32>
    %4 = vector.shape_cast %3 : vector<8xf32> to vector<8x1xf32>
    %cst_2 = arith.constant 3.200000e+01 : f32
    %5 = vector.broadcast %cst_2 : f32 to vector<8x1xf32>
    %6 = arith.divf %4, %5 : vector<8x1xf32>
    %cst_3 = arith.constant 9.99999997E-7 : f32
    %7 = vector.broadcast %cst_3 : f32 to vector<8x1xf32>
    %8 = arith.addf %6, %7 : vector<8x1xf32>
    %9 = math.rsqrt %8 : vector<8x1xf32>
    %10 = vector.broadcast %9 : vector<8x1xf32> to vector<8x32xf32>
    %11 = arith.mulf %1, %10 : vector<8x32xf32>
    %12 = arith.truncf %11 : vector<8x32xf32> to vector<8x32xbf16>
    %c0_4 = arith.constant 0 : index
    %c0_5 = arith.constant 0 : index
    %13 = vector.load %arg2[%c0_4, %c0_5] : memref<32x96xbf16, #tpu.memory_space<vmem>>, vector<32x96xbf16>
    %cst_6 = arith.constant dense<0.000000e+00> : vector<8x96xf32>
    %14 = tpu.matmul %12, %13, %cst_6 {dimension_numbers = #tpu.dot_dimension_numbers<[1], [0], [0], [1], [0, 0, 1, 1], [], []>} : vector<8x32xbf16>, vector<32x96xbf16>, vector<8x96xf32> -> vector<8x96xf32>
    %c0_7 = arith.constant 0 : index
    %c0_8 = arith.constant 0 : index
    %15 = vector.load %arg3[%c0_7, %c0_8] : memref<1x96xf32, #tpu.memory_space<vmem>>, vector<1x96xf32>
    %16 = vector.broadcast %15 : vector<1x96xf32> to vector<8x96xf32>
    %17 = arith.addf %14, %16 : vector<8x96xf32>
    %18 = vector.extract_strided_slice %17 {offsets = [0, 0], sizes = [8, 32], strides = [1, 1]} : vector<8x96xf32> to vector<8x32xf32>
    %19 = vector.shape_cast %18 : vector<8x32xf32> to vector<1x8x32xf32>
    %20 = vector.extract_strided_slice %17 {offsets = [0, 32], sizes = [8, 32], strides = [1, 1]} : vector<8x96xf32> to vector<8x32xf32>
    %21 = vector.shape_cast %20 : vector<8x32xf32> to vector<1x8x32xf32>
    %22 = vector.extract_strided_slice %17 {offsets = [0, 64], sizes = [8, 32], strides = [1, 1]} : vector<8x96xf32> to vector<8x32xf32>
    %23 = vector.shape_cast %22 : vector<8x32xf32> to vector<1x8x32xf32>
    %24 = tpu.iota {dimensions = array<i32: 0>} : vector<8x8xi32>
    %25 = tpu.iota {dimensions = array<i32: 1>} : vector<8x8xi32>
    %26 = arith.cmpi sge, %24, %25 : vector<8x8xi32>
    %cst_9 = arith.constant 0.000000e+00 : f32
    %cst_10 = arith.constant -1.000000e+09 : f32
    %27 = vector.broadcast %cst_9 : f32 to vector<8x8xf32>
    %28 = vector.broadcast %cst_10 : f32 to vector<8x8xf32>
    %29 = arith.select %26, %27, %28 : vector<8x8xi1>, vector<8x8xf32>
    %cst_11 = arith.constant 0.000000e+00 : f32
    %30 = vector.broadcast %cst_11 : f32 to vector<8x32xf32>
    %31 = vector.extract_strided_slice %19 {offsets = [0, 0, 0], sizes = [1, 8, 8], strides = [1, 1, 1]} : vector<1x8x32xf32> to vector<1x8x8xf32>
    %32 = arith.truncf %31 : vector<1x8x8xf32> to vector<1x8x8xbf16>
    %33 = vector.extract_strided_slice %21 {offsets = [0, 0, 0], sizes = [1, 8, 8], strides = [1, 1, 1]} : vector<1x8x32xf32> to vector<1x8x8xf32>
    %34 = arith.truncf %33 : vector<1x8x8xf32> to vector<1x8x8xbf16>
    %35 = vector.extract_strided_slice %23 {offsets = [0, 0, 0], sizes = [1, 8, 8], strides = [1, 1, 1]} : vector<1x8x32xf32> to vector<1x8x8xf32>
    %36 = arith.truncf %35 : vector<1x8x8xf32> to vector<1x8x8xbf16>
    "tpu.trace_start"() <{level = 10 : i32, message = "bqd,bkd->bqk"}> : () -> ()
    %cst_12 = arith.constant dense<0.000000e+00> : vector<1x8x8xf32>
    %37 = tpu.matmul %32, %34, %cst_12 {dimension_numbers = #tpu.dot_dimension_numbers<[2], [2], [1], [1], [0, 0, 0, 1, 1, 1], [0], [0]>} : vector<1x8x8xbf16>, vector<1x8x8xbf16>, vector<1x8x8xf32> -> vector<1x8x8xf32>
    "tpu.trace_stop"() : () -> ()
    %38 = vector.shape_cast %29 : vector<8x8xf32> to vector<1x8x8xf32>
    %39 = arith.addf %37, %38 : vector<1x8x8xf32>
    %cst_13 = arith.constant dense<0xFF800000> : vector<1x8xf32>
    %40 = vector.multi_reduction <maximumf>, %39, %cst_13 [2] : vector<1x8x8xf32> to vector<1x8xf32>
    %41 = vector.shape_cast %40 : vector<1x8xf32> to vector<1x8x1xf32>
    %42 = vector.broadcast %41 : vector<1x8x1xf32> to vector<1x8x8xf32>
    %43 = arith.subf %39, %42 : vector<1x8x8xf32>
    %44 = math.exp %43 : vector<1x8x8xf32>
    %cst_14 = arith.constant dense<0.000000e+00> : vector<1x8xf32>
    %45 = vector.multi_reduction <add>, %44, %cst_14 [2] : vector<1x8x8xf32> to vector<1x8xf32>
    %46 = vector.shape_cast %45 : vector<1x8xf32> to vector<1x8x1xf32>
    %47 = tpu.reciprocal %46 {approx = true} : vector<1x8x1xf32> -> vector<1x8x1xf32>
    %48 = vector.broadcast %47 : vector<1x8x1xf32> to vector<1x8x8xf32>
    %49 = arith.mulf %44, %48 : vector<1x8x8xf32>
    %50 = arith.truncf %49 : vector<1x8x8xf32> to vector<1x8x8xbf16>
    "tpu.trace_start"() <{level = 10 : i32, message = "bqk,bkd->bqd"}> : () -> ()
    %cst_15 = arith.constant dense<0.000000e+00> : vector<1x8x8xf32>
    %51 = tpu.matmul %50, %36, %cst_15 {dimension_numbers = #tpu.dot_dimension_numbers<[2], [1], [1], [2], [0, 0, 0, 1, 1, 2], [0], [0]>} : vector<1x8x8xbf16>, vector<1x8x8xbf16>, vector<1x8x8xf32> -> vector<1x8x8xf32>
    "tpu.trace_stop"() : () -> ()
    %52 = vector.shape_cast %51 : vector<1x8x8xf32> to vector<8x8xf32>
    %53 = arith.truncf %52 : vector<8x8xf32> to vector<8x8xbf16>
    %c0_16 = arith.constant 0 : index
    %c0_17 = arith.constant 0 : index
    %c0_18 = arith.constant 0 : index
    %54 = vector.load %arg4[%c0_16, %c0_17, %c0_18] : memref<4x8x32xbf16, #tpu.memory_space<vmem>>, vector<1x8x32xbf16>
    %55 = vector.shape_cast %54 : vector<1x8x32xbf16> to vector<8x32xbf16>
    %cst_19 = arith.constant dense<0.000000e+00> : vector<8x32xf32>
    %56 = tpu.matmul %53, %55, %cst_19 {dimension_numbers = #tpu.dot_dimension_numbers<[1], [0], [0], [1], [0, 0, 1, 1], [], []>} : vector<8x8xbf16>, vector<8x32xbf16>, vector<8x32xf32> -> vector<8x32xf32>
    %57 = arith.addf %30, %56 : vector<8x32xf32>
    %58 = vector.extract_strided_slice %19 {offsets = [0, 0, 8], sizes = [1, 8, 8], strides = [1, 1, 1]} : vector<1x8x32xf32> to vector<1x8x8xf32>
    %59 = arith.truncf %58 : vector<1x8x8xf32> to vector<1x8x8xbf16>
    %60 = vector.extract_strided_slice %21 {offsets = [0, 0, 8], sizes = [1, 8, 8], strides = [1, 1, 1]} : vector<1x8x32xf32> to vector<1x8x8xf32>
    %61 = arith.truncf %60 : vector<1x8x8xf32> to vector<1x8x8xbf16>
    %62 = vector.extract_strided_slice %23 {offsets = [0, 0, 8], sizes = [1, 8, 8], strides = [1, 1, 1]} : vector<1x8x32xf32> to vector<1x8x8xf32>
    %63 = arith.truncf %62 : vector<1x8x8xf32> to vector<1x8x8xbf16>
    "tpu.trace_start"() <{level = 10 : i32, message = "bqd,bkd->bqk"}> : () -> ()
    %cst_20 = arith.constant dense<0.000000e+00> : vector<1x8x8xf32>
    %64 = tpu.matmul %59, %61, %cst_20 {dimension_numbers = #tpu.dot_dimension_numbers<[2], [2], [1], [1], [0, 0, 0, 1, 1, 1], [0], [0]>} : vector<1x8x8xbf16>, vector<1x8x8xbf16>, vector<1x8x8xf32> -> vector<1x8x8xf32>
    "tpu.trace_stop"() : () -> ()
    %65 = vector.shape_cast %29 : vector<8x8xf32> to vector<1x8x8xf32>
    %66 = arith.addf %64, %65 : vector<1x8x8xf32>
    %cst_21 = arith.constant dense<0xFF800000> : vector<1x8xf32>
    %67 = vector.multi_reduction <maximumf>, %66, %cst_21 [2] : vector<1x8x8xf32> to vector<1x8xf32>
    %68 = vector.shape_cast %67 : vector<1x8xf32> to vector<1x8x1xf32>
    %69 = vector.broadcast %68 : vector<1x8x1xf32> to vector<1x8x8xf32>
    %70 = arith.subf %66, %69 : vector<1x8x8xf32>
    %71 = math.exp %70 : vector<1x8x8xf32>
    %cst_22 = arith.constant dense<0.000000e+00> : vector<1x8xf32>
    %72 = vector.multi_reduction <add>, %71, %cst_22 [2] : vector<1x8x8xf32> to vector<1x8xf32>
    %73 = vector.shape_cast %72 : vector<1x8xf32> to vector<1x8x1xf32>
    %74 = tpu.reciprocal %73 {approx = true} : vector<1x8x1xf32> -> vector<1x8x1xf32>
    %75 = vector.broadcast %74 : vector<1x8x1xf32> to vector<1x8x8xf32>
    %76 = arith.mulf %71, %75 : vector<1x8x8xf32>
    %77 = arith.truncf %76 : vector<1x8x8xf32> to vector<1x8x8xbf16>
    "tpu.trace_start"() <{level = 10 : i32, message = "bqk,bkd->bqd"}> : () -> ()
    %cst_23 = arith.constant dense<0.000000e+00> : vector<1x8x8xf32>
    %78 = tpu.matmul %77, %63, %cst_23 {dimension_numbers = #tpu.dot_dimension_numbers<[2], [1], [1], [2], [0, 0, 0, 1, 1, 2], [0], [0]>} : vector<1x8x8xbf16>, vector<1x8x8xbf16>, vector<1x8x8xf32> -> vector<1x8x8xf32>
    "tpu.trace_stop"() : () -> ()
    %79 = vector.shape_cast %78 : vector<1x8x8xf32> to vector<8x8xf32>
    %80 = arith.truncf %79 : vector<8x8xf32> to vector<8x8xbf16>
    %c1 = arith.constant 1 : index
    %c0_24 = arith.constant 0 : index
    %c0_25 = arith.constant 0 : index
    %81 = vector.load %arg4[%c1, %c0_24, %c0_25] : memref<4x8x32xbf16, #tpu.memory_space<vmem>>, vector<1x8x32xbf16>
    %82 = vector.shape_cast %81 : vector<1x8x32xbf16> to vector<8x32xbf16>
    %cst_26 = arith.constant dense<0.000000e+00> : vector<8x32xf32>
    %83 = tpu.matmul %80, %82, %cst_26 {dimension_numbers = #tpu.dot_dimension_numbers<[1], [0], [0], [1], [0, 0, 1, 1], [], []>} : vector<8x8xbf16>, vector<8x32xbf16>, vector<8x32xf32> -> vector<8x32xf32>
    %84 = arith.addf %57, %83 : vector<8x32xf32>
    %85 = vector.extract_strided_slice %19 {offsets = [0, 0, 16], sizes = [1, 8, 8], strides = [1, 1, 1]} : vector<1x8x32xf32> to vector<1x8x8xf32>
    %86 = arith.truncf %85 : vector<1x8x8xf32> to vector<1x8x8xbf16>
    %87 = vector.extract_strided_slice %21 {offsets = [0, 0, 16], sizes = [1, 8, 8], strides = [1, 1, 1]} : vector<1x8x32xf32> to vector<1x8x8xf32>
    %88 = arith.truncf %87 : vector<1x8x8xf32> to vector<1x8x8xbf16>
    %89 = vector.extract_strided_slice %23 {offsets = [0, 0, 16], sizes = [1, 8, 8], strides = [1, 1, 1]} : vector<1x8x32xf32> to vector<1x8x8xf32>
    %90 = arith.truncf %89 : vector<1x8x8xf32> to vector<1x8x8xbf16>
    "tpu.trace_start"() <{level = 10 : i32, message = "bqd,bkd->bqk"}> : () -> ()
    %cst_27 = arith.constant dense<0.000000e+00> : vector<1x8x8xf32>
    %91 = tpu.matmul %86, %88, %cst_27 {dimension_numbers = #tpu.dot_dimension_numbers<[2], [2], [1], [1], [0, 0, 0, 1, 1, 1], [0], [0]>} : vector<1x8x8xbf16>, vector<1x8x8xbf16>, vector<1x8x8xf32> -> vector<1x8x8xf32>
    "tpu.trace_stop"() : () -> ()
    %92 = vector.shape_cast %29 : vector<8x8xf32> to vector<1x8x8xf32>
    %93 = arith.addf %91, %92 : vector<1x8x8xf32>
    %cst_28 = arith.constant dense<0xFF800000> : vector<1x8xf32>
    %94 = vector.multi_reduction <maximumf>, %93, %cst_28 [2] : vector<1x8x8xf32> to vector<1x8xf32>
    %95 = vector.shape_cast %94 : vector<1x8xf32> to vector<1x8x1xf32>
    %96 = vector.broadcast %95 : vector<1x8x1xf32> to vector<1x8x8xf32>
    %97 = arith.subf %93, %96 : vector<1x8x8xf32>
    %98 = math.exp %97 : vector<1x8x8xf32>
    %cst_29 = arith.constant dense<0.000000e+00> : vector<1x8xf32>
    %99 = vector.multi_reduction <add>, %98, %cst_29 [2] : vector<1x8x8xf32> to vector<1x8xf32>
    %100 = vector.shape_cast %99 : vector<1x8xf32> to vector<1x8x1xf32>
    %101 = tpu.reciprocal %100 {approx = true} : vector<1x8x1xf32> -> vector<1x8x1xf32>
    %102 = vector.broadcast %101 : vector<1x8x1xf32> to vector<1x8x8xf32>
    %103 = arith.mulf %98, %102 : vector<1x8x8xf32>
    %104 = arith.truncf %103 : vector<1x8x8xf32> to vector<1x8x8xbf16>
    "tpu.trace_start"() <{level = 10 : i32, message = "bqk,bkd->bqd"}> : () -> ()
    %cst_30 = arith.constant dense<0.000000e+00> : vector<1x8x8xf32>
    %105 = tpu.matmul %104, %90, %cst_30 {dimension_numbers = #tpu.dot_dimension_numbers<[2], [1], [1], [2], [0, 0, 0, 1, 1, 2], [0], [0]>} : vector<1x8x8xbf16>, vector<1x8x8xbf16>, vector<1x8x8xf32> -> vector<1x8x8xf32>
    "tpu.trace_stop"() : () -> ()
    %106 = vector.shape_cast %105 : vector<1x8x8xf32> to vector<8x8xf32>
    %107 = arith.truncf %106 : vector<8x8xf32> to vector<8x8xbf16>
    %c2 = arith.constant 2 : index
    %c0_31 = arith.constant 0 : index
    %c0_32 = arith.constant 0 : index
    %108 = vector.load %arg4[%c2, %c0_31, %c0_32] : memref<4x8x32xbf16, #tpu.memory_space<vmem>>, vector<1x8x32xbf16>
    %109 = vector.shape_cast %108 : vector<1x8x32xbf16> to vector<8x32xbf16>
    %cst_33 = arith.constant dense<0.000000e+00> : vector<8x32xf32>
    %110 = tpu.matmul %107, %109, %cst_33 {dimension_numbers = #tpu.dot_dimension_numbers<[1], [0], [0], [1], [0, 0, 1, 1], [], []>} : vector<8x8xbf16>, vector<8x32xbf16>, vector<8x32xf32> -> vector<8x32xf32>
    %111 = arith.addf %84, %110 : vector<8x32xf32>
    %112 = vector.extract_strided_slice %19 {offsets = [0, 0, 24], sizes = [1, 8, 8], strides = [1, 1, 1]} : vector<1x8x32xf32> to vector<1x8x8xf32>
    %113 = arith.truncf %112 : vector<1x8x8xf32> to vector<1x8x8xbf16>
    %114 = vector.extract_strided_slice %21 {offsets = [0, 0, 24], sizes = [1, 8, 8], strides = [1, 1, 1]} : vector<1x8x32xf32> to vector<1x8x8xf32>
    %115 = arith.truncf %114 : vector<1x8x8xf32> to vector<1x8x8xbf16>
    %116 = vector.extract_strided_slice %23 {offsets = [0, 0, 24], sizes = [1, 8, 8], strides = [1, 1, 1]} : vector<1x8x32xf32> to vector<1x8x8xf32>
    %117 = arith.truncf %116 : vector<1x8x8xf32> to vector<1x8x8xbf16>
    "tpu.trace_start"() <{level = 10 : i32, message = "bqd,bkd->bqk"}> : () -> ()
    %cst_34 = arith.constant dense<0.000000e+00> : vector<1x8x8xf32>
    %118 = tpu.matmul %113, %115, %cst_34 {dimension_numbers = #tpu.dot_dimension_numbers<[2], [2], [1], [1], [0, 0, 0, 1, 1, 1], [0], [0]>} : vector<1x8x8xbf16>, vector<1x8x8xbf16>, vector<1x8x8xf32> -> vector<1x8x8xf32>
    "tpu.trace_stop"() : () -> ()
    %119 = vector.shape_cast %29 : vector<8x8xf32> to vector<1x8x8xf32>
    %120 = arith.addf %118, %119 : vector<1x8x8xf32>
    %cst_35 = arith.constant dense<0xFF800000> : vector<1x8xf32>
    %121 = vector.multi_reduction <maximumf>, %120, %cst_35 [2] : vector<1x8x8xf32> to vector<1x8xf32>
    %122 = vector.shape_cast %121 : vector<1x8xf32> to vector<1x8x1xf32>
    %123 = vector.broadcast %122 : vector<1x8x1xf32> to vector<1x8x8xf32>
    %124 = arith.subf %120, %123 : vector<1x8x8xf32>
    %125 = math.exp %124 : vector<1x8x8xf32>
    %cst_36 = arith.constant dense<0.000000e+00> : vector<1x8xf32>
    %126 = vector.multi_reduction <add>, %125, %cst_36 [2] : vector<1x8x8xf32> to vector<1x8xf32>
    %127 = vector.shape_cast %126 : vector<1x8xf32> to vector<1x8x1xf32>
    %128 = tpu.reciprocal %127 {approx = true} : vector<1x8x1xf32> -> vector<1x8x1xf32>
    %129 = vector.broadcast %128 : vector<1x8x1xf32> to vector<1x8x8xf32>
    %130 = arith.mulf %125, %129 : vector<1x8x8xf32>
    %131 = arith.truncf %130 : vector<1x8x8xf32> to vector<1x8x8xbf16>
    "tpu.trace_start"() <{level = 10 : i32, message = "bqk,bkd->bqd"}> : () -> ()
    %cst_37 = arith.constant dense<0.000000e+00> : vector<1x8x8xf32>
    %132 = tpu.matmul %131, %117, %cst_37 {dimension_numbers = #tpu.dot_dimension_numbers<[2], [1], [1], [2], [0, 0, 0, 1, 1, 2], [0], [0]>} : vector<1x8x8xbf16>, vector<1x8x8xbf16>, vector<1x8x8xf32> -> vector<1x8x8xf32>
    "tpu.trace_stop"() : () -> ()
    %133 = vector.shape_cast %132 : vector<1x8x8xf32> to vector<8x8xf32>
    %134 = arith.truncf %133 : vector<8x8xf32> to vector<8x8xbf16>
    %c3 = arith.constant 3 : index
    %c0_38 = arith.constant 0 : index
    %c0_39 = arith.constant 0 : index
    %135 = vector.load %arg4[%c3, %c0_38, %c0_39] : memref<4x8x32xbf16, #tpu.memory_space<vmem>>, vector<1x8x32xbf16>
    %136 = vector.shape_cast %135 : vector<1x8x32xbf16> to vector<8x32xbf16>
    %cst_40 = arith.constant dense<0.000000e+00> : vector<8x32xf32>
    %137 = tpu.matmul %134, %136, %cst_40 {dimension_numbers = #tpu.dot_dimension_numbers<[1], [0], [0], [1], [0, 0, 1, 1], [], []>} : vector<8x8xbf16>, vector<8x32xbf16>, vector<8x32xf32> -> vector<8x32xf32>
    %138 = arith.addf %111, %137 : vector<8x32xf32>
    %c0_41 = arith.constant 0 : index
    %c0_42 = arith.constant 0 : index
    %139 = vector.load %arg5[%c0_41, %c0_42] : memref<1x32xf32, #tpu.memory_space<vmem>>, vector<1x32xf32>
    %140 = vector.broadcast %139 : vector<1x32xf32> to vector<8x32xf32>
    %141 = arith.addf %138, %140 : vector<8x32xf32>
    %142 = arith.addf %141, %1 : vector<8x32xf32>
    %143 = arith.mulf %142, %142 : vector<8x32xf32>
    %cst_43 = arith.constant dense<0.000000e+00> : vector<8xf32>
    %144 = vector.multi_reduction <add>, %143, %cst_43 [1] : vector<8x32xf32> to vector<8xf32>
    %145 = vector.shape_cast %144 : vector<8xf32> to vector<8x1xf32>
    %cst_44 = arith.constant 3.200000e+01 : f32
    %146 = vector.broadcast %cst_44 : f32 to vector<8x1xf32>
    %147 = arith.divf %145, %146 : vector<8x1xf32>
    %cst_45 = arith.constant 9.99999997E-7 : f32
    %148 = vector.broadcast %cst_45 : f32 to vector<8x1xf32>
    %149 = arith.addf %147, %148 : vector<8x1xf32>
    %150 = math.rsqrt %149 : vector<8x1xf32>
    %151 = vector.broadcast %150 : vector<8x1xf32> to vector<8x32xf32>
    %152 = arith.mulf %142, %151 : vector<8x32xf32>
    %153 = arith.truncf %152 : vector<8x32xf32> to vector<8x32xbf16>
    %c0_46 = arith.constant 0 : index
    %c0_47 = arith.constant 0 : index
    %154 = vector.load %arg6[%c0_46, %c0_47] : memref<32x64xbf16, #tpu.memory_space<vmem>>, vector<32x64xbf16>
    %cst_48 = arith.constant dense<0.000000e+00> : vector<8x64xf32>
    %155 = tpu.matmul %153, %154, %cst_48 {dimension_numbers = #tpu.dot_dimension_numbers<[1], [0], [0], [1], [0, 0, 1, 1], [], []>} : vector<8x32xbf16>, vector<32x64xbf16>, vector<8x64xf32> -> vector<8x64xf32>
    %c0_49 = arith.constant 0 : index
    %c0_50 = arith.constant 0 : index
    %156 = vector.load %arg7[%c0_49, %c0_50] : memref<1x64xf32, #tpu.memory_space<vmem>>, vector<1x64xf32>
    %157 = vector.broadcast %156 : vector<1x64xf32> to vector<8x64xf32>
    %158 = arith.addf %155, %157 : vector<8x64xf32>
    %159 = arith.negf %158 : vector<8x64xf32>
    %160 = math.exp %159 : vector<8x64xf32>
    %cst_51 = arith.constant 1.000000e+00 : f32
    %161 = vector.broadcast %cst_51 : f32 to vector<8x64xf32>
    %162 = arith.addf %161, %160 : vector<8x64xf32>
    %163 = arith.divf %161, %162 : vector<8x64xf32>
    %164 = arith.mulf %158, %163 : vector<8x64xf32>
    %c0_52 = arith.constant 0 : index
    %c0_53 = arith.constant 0 : index
    %165 = vector.load %arg8[%c0_52, %c0_53] : memref<32x64xbf16, #tpu.memory_space<vmem>>, vector<32x64xbf16>
    %cst_54 = arith.constant dense<0.000000e+00> : vector<8x64xf32>
    %166 = tpu.matmul %153, %165, %cst_54 {dimension_numbers = #tpu.dot_dimension_numbers<[1], [0], [0], [1], [0, 0, 1, 1], [], []>} : vector<8x32xbf16>, vector<32x64xbf16>, vector<8x64xf32> -> vector<8x64xf32>
    %c0_55 = arith.constant 0 : index
    %c0_56 = arith.constant 0 : index
    %167 = vector.load %arg9[%c0_55, %c0_56] : memref<1x64xf32, #tpu.memory_space<vmem>>, vector<1x64xf32>
    %168 = vector.broadcast %167 : vector<1x64xf32> to vector<8x64xf32>
    %169 = arith.addf %166, %168 : vector<8x64xf32>
    %170 = arith.mulf %169, %164 : vector<8x64xf32>
    %171 = arith.truncf %170 : vector<8x64xf32> to vector<8x64xbf16>
    %c0_57 = arith.constant 0 : index
    %c0_58 = arith.constant 0 : index
    %172 = vector.load %arg10[%c0_57, %c0_58] : memref<64x32xbf16, #tpu.memory_space<vmem>>, vector<64x32xbf16>
    %cst_59 = arith.constant dense<0.000000e+00> : vector<8x32xf32>
    %173 = tpu.matmul %171, %172, %cst_59 {dimension_numbers = #tpu.dot_dimension_numbers<[1], [0], [0], [1], [0, 0, 1, 1], [], []>} : vector<8x64xbf16>, vector<64x32xbf16>, vector<8x32xf32> -> vector<8x32xf32>
    %c0_60 = arith.constant 0 : index
    %c0_61 = arith.constant 0 : index
    %174 = vector.load %arg11[%c0_60, %c0_61] : memref<1x32xf32, #tpu.memory_space<vmem>>, vector<1x32xf32>
    %175 = vector.broadcast %174 : vector<1x32xf32> to vector<8x32xf32>
    %176 = arith.addf %173, %175 : vector<8x32xf32>
    %177 = arith.addf %176, %142 : vector<8x32xf32>
    %178 = vector.shape_cast %177 : vector<8x32xf32> to vector<1x8x32xf32>
    %c0_62 = arith.constant 0 : index
    %c0_63 = arith.constant 0 : index
    %c0_64 = arith.constant 0 : index
    %179 = vector.load %arg12[%c0_62, %c0_63, %c0_64] : memref<1x8x32xf32, #tpu.memory_space<vmem>>, vector<1x8x32xf32>
    tpu.vector_store %arg12[%c0_62, %c0_63, %c0_64], %178 {strides = array<i32>} : memref<1x8x32xf32, #tpu.memory_space<vmem>>, vector<1x8x32xf32>,
    return
  }
  func.func @transform_0(%arg0: i32) -> (i32, i32, i32) {
    %c0_i32 = arith.constant 0 : i32
    %c0_i32_0 = arith.constant 0 : i32
    %c0_i32_1 = arith.constant 0 : i32
    return %arg0, %c0_i32, %c0_i32_0 : i32, i32, i32
  }
  func.func @transform_1(%arg0: i32) -> (i32, i32) {
    %c0_i32 = arith.constant 0 : i32
    %c0_i32_0 = arith.constant 0 : i32
    %c0_i32_1 = arith.constant 0 : i32
    return %c0_i32, %c0_i32_0 : i32, i32
  }
  func.func @transform_2(%arg0: i32) -> (i32, i32) {
    %c0_i32 = arith.constant 0 : i32
    %c0_i32_0 = arith.constant 0 : i32
    %c0_i32_1 = arith.constant 0 : i32
    return %c0_i32, %c0_i32_0 : i32, i32
  }
  func.func @transform_3(%arg0: i32) -> (i32, i32, i32) {
    %c0_i32 = arith.constant 0 : i32
    %c0_i32_0 = arith.constant 0 : i32
    %c0_i32_1 = arith.constant 0 : i32
    %c0_i32_2 = arith.constant 0 : i32
    return %c0_i32, %c0_i32_0, %c0_i32_1 : i32, i32, i32
  }
  func.func @transform_4(%arg0: i32) -> (i32, i32) {
    %c0_i32 = arith.constant 0 : i32
    %c0_i32_0 = arith.constant 0 : i32
    %c0_i32_1 = arith.constant 0 : i32
    return %c0_i32, %c0_i32_0 : i32, i32
  }
  func.func @transform_5(%arg0: i32) -> (i32, i32) {
    %c0_i32 = arith.constant 0 : i32
    %c0_i32_0 = arith.constant 0 : i32
    %c0_i32_1 = arith.constant 0 : i32
    return %c0_i32, %c0_i32_0 : i32, i32
  }
  func.func @transform_6(%arg0: i32) -> (i32, i32) {
    %c0_i32 = arith.constant 0 : i32
    %c0_i32_0 = arith.constant 0 : i32
    %c0_i32_1 = arith.constant 0 : i32
    return %c0_i32, %c0_i32_0 : i32, i32
  }
  func.func @transform_7(%arg0: i32) -> (i32, i32) {
    %c0_i32 = arith.constant 0 : i32
    %c0_i32_0 = arith.constant 0 : i32
    %c0_i32_1 = arith.constant 0 : i32
    return %c0_i32, %c0_i32_0 : i32, i32
  }
  func.func @transform_8(%arg0: i32) -> (i32, i32) {
    %c0_i32 = arith.constant 0 : i32
    %c0_i32_0 = arith.constant 0 : i32
    %c0_i32_1 = arith.constant 0 : i32
    return %c0_i32, %c0_i32_0 : i32, i32
  }
  func.func @transform_9(%arg0: i32) -> (i32, i32) {
    %c0_i32 = arith.constant 0 : i32
    %c0_i32_0 = arith.constant 0 : i32
    %c0_i32_1 = arith.constant 0 : i32
    return %c0_i32, %c0_i32_0 : i32, i32
  }
  func.func @transform_10(%arg0: i32) -> (i32, i32) {
    %c0_i32 = arith.constant 0 : i32
    %c0_i32_0 = arith.constant 0 : i32
    %c0_i32_1 = arith.constant 0 : i32
    return %c0_i32, %c0_i32_0 : i32, i32
  }
  func.func @transform_11(%arg0: i32) -> (i32, i32, i32) {
    %c0_i32 = arith.constant 0 : i32
    %c0_i32_0 = arith.constant 0 : i32
    %c0_i32_1 = arith.constant 0 : i32
    return %arg0, %c0_i32, %c0_i32_0 : i32, i32, i32
  }
}

</mosaic_0001>

<llo_original>
// kernel: tpu_custom_call.1
$region0: #{tpu_custom_call.1}
  #allocation0 [shape = 'u32[]', space=smem, size = 0x4, offset = 0x4, fixed_abs, tag = 'smem constant byte address 0x4 - core index']
  #allocation1 [shape = 'u32[144,128]{1,0:T(1,128)}', space=vmem, size = 0x12000, scoped, tag = 'internal scratch']
  %s0 = inlined_call_operand.hbm [shape: f32[2,8,32], index: 0, kind: input, shape index: {}]
  %s1 = inlined_call_operand.hbm [shape: bf16[32,96], index: 1, kind: input, shape index: {}]
  %s2 = inlined_call_operand.hbm [shape: f32[1,96], index: 2, kind: input, shape index: {}]
  %s3 = inlined_call_operand.hbm [shape: bf16[4,8,32], index: 3, kind: input, shape index: {}]
  %s4 = inlined_call_operand.hbm [shape: f32[1,32], index: 4, kind: input, shape index: {}]
  %s5 = inlined_call_operand.hbm [shape: bf16[32,64], index: 5, kind: input, shape index: {}]
  %s6 = inlined_call_operand.hbm [shape: f32[1,64], index: 6, kind: input, shape index: {}]
  %s7 = inlined_call_operand.hbm [shape: bf16[32,64], index: 7, kind: input, shape index: {}]
  %s8 = inlined_call_operand.hbm [shape: f32[1,64], index: 8, kind: input, shape index: {}]
  %s9 = inlined_call_operand.hbm [shape: bf16[64,32], index: 9, kind: input, shape index: {}]
  %s10 = inlined_call_operand.hbm [shape: f32[1,32], index: 10, kind: input, shape index: {}]
  %s11 = inlined_call_operand.hbm [shape: f32[2,8,32], index: 11, kind: output, shape index: {}]
  %s12 = sld [smem:[#allocation0]]
  $region121: #{tpu_custom_call.1} parent=0
    _
  %s14 = ssub.s32 1, %s12
  %s15 = scalar_select 0, %s14, %s12
  $region1: #{tpu_custom_call.1} parent=0
    #allocation2 [shape = 'u8[8192]{0}', space=vmem, size = 0x2000, scoped, tag = 'input window, operand 0']
    #allocation3 [shape = 's32[2]{0}', space=sflag, size = 0x8, scoped, tag = 'scoped memory for tpu_custom_call.1']
    #allocation4 [shape = 's32[2]{0}', space=sflag, size = 0x8, scoped, tag = 'scoped memory for tpu_custom_call.1']
    #allocation5 [shape = 'u8[8192]{0}', space=vmem, size = 0x2000, scoped, tag = 'input window, operand 1, single buffered']
    #allocation6 [shape = 's32[1]{0}', space=sflag, size = 0x4, scoped, tag = 'scoped memory for tpu_custom_call.1']
    #allocation7 [shape = 'u8[512]{0}', space=vmem, size = 0x400, scoped, tag = 'input window, operand 2, single buffered']
    #allocation8 [shape = 'u8[8192]{0}', space=vmem, size = 0x2000, scoped, tag = 'input window, operand 3, single buffered']
    #allocation9 [shape = 's32[1]{0}', space=sflag, size = 0x4, scoped, tag = 'scoped memory for tpu_custom_call.1']
    #allocation10 [shape = 'u8[512]{0}', space=vmem, size = 0x400, scoped, tag = 'input window, operand 4, single buffered']
    #allocation11 [shape = 'u8[8192]{0}', space=vmem, size = 0x2000, scoped, tag = 'input window, operand 5, single buffered']
    #allocation12 [shape = 's32[1]{0}', space=sflag, size = 0x4, scoped, tag = 'scoped memory for tpu_custom_call.1']
    #allocation13 [shape = 'u8[512]{0}', space=vmem, size = 0x400, scoped, tag = 'input window, operand 6, single buffered']
    #allocation14 [shape = 'u8[8192]{0}', space=vmem, size = 0x2000, scoped, tag = 'input window, operand 7, single buffered']
    #allocation15 [shape = 's32[1]{0}', space=sflag, size = 0x4, scoped, tag = 'scoped memory for tpu_custom_call.1']
    #allocation16 [shape = 'u8[512]{0}', space=vmem, size = 0x400, scoped, tag = 'input window, operand 8, single buffered']
    #allocation17 [shape = 'u8[16384]{0}', space=vmem, size = 0x4000, scoped, tag = 'input window, operand 9, single buffered']
    #allocation18 [shape = 's32[1]{0}', space=sflag, size = 0x4, scoped, tag = 'scoped memory for tpu_custom_call.1']
    #allocation19 [shape = 'u8[512]{0}', space=vmem, size = 0x400, scoped, tag = 'input window, operand 10, single buffered']
    #allocation20 [shape = 'u8[8192]{0}', space=vmem, size = 0x2000, scoped, tag = 'output window, operand 0']
    %16 = vsyncpa [#allocation3], 0
    %s17 = scalar_lea.sflag [#allocation3], 1
    %18 = vsyncpa %s17, 0
    %19 = vsyncpa [#allocation6], 0
    %20 = vsyncpa [#allocation9], 0
    %21 = vsyncpa [#allocation12], 0
    %22 = vsyncpa [#allocation15], 0
    %23 = vsyncpa [#allocation18], 0
    %24 = vsyncpa [#allocation4], 0
    %s25 = scalar_lea.sflag [#allocation4], 1
    %26 = vsyncpa %s25, 0
    loop: start=0, step=1, limit=4
    $region2: #{tpu_custom_call.1} parent=1 // loop_pre_header
      _
    $region3: #{tpu_custom_call.1} parent=1 // loop_header
      %s28 = sphi 0, %s32
      %p29 = scmp.ge.s32.totalorder %s28, 4
      %s38 = sphi 0, %s40
      %s41 = sphi 0, %s38
      %s42 = sphi 0, %s41
      %s58 = sphi 0, %s42
      %s62 = sphi 0, %s62
      %s64 = sphi 0, %s62
      %s65 = sphi 0, %s64
      %s79 = sphi 0, %s65
      %s83 = sphi 0, %s83
      %s85 = sphi 0, %s83
      %s86 = sphi 0, %s85
      %s100 = sphi 0, %s86
      %s104 = sphi 0, %s104
      %s106 = sphi 0, %s104
      %s107 = sphi 0, %s106
      %s121 = sphi 0, %s107
      %s125 = sphi 0, %s125
      %s127 = sphi 0, %s125
      %s128 = sphi 0, %s127
      %s142 = sphi 0, %s128
      %s146 = sphi 0, %s146
      %s148 = sphi 0, %s146
      %s149 = sphi 0, %s148
      %s163 = sphi 0, %s149
      %s167 = sphi 0, %s167
      %s169 = sphi 0, %s167
      %s170 = sphi 0, %s169
      %s184 = sphi 0, %s170
      %s188 = sphi 0, %s188
      %s190 = sphi 0, %s188
      %s191 = sphi 0, %s190
      %s205 = sphi 0, %s191
      %s209 = sphi 0, %s209
      %s211 = sphi 0, %s209
      %s212 = sphi 0, %s211
      %s226 = sphi 0, %s212
      %s230 = sphi 0, %s230
      %s232 = sphi 0, %s230
      %s233 = sphi 0, %s232
      %s247 = sphi 0, %s233
      %s251 = sphi 0, %s251
      %s253 = sphi 0, %s251
      %s254 = sphi 0, %s253
      %s268 = sphi 0, %s254
      %s274 = sphi 0, %s276
      %s277 = sphi 0, %s274
      %s278 = sphi 0, %s277
      %s294 = sphi 0, %s278
    $region4: #{tpu_custom_call.1} parent=1 // loop_header_branch
      %31 = sbr.rel (%p29) target = $region8
    $region5: #{tpu_custom_call.1} parent=1 // loop_body
      %s33 = ssub.s32 %s28, 1
      %s34 = ssub.s32 %s28, 2
      %s35 = sadd.s32 %s28, 1
      %s36 = ssub.s32 %s28, %s35
      %p37 = scmp.eq.s32.totalorder %s36, 0
      %s39 = sadd.s32 %s38, 1
      %s40 = scalar_select %p37, %s38, %s39
      %p43 = pneg %p37
      %p44 = scmp.eq.s32.totalorder %s28, 1
      %p45 = por %p43, %p44
      %p46 = scmp.ne.s32.totalorder %s38, %s41
      %p47 = scmp.eq.s32.totalorder %s28, 0
      %p48 = por %p46, %p47
      %p49 = scmp.ne.s32.totalorder %s38, %s41
      %p50 = scmp.eq.s32.totalorder %s33, 1
      %p51 = por %p49, %p50
      %p52 = scmp.ne.s32.totalorder %s41, %s42
      %p53 = scmp.eq.s32.totalorder %s33, 0
      %p54 = por %p52, %p53
      %p55 = scmp.ne.s32.totalorder %s41, %s42
      %p56 = scmp.eq.s32.totalorder %s34, 1
      %p57 = por %p55, %p56
      %p59 = scmp.ne.s32.totalorder %s42, %s58
      %p60 = scmp.eq.s32.totalorder %s34, 0
      %p61 = por %p59, %p60
      %s63 = sadd.s32 %s62, 1
      %p66 = scmp.eq.s32.totalorder %s28, 1
      %p67 = scmp.ne.s32.totalorder %s62, %s64
      %p68 = scmp.eq.s32.totalorder %s28, 0
      %p69 = por %p67, %p68
      %p70 = scmp.ne.s32.totalorder %s62, %s64
      %p71 = scmp.eq.s32.totalorder %s33, 1
      %p72 = por %p70, %p71
      %p73 = scmp.ne.s32.totalorder %s64, %s65
      %p74 = scmp.eq.s32.totalorder %s33, 0
      %p75 = por %p73, %p74
      %p76 = scmp.ne.s32.totalorder %s64, %s65
      %p77 = scmp.eq.s32.totalorder %s34, 1
      %p78 = por %p76, %p77
      %p80 = scmp.ne.s32.totalorder %s65, %s79
      %p81 = scmp.eq.s32.totalorder %s34, 0
      %p82 = por %p80, %p81
      %s84 = sadd.s32 %s83, 1
      %p87 = scmp.eq.s32.totalorder %s28, 1
      %p88 = scmp.ne.s32.totalorder %s83, %s85
      %p89 = scmp.eq.s32.totalorder %s28, 0
      %p90 = por %p88, %p89
      %p91 = scmp.ne.s32.totalorder %s83, %s85
      %p92 = scmp.eq.s32.totalorder %s33, 1
      %p93 = por %p91, %p92
      %p94 = scmp.ne.s32.totalorder %s85, %s86
      %p95 = scmp.eq.s32.totalorder %s33, 0
      %p96 = por %p94, %p95
      %p97 = scmp.ne.s32.totalorder %s85, %s86
      %p98 = scmp.eq.s32.totalorder %s34, 1
      %p99 = por %p97, %p98
      %p101 = scmp.ne.s32.totalorder %s86, %s100
      %p102 = scmp.eq.s32.totalorder %s34, 0
      %p103 = por %p101, %p102
      %s105 = sadd.s32 %s104, 1
      %p108 = scmp.eq.s32.totalorder %s28, 1
      %p109 = scmp.ne.s32.totalorder %s104, %s106
      %p110 = scmp.eq.s32.totalorder %s28, 0
      %p111 = por %p109, %p110
      %p112 = scmp.ne.s32.totalorder %s104, %s106
      %p113 = scmp.eq.s32.totalorder %s33, 1
      %p114 = por %p112, %p113
      %p115 = scmp.ne.s32.totalorder %s106, %s107
      %p116 = scmp.eq.s32.totalorder %s33, 0
      %p117 = por %p115, %p116
      %p118 = scmp.ne.s32.totalorder %s106, %s107
      %p119 = scmp.eq.s32.totalorder %s34, 1
      %p120 = por %p118, %p119
      %p122 = scmp.ne.s32.totalorder %s107, %s121
      %p123 = scmp.eq.s32.totalorder %s34, 0
      %p124 = por %p122, %p123
      %s126 = sadd.s32 %s125, 1
      %p129 = scmp.eq.s32.totalorder %s28, 1
      %p130 = scmp.ne.s32.totalorder %s125, %s127
      %p131 = scmp.eq.s32.totalorder %s28, 0
      %p132 = por %p130, %p131
      %p133 = scmp.ne.s32.totalorder %s125, %s127
      %p134 = scmp.eq.s32.totalorder %s33, 1
      %p135 = por %p133, %p134
      %p136 = scmp.ne.s32.totalorder %s127, %s128
      %p137 = scmp.eq.s32.totalorder %s33, 0
      %p138 = por %p136, %p137
      %p139 = scmp.ne.s32.totalorder %s127, %s128
      %p140 = scmp.eq.s32.totalorder %s34, 1
      %p141 = por %p139, %p140
      %p143 = scmp.ne.s32.totalorder %s128, %s142
      %p144 = scmp.eq.s32.totalorder %s34, 0
      %p145 = por %p143, %p144
      %s147 = sadd.s32 %s146, 1
      %p150 = scmp.eq.s32.totalorder %s28, 1
      %p151 = scmp.ne.s32.totalorder %s146, %s148
      %p152 = scmp.eq.s32.totalorder %s28, 0
      %p153 = por %p151, %p152
      %p154 = scmp.ne.s32.totalorder %s146, %s148
      %p155 = scmp.eq.s32.totalorder %s33, 1
      %p156 = por %p154, %p155
      %p157 = scmp.ne.s32.totalorder %s148, %s149
      %p158 = scmp.eq.s32.totalorder %s33, 0
      %p159 = por %p157, %p158
      %p160 = scmp.ne.s32.totalorder %s148, %s149
      %p161 = scmp.eq.s32.totalorder %s34, 1
      %p162 = por %p160, %p161
      %p164 = scmp.ne.s32.totalorder %s149, %s163
      %p165 = scmp.eq.s32.totalorder %s34, 0
      %p166 = por %p164, %p165
      %s168 = sadd.s32 %s167, 1
      %p171 = scmp.eq.s32.totalorder %s28, 1
      %p172 = scmp.ne.s32.totalorder %s167, %s169
      %p173 = scmp.eq.s32.totalorder %s28, 0
      %p174 = por %p172, %p173
      %p175 = scmp.ne.s32.totalorder %s167, %s169
      %p176 = scmp.eq.s32.totalorder %s33, 1
      %p177 = por %p175, %p176
      %p178 = scmp.ne.s32.totalorder %s169, %s170
      %p179 = scmp.eq.s32.totalorder %s33, 0
      %p180 = por %p178, %p179
      %p181 = scmp.ne.s32.totalorder %s169, %s170
      %p182 = scmp.eq.s32.totalorder %s34, 1
      %p183 = por %p181, %p182
      %p185 = scmp.ne.s32.totalorder %s170, %s184
      %p186 = scmp.eq.s32.totalorder %s34, 0
      %p187 = por %p185, %p186
      %s189 = sadd.s32 %s188, 1
      %p192 = scmp.eq.s32.totalorder %s28, 1
      %p193 = scmp.ne.s32.totalorder %s188, %s190
      %p194 = scmp.eq.s32.totalorder %s28, 0
      %p195 = por %p193, %p194
      %p196 = scmp.ne.s32.totalorder %s188, %s190
      %p197 = scmp.eq.s32.totalorder %s33, 1
      %p198 = por %p196, %p197
      %p199 = scmp.ne.s32.totalorder %s190, %s191
      %p200 = scmp.eq.s32.totalorder %s33, 0
      %p201 = por %p199, %p200
      %p202 = scmp.ne.s32.totalorder %s190, %s191
      %p203 = scmp.eq.s32.totalorder %s34, 1
      %p204 = por %p202, %p203
      %p206 = scmp.ne.s32.totalorder %s191, %s205
      %p207 = scmp.eq.s32.totalorder %s34, 0
      %p208 = por %p206, %p207
      %s210 = sadd.s32 %s209, 1
      %p213 = scmp.eq.s32.totalorder %s28, 1
      %p214 = scmp.ne.s32.totalorder %s209, %s211
      %p215 = scmp.eq.s32.totalorder %s28, 0
      %p216 = por %p214, %p215
      %p217 = scmp.ne.s32.totalorder %s209, %s211
      %p218 = scmp.eq.s32.totalorder %s33, 1
      %p219 = por %p217, %p218
      %p220 = scmp.ne.s32.totalorder %s211, %s212
      %p221 = scmp.eq.s32.totalorder %s33, 0
      %p222 = por %p220, %p221
      %p223 = scmp.ne.s32.totalorder %s211, %s212
      %p224 = scmp.eq.s32.totalorder %s34, 1
      %p225 = por %p223, %p224
      %p227 = scmp.ne.s32.totalorder %s212, %s226
      %p228 = scmp.eq.s32.totalorder %s34, 0
      %p229 = por %p227, %p228
      %s231 = sadd.s32 %s230, 1
      %p234 = scmp.eq.s32.totalorder %s28, 1
      %p235 = scmp.ne.s32.totalorder %s230, %s232
      %p236 = scmp.eq.s32.totalorder %s28, 0
      %p237 = por %p235, %p236
      %p238 = scmp.ne.s32.totalorder %s230, %s232
      %p239 = scmp.eq.s32.totalorder %s33, 1
      %p240 = por %p238, %p239
      %p241 = scmp.ne.s32.totalorder %s232, %s233
      %p242 = scmp.eq.s32.totalorder %s33, 0
      %p243 = por %p241, %p242
      %p244 = scmp.ne.s32.totalorder %s232, %s233
      %p245 = scmp.eq.s32.totalorder %s34, 1
      %p246 = por %p244, %p245
      %p248 = scmp.ne.s32.totalorder %s233, %s247
      %p249 = scmp.eq.s32.totalorder %s34, 0
      %p250 = por %p248, %p249
      %s252 = sadd.s32 %s251, 1
      %p255 = scmp.eq.s32.totalorder %s28, 1
      %p256 = scmp.ne.s32.totalorder %s251, %s253
      %p257 = scmp.eq.s32.totalorder %s28, 0
      %p258 = por %p256, %p257
      %p259 = scmp.ne.s32.totalorder %s251, %s253
      %p260 = scmp.eq.s32.totalorder %s33, 1
      %p261 = por %p259, %p260
      %p262 = scmp.ne.s32.totalorder %s253, %s254
      %p263 = scmp.eq.s32.totalorder %s33, 0
      %p264 = por %p262, %p263
      %p265 = scmp.ne.s32.totalorder %s253, %s254
      %p266 = scmp.eq.s32.totalorder %s34, 1
      %p267 = por %p265, %p266
      %p269 = scmp.ne.s32.totalorder %s254, %s268
      %p270 = scmp.eq.s32.totalorder %s34, 0
      %p271 = por %p269, %p270
      %s272 = ssub.s32 %s28, %s35
      %p273 = scmp.eq.s32.totalorder %s272, 0
      %s275 = sadd.s32 %s274, 1
      %s276 = scalar_select %p273, %s274, %s275
      %p279 = pneg %p273
      %p280 = scmp.eq.s32.totalorder %s28, 1
      %p281 = por %p279, %p280
      %p282 = scmp.ne.s32.totalorder %s274, %s277
      %p283 = scmp.eq.s32.totalorder %s28, 0
      %p284 = por %p282, %p283
      %p285 = scmp.ne.s32.totalorder %s274, %s277
      %p286 = scmp.eq.s32.totalorder %s33, 1
      %p287 = por %p285, %p286
      %p288 = scmp.ne.s32.totalorder %s277, %s278
      %p289 = scmp.eq.s32.totalorder %s33, 0
      %p290 = por %p288, %p289
      %p291 = scmp.ne.s32.totalorder %s277, %s278
      %p292 = scmp.eq.s32.totalorder %s34, 1
      %p293 = por %p291, %p292
      %p295 = scmp.ne.s32.totalorder %s278, %s294
      %p296 = scmp.eq.s32.totalorder %s34, 0
      %p297 = por %p295, %p296
      %p298 = scmp.le.s32.totalorder 1, %s28
      %p299 = scmp.lt.s32.totalorder %s28, 3
      %p300 = pnand %p298, %p299
      %p301 = pneg %p300
      // Predicated region
      $region9: #{tpu_custom_call.1} parent=5 // pred_check
        _
      $region10: #{tpu_custom_call.1} parent=5 // pred_check_branch
        %303 = sbr.rel (%p300) target = $region12
      $region11: #{tpu_custom_call.1} parent=5 // pred_region
        %s304 = ssub.s32 %s28, 1
        // Predicated region
        $region13: #{tpu_custom_call.1} parent=11 // pred_check
          %p305 = pneg %p75
        $region14: #{tpu_custom_call.1} parent=11 // pred_check_branch
          %307 = sbr.rel (%p305) target = $region16
        $region15: #{tpu_custom_call.1} parent=11 // pred_region
          %s309 = ssub.s32 256, 256
          %310 = vsyncadd [#allocation6], %s309
          %s311 = sshll.u32 [#allocation5], 4
          %s312 = int_to_ptr.vmem [resolvable:$true] %s311
          %317 = dma.hbm_to_vmem [thread:$0]  %s1, 256, %s312, [#allocation6], 64, 64, 4
        $region16: #{tpu_custom_call.1} parent=11 // pred_fallthru
          _
        // Predicated region
        $region17: #{tpu_custom_call.1} parent=11 // pred_check
          %p318 = pneg %p96
        $region18: #{tpu_custom_call.1} parent=11 // pred_check_branch
          %320 = sbr.rel (%p318) target = $region20
        $region19: #{tpu_custom_call.1} parent=11 // pred_region
          %s322 = ssub.s32 16, 16
          %323 = vsyncadd [#allocation6], %s322
          %s325 = sshll.u32 [#allocation7], 4
          %s326 = int_to_ptr.vmem [resolvable:$true] %s325
          %328 = dma.hbm_to_vmem [thread:$0]  %s2, 16, %s326, [#allocation6]
        $region20: #{tpu_custom_call.1} parent=11 // pred_fallthru
          _
        // Predicated region
        $region21: #{tpu_custom_call.1} parent=11 // pred_check
          %p329 = pneg %p117
        $region22: #{tpu_custom_call.1} parent=11 // pred_check_branch
          %331 = sbr.rel (%p329) target = $region24
        $region23: #{tpu_custom_call.1} parent=11 // pred_region
          %s333 = ssub.s32 256, 256
          %334 = vsyncadd [#allocation9], %s333
          %s335 = sshll.u32 [#allocation8], 4
          %s336 = int_to_ptr.vmem [resolvable:$true] %s335
          %341 = dma.hbm_to_vmem [thread:$0]  %s3, 256, %s336, [#allocation9], 64, 64, 4
        $region24: #{tpu_custom_call.1} parent=11 // pred_fallthru
          _
        // Predicated region
        $region25: #{tpu_custom_call.1} parent=11 // pred_check
          %p342 = pneg %p138
        $region26: #{tpu_custom_call.1} parent=11 // pred_check_branch
          %344 = sbr.rel (%p342) target = $region28
        $region27: #{tpu_custom_call.1} parent=11 // pred_region
          %s346 = ssub.s32 16, 16
          %347 = vsyncadd [#allocation9], %s346
          %s349 = sshll.u32 [#allocation10], 4
          %s350 = int_to_ptr.vmem [resolvable:$true] %s349
          %352 = dma.hbm_to_vmem [thread:$0]  %s4, 16, %s350, [#allocation9]
        $region28: #{tpu_custom_call.1} parent=11 // pred_fallthru
          _
        // Predicated region
        $region29: #{tpu_custom_call.1} parent=11 // pred_check
          %p353 = pneg %p159
        $region30: #{tpu_custom_call.1} parent=11 // pred_check_branch
          %355 = sbr.rel (%p353) target = $region32
        $region31: #{tpu_custom_call.1} parent=11 // pred_region
          %s357 = ssub.s32 256, 256
          %358 = vsyncadd [#allocation12], %s357
          %s359 = sshll.u32 [#allocation11], 4
          %s360 = int_to_ptr.vmem [resolvable:$true] %s359
          %365 = dma.hbm_to_vmem [thread:$0]  %s5, 256, %s360, [#allocation12], 64, 64, 4
        $region32: #{tpu_custom_call.1} parent=11 // pred_fallthru
          _
        // Predicated region
        $region33: #{tpu_custom_call.1} parent=11 // pred_check
          %p366 = pneg %p180
        $region34: #{tpu_custom_call.1} parent=11 // pred_check_branch
          %368 = sbr.rel (%p366) target = $region36
        $region35: #{tpu_custom_call.1} parent=11 // pred_region
          %s370 = ssub.s32 16, 16
          %371 = vsyncadd [#allocation12], %s370
          %s373 = sshll.u32 [#allocation13], 4
          %s374 = int_to_ptr.vmem [resolvable:$true] %s373
          %376 = dma.hbm_to_vmem [thread:$0]  %s6, 16, %s374, [#allocation12]
        $region36: #{tpu_custom_call.1} parent=11 // pred_fallthru
          _
        // Predicated region
        $region37: #{tpu_custom_call.1} parent=11 // pred_check
          %p377 = pneg %p201
        $region38: #{tpu_custom_call.1} parent=11 // pred_check_branch
          %379 = sbr.rel (%p377) target = $region40
        $region39: #{tpu_custom_call.1} parent=11 // pred_region
          %s381 = ssub.s32 256, 256
          %382 = vsyncadd [#allocation15], %s381
          %s383 = sshll.u32 [#allocation14], 4
          %s384 = int_to_ptr.vmem [resolvable:$true] %s383
          %389 = dma.hbm_to_vmem [thread:$0]  %s7, 256, %s384, [#allocation15], 64, 64, 4
        $region40: #{tpu_custom_call.1} parent=11 // pred_fallthru
          _
        // Predicated region
        $region41: #{tpu_custom_call.1} parent=11 // pred_check
          %p390 = pneg %p222
        $region42: #{tpu_custom_call.1} parent=11 // pred_check_branch
          %392 = sbr.rel (%p390) target = $region44
        $region43: #{tpu_custom_call.1} parent=11 // pred_region
          %s394 = ssub.s32 16, 16
          %395 = vsyncadd [#allocation15], %s394
          %s397 = sshll.u32 [#allocation16], 4
          %s398 = int_to_ptr.vmem [resolvable:$true] %s397
          %400 = dma.hbm_to_vmem [thread:$0]  %s8, 16, %s398, [#allocation15]
        $region44: #{tpu_custom_call.1} parent=11 // pred_fallthru
          _
        // Predicated region
        $region45: #{tpu_custom_call.1} parent=11 // pred_check
          %p401 = pneg %p243
        $region46: #{tpu_custom_call.1} parent=11 // pred_check_branch
          %403 = sbr.rel (%p401) target = $region48
        $region47: #{tpu_custom_call.1} parent=11 // pred_region
          %s405 = ssub.s32 512, 512
          %406 = vsyncadd [#allocation18], %s405
          %s407 = sshll.u32 [#allocation17], 4
          %s408 = int_to_ptr.vmem [resolvable:$true] %s407
          %413 = dma.hbm_to_vmem [thread:$0]  %s9, 512, %s408, [#allocation18], 64, 64, 4
        $region48: #{tpu_custom_call.1} parent=11 // pred_fallthru
          _
        // Predicated region
        $region49: #{tpu_custom_call.1} parent=11 // pred_check
          %p414 = pneg %p264
        $region50: #{tpu_custom_call.1} parent=11 // pred_check_branch
          %416 = sbr.rel (%p414) target = $region52
        $region51: #{tpu_custom_call.1} parent=11 // pred_region
          %s418 = ssub.s32 16, 16
          %419 = vsyncadd [#allocation18], %s418
          %s421 = sshll.u32 [#allocation19], 4
          %s422 = int_to_ptr.vmem [resolvable:$true] %s421
          %424 = dma.hbm_to_vmem [thread:$0]  %s10, 16, %s422, [#allocation18]
        $region52: #{tpu_custom_call.1} parent=11 // pred_fallthru
          _
      $region12: #{tpu_custom_call.1} parent=5 // pred_fallthru
        _
      %p425 = scmp.lt.s32.totalorder %s28, 2
      // Predicated region
      $region53: #{tpu_custom_call.1} parent=5 // pred_check
        %p426 = pneg %p425
      $region54: #{tpu_custom_call.1} parent=5 // pred_check_branch
        %428 = sbr.rel (%p426) target = $region56
      $region55: #{tpu_custom_call.1} parent=5 // pred_region
        // Predicated region
        $region57: #{tpu_custom_call.1} parent=55 // pred_check
          %p429 = pneg %p48
        $region58: #{tpu_custom_call.1} parent=55 // pred_check_branch
          %431 = sbr.rel (%p429) target = $region60
        $region59: #{tpu_custom_call.1} parent=55 // pred_region
          %s432 = sand.u32 %s38, 1
          %s433 = scalar_lea.sflag [#allocation3], %s432
          %s434 = sand.u32 %s38, 1
          %s435 = smul.addr %s434, 8
          %s436 = scalar_lea.vmem [#allocation2], %s435
          %s438 = ssub.s32 128, 128
          %439 = vsyncadd %s433, %s438
          %s440 = smul.addr %s28, 128
          %s441 = scalar_lea.hbm %s0, %s440
          %s443 = sshll.u32 %s436, 4
          %s444 = int_to_ptr.vmem [resolvable:$true] %s443
          %446 = dma.hbm_to_vmem [thread:$0]  %s441, 128, %s444, %s433
        $region60: #{tpu_custom_call.1} parent=55 // pred_fallthru
          _
      $region56: #{tpu_custom_call.1} parent=5 // pred_fallthru
        _
      %p447 = scmp.le.s32.totalorder 1, %s28
      %p448 = scmp.lt.s32.totalorder %s28, 3
      %p449 = pnand %p447, %p448
      %p450 = pneg %p449
      // Predicated region
      $region61: #{tpu_custom_call.1} parent=5 // pred_check
        _
      $region62: #{tpu_custom_call.1} parent=5 // pred_check_branch
        %452 = sbr.rel (%p449) target = $region64
      $region63: #{tpu_custom_call.1} parent=5 // pred_region
        %s453 = ssub.s32 %s28, 1
        %s454 = sand.u32 %s41, 1
        %s455 = scalar_lea.sflag [#allocation3], %s454
        %s456 = sand.u32 %s41, 1
        %s457 = smul.addr %s456, 8
        %s458 = scalar_lea.vmem [#allocation2], %s457
        // Predicated region
        $region65: #{tpu_custom_call.1} parent=63 // pred_check
          %p459 = pneg %p54
        $region66: #{tpu_custom_call.1} parent=63 // pred_check_branch
          %461 = sbr.rel (%p459) target = $region68
        $region67: #{tpu_custom_call.1} parent=63 // pred_region
          %462 = dma.done %s455, 128
        $region68: #{tpu_custom_call.1} parent=63 // pred_fallthru
          _
        // Predicated region
        $region69: #{tpu_custom_call.1} parent=63 // pred_check
          %p463 = pneg %p75
        $region70: #{tpu_custom_call.1} parent=63 // pred_check_branch
          %465 = sbr.rel (%p463) target = $region72
        $region71: #{tpu_custom_call.1} parent=63 // pred_region
          %466 = dma.done [#allocation6], 256
        $region72: #{tpu_custom_call.1} parent=63 // pred_fallthru
          _
        // Predicated region
        $region73: #{tpu_custom_call.1} parent=63 // pred_check
          %p467 = pneg %p96
        $region74: #{tpu_custom_call.1} parent=63 // pred_check_branch
          %469 = sbr.rel (%p467) target = $region76
        $region75: #{tpu_custom_call.1} parent=63 // pred_region
          %470 = dma.done [#allocation6], 16
        $region76: #{tpu_custom_call.1} parent=63 // pred_fallthru
          _
        // Predicated region
        $region77: #{tpu_custom_call.1} parent=63 // pred_check
          %p471 = pneg %p117
        $region78: #{tpu_custom_call.1} parent=63 // pred_check_branch
          %473 = sbr.rel (%p471) target = $region80
        $region79: #{tpu_custom_call.1} parent=63 // pred_region
          %474 = dma.done [#allocation9], 256
        $region80: #{tpu_custom_call.1} parent=63 // pred_fallthru
          _
        // Predicated region
        $region81: #{tpu_custom_call.1} parent=63 // pred_check
          %p475 = pneg %p138
        $region82: #{tpu_custom_call.1} parent=63 // pred_check_branch
          %477 = sbr.rel (%p475) target = $region84
        $region83: #{tpu_custom_call.1} parent=63 // pred_region
          %478 = dma.done [#allocation9], 16
        $region84: #{tpu_custom_call.1} parent=63 // pred_fallthru
          _
        // Predicated region
        $region85: #{tpu_custom_call.1} parent=63 // pred_check
          %p479 = pneg %p159
        $region86: #{tpu_custom_call.1} parent=63 // pred_check_branch
          %481 = sbr.rel (%p479) target = $region88
        $region87: #{tpu_custom_call.1} parent=63 // pred_region
          %482 = dma.done [#allocation12], 256
        $region88: #{tpu_custom_call.1} parent=63 // pred_fallthru
          _
        // Predicated region
        $region89: #{tpu_custom_call.1} parent=63 // pred_check
          %p483 = pneg %p180
        $region90: #{tpu_custom_call.1} parent=63 // pred_check_branch
          %485 = sbr.rel (%p483) target = $region92
        $region91: #{tpu_custom_call.1} parent=63 // pred_region
          %486 = dma.done [#allocation12], 16
        $region92: #{tpu_custom_call.1} parent=63 // pred_fallthru
          _
        // Predicated region
        $region93: #{tpu_custom_call.1} parent=63 // pred_check
          %p487 = pneg %p201
        $region94: #{tpu_custom_call.1} parent=63 // pred_check_branch
          %489 = sbr.rel (%p487) target = $region96
        $region95: #{tpu_custom_call.1} parent=63 // pred_region
          %490 = dma.done [#allocation15], 256
        $region96: #{tpu_custom_call.1} parent=63 // pred_fallthru
          _
        // Predicated region
        $region97: #{tpu_custom_call.1} parent=63 // pred_check
          %p491 = pneg %p222
        $region98: #{tpu_custom_call.1} parent=63 // pred_check_branch
          %493 = sbr.rel (%p491) target = $region100
        $region99: #{tpu_custom_call.1} parent=63 // pred_region
          %494 = dma.done [#allocation15], 16
        $region100: #{tpu_custom_call.1} parent=63 // pred_fallthru
          _
        // Predicated region
        $region101: #{tpu_custom_call.1} parent=63 // pred_check
          %p495 = pneg %p243
        $region102: #{tpu_custom_call.1} parent=63 // pred_check_branch
          %497 = sbr.rel (%p495) target = $region104
        $region103: #{tpu_custom_call.1} parent=63 // pred_region
          %498 = dma.done [#allocation18], 512
        $region104: #{tpu_custom_call.1} parent=63 // pred_fallthru
          _
        // Predicated region
        $region105: #{tpu_custom_call.1} parent=63 // pred_check
          %p499 = pneg %p264
        $region106: #{tpu_custom_call.1} parent=63 // pred_check_branch
          %501 = sbr.rel (%p499) target = $region108
        $region107: #{tpu_custom_call.1} parent=63 // pred_region
          %502 = dma.done [#allocation18], 16
        $region108: #{tpu_custom_call.1} parent=63 // pred_fallthru
          _
        %s503 = sand.u32 %s41, 1
        %s504 = scalar_lea.sflag [#allocation3], %s503
        %s505 = sand.u32 %s41, 1
        %s506 = smul.addr %s505, 8
        %s507 = scalar_lea.vmem [#allocation2], %s506
        %p508 = pneg %p54
        %p509 = pneg %p51
        %p510 = pneg %p75
        %p511 = pneg %p72
        %p512 = pneg %p96
        %p513 = pneg %p93
        %p514 = pneg %p117
        %p515 = pneg %p114
        %p516 = pneg %p138
        %p517 = pneg %p135
        %p518 = pneg %p159
        %p519 = pneg %p156
        %p520 = pneg %p180
        %p521 = pneg %p177
        %p522 = pneg %p201
        %p523 = pneg %p198
        %p524 = pneg %p222
        %p525 = pneg %p219
        %p526 = pneg %p243
        %p527 = pneg %p240
        %p528 = pneg %p264
        %p529 = pneg %p261
        %p530 = pneg %p290
        %p531 = pneg %p287
        %s532 = sand.u32 %s277, 1
        %s533 = scalar_lea.sflag [#allocation4], %s532
        %s534 = sand.u32 %s277, 1
        %s535 = smul.addr %s534, 8
        %s536 = scalar_lea.vmem [#allocation20], %s535
        %v538 = vld [vmem:[%s458] sm:$0xff]
        %v539 = vmul.f32 %v538, %v538
        %vm540 = vcmask 261120
        %v541 = vsel %vm540, %v539, 0.0
        %542 = vadd.xlane.f32.xlu0 %v541
        %v543 = vpop.xlane.xlu0 %542
        %v544 = vrcp.pop 32.0
        %v545 = vmul.f32 %v543, %v544
        %v546 = vadd.f32 %v545, 1e-06
        %v547 = vrsqrt.pop %v546
        %v548 = vmul.f32 %v538, %v547
        %v549 = vpack.c.bf16 %v548, %v548
        %v550 = vld [vmem:[#allocation5] sm:$0xf]
        %v551 = vld [vmem:[#allocation5 + $0x4] sm:$0xf]
        %v552 = vld [vmem:[#allocation5 + $0x8] sm:$0xf]
        %v553 = vld [vmem:[#allocation5 + $0xc] sm:$0xf]
        %v554 = vld [vmem:[#allocation7] sm:$0x1]
        %v556 = vlaneseq
        %v557 = vshrl.u32 %v556, 7
        %v558 = vsub.s32 0, %v557
        %v559 = vrot.slane %v554, %v558
        %v565 = vunpack.c.l.b16 %v550
        %v566 = vunpack.c.l.b16 %v551
        %v567 = vunpack.c.l.b16 %v552
        %v568 = vunpack.c.l.b16 %v553
        %v569 = vpack.c.b16 %v566, %v565
        %v570 = vpack.c.b16 %v568, %v567
        %v574 = vsel %vm540, %v549, 0
        %576 = vmatprep.subr.bf16.mxu0 0
        %577 = vmatpush1.bf16.msra.mxu0 %v569
        %578 = vmatprep.subr.bf16.mxu0 0
        %579 = vmatpush1.bf16.msra.mxu0 %v570
        %580 = vmatprep.subr.bf16.mxu0 0
        %581 = vmatpush1.bf16.msra.mxu0 0
        %582 = vmatprep.subr.bf16.mxu0 0
        %583 = vmatpush1.bf16.msra.mxu0 0
        %584 = vmatprep.subr.bf16.mxu0 0
        %585 = vmatpush1.bf16.msra.mxu0 0
        %586 = vmatprep.subr.bf16.mxu0 0
        %587 = vmatpush1.bf16.msra.mxu0 0
        %588 = vmatprep.subr.bf16.mxu0 0
        %589 = vmatpush1.bf16.msra.mxu0 0
        %590 = vmatprep.subr.bf16.mxu0 0
        %591 = vmatpush1.bf16.msra.mxu0 0
        %592 = vmatprep.subr.bf16.mxu0 0
        %593 = vmatpush1.bf16.msra.mxu0 0
        %594 = vmatprep.subr.bf16.mxu0 0
        %595 = vmatpush1.bf16.msra.mxu0 0
        %596 = vmatprep.subr.bf16.mxu0 0
        %597 = vmatpush1.bf16.msra.mxu0 0
        %598 = vmatprep.subr.bf16.mxu0 0
        %599 = vmatpush1.bf16.msra.mxu0 0
        %600 = vmatprep.subr.bf16.mxu0 0
        %601 = vmatpush1.bf16.msra.mxu0 0
        %602 = vmatprep.subr.bf16.mxu0 0
        %603 = vmatpush1.bf16.msra.mxu0 0
        %604 = vmatprep.subr.bf16.mxu0 0
        %605 = vmatpush1.bf16.msra.mxu0 0
        %606 = vmatprep.subr.bf16.mxu0 0
        %607 = vmatpush1.bf16.msra.mxu0 0
        %608 = vmatprep.mubr.bf16.mxu0 0
        %609 = vmatmul.mubr.bf16.gmra.mrb[0].mxu0 %v574
        %v610 = vpop.f32.mrb[0].mxu0
        %v611 = vadd.f32 %v559, %v610
        %v612 = vpop.f32.mrb[0].mxu0
        %v613 = vpop.f32.mrb[0].mxu0
        %v614 = vpop.f32.mrb[0].mxu0
        %615 = vdwg.mxu0
        %v616 = vlaneseq
        %v617 = vshrl.u32 %v616, 7
        %v618 = vlaneseq
        %v619 = vand.u32 %v618, 127
        %vm620 = vcmp.ge.s32.totalorder %v617, %v619
        %v621 = vsel %vm620, 0.0, -1e+09
        %v622 = vpack.c.bf16 %v611, %v611
        %624 = vrot.lane.b32.xlu0 %v622, 96
        %v625 = vpop.permute.xlu0 %624
        %vm626 = vcmask 64512
        %v628 = vsel %vm626, %v622, 0
        %v631 = vsel %vm626, %v625, 0
        %633 = vmatprep.subr.bf16.mxu0 0
        %634 = vmatpush1.bf16.xpose.msra.mxu0 %v631
        %635 = vmatprep.subr.bf16.mxu0 0
        %636 = vmatpush1.bf16.xpose.msra.mxu0 0
        %637 = vmatprep.subr.bf16.mxu0 0
        %638 = vmatpush1.bf16.xpose.msra.mxu0 0
        %639 = vmatprep.subr.bf16.mxu0 0
        %640 = vmatpush1.bf16.xpose.msra.mxu0 0
        %641 = vmatprep.subr.bf16.mxu0 0
        %642 = vmatpush1.bf16.xpose.msra.mxu0 0
        %643 = vmatprep.subr.bf16.mxu0 0
        %644 = vmatpush1.bf16.xpose.msra.mxu0 0
        %645 = vmatprep.subr.bf16.mxu0 0
        %646 = vmatpush1.bf16.xpose.msra.mxu0 0
        %647 = vmatprep.subr.bf16.mxu0 0
        %648 = vmatpush1.bf16.xpose.msra.mxu0 0
        %649 = vmatprep.subr.bf16.mxu0 0
        %650 = vmatpush1.bf16.xpose.msra.mxu0 0
        %651 = vmatprep.subr.bf16.mxu0 0
        %652 = vmatpush1.bf16.xpose.msra.mxu0 0
        %653 = vmatprep.subr.bf16.mxu0 0
        %654 = vmatpush1.bf16.xpose.msra.mxu0 0
        %655 = vmatprep.subr.bf16.mxu0 0
        %656 = vmatpush1.bf16.xpose.msra.mxu0 0
        %657 = vmatprep.subr.bf16.mxu0 0
        %658 = vmatpush1.bf16.xpose.msra.mxu0 0
        %659 = vmatprep.subr.bf16.mxu0 0
        %660 = vmatpush1.bf16.xpose.msra.mxu0 0
        %661 = vmatprep.subr.bf16.mxu0 0
        %662 = vmatpush1.bf16.xpose.msra.mxu0 0
        %663 = vmatprep.subr.bf16.mxu0 0
        %664 = vmatpush1.bf16.xpose.msra.mxu0 0
        %665 = vmatprep.mubr.bf16.mxu0 0
        %666 = vmatmul.mubr.bf16.gmra.mrb[0].mxu0 %v628
        %v667 = vpop.f32.mrb[0].mxu0
        %v668 = vadd.f32 %v621, %v667
        %v669 = vpop.f32.mrb[0].mxu0
        %v670 = vpop.f32.mrb[0].mxu0
        %v671 = vpop.f32.mrb[0].mxu0
        %672 = vdwg.mxu0
        %v673 = vsel %vm626, %v668, -inf
        %674 = vmax.xlane.f32.xlu0 %v673
        %v675 = vpop.xlane.xlu0 %674
        %v676 = vsub.f32 %v668, %v675
        %v677 = vmul.f32 %v676, 1.442695
        %v678 = vpow.pop %v677
        %v679 = vsel %vm626, %v678, 0.0
        %680 = vadd.xlane.f32.xlu0 %v679
        %v681 = vpop.xlane.xlu0 %680
        %v682 = vrcp.pop %v681
        %v683 = vmul.f32 %v678, %v682
        %v684 = vpack.c.bf16 %v683, %v683
        %685 = vrot.lane.b32.xlu0 %v622, 64
        %v686 = vpop.permute.xlu0 %685
        %v688 = vsel %vm626, %v684, 0
        %vm690 = vcmask 1043456
        %v692 = vsel %vm690, %v686, 0
        %694 = vmatprep.subr.bf16.mxu0 0
        %695 = vmatpush1.bf16.msra.mxu0 %v692
        %696 = vmatprep.subr.bf16.mxu0 0
        %697 = vmatpush1.bf16.msra.mxu0 0
        %698 = vmatprep.subr.bf16.mxu0 0
        %699 = vmatpush1.bf16.msra.mxu0 0
        %700 = vmatprep.subr.bf16.mxu0 0
        %701 = vmatpush1.bf16.msra.mxu0 0
        %702 = vmatprep.subr.bf16.mxu0 0
        %703 = vmatpush1.bf16.msra.mxu0 0
        %704 = vmatprep.subr.bf16.mxu0 0
        %705 = vmatpush1.bf16.msra.mxu0 0
        %706 = vmatprep.subr.bf16.mxu0 0
        %707 = vmatpush1.bf16.msra.mxu0 0
        %708 = vmatprep.subr.bf16.mxu0 0
        %709 = vmatpush1.bf16.msra.mxu0 0
        %710 = vmatprep.subr.bf16.mxu0 0
        %711 = vmatpush1.bf16.msra.mxu0 0
        %712 = vmatprep.subr.bf16.mxu0 0
        %713 = vmatpush1.bf16.msra.mxu0 0
        %714 = vmatprep.subr.bf16.mxu0 0
        %715 = vmatpush1.bf16.msra.mxu0 0
        %716 = vmatprep.subr.bf16.mxu0 0
        %717 = vmatpush1.bf16.msra.mxu0 0
        %718 = vmatprep.subr.bf16.mxu0 0
        %719 = vmatpush1.bf16.msra.mxu0 0
        %720 = vmatprep.subr.bf16.mxu0 0
        %721 = vmatpush1.bf16.msra.mxu0 0
        %722 = vmatprep.subr.bf16.mxu0 0
        %723 = vmatpush1.bf16.msra.mxu0 0
        %724 = vmatprep.subr.bf16.mxu0 0
        %725 = vmatpush1.bf16.msra.mxu0 0
        %726 = vmatprep.mubr.bf16.mxu0 0
        %727 = vmatmul.mubr.bf16.gmra.mrb[0].mxu0 %v688
        %v728 = vpop.f32.mrb[0].mxu0
        %v729 = vadd.f32 0.0, %v728
        %v730 = vpop.f32.mrb[0].mxu0
        %v731 = vpop.f32.mrb[0].mxu0
        %v732 = vpop.f32.mrb[0].mxu0
        %733 = vdwg.mxu0
        %v734 = vpack.c.bf16 %v729, %v729
        %v735 = vld [vmem:[#allocation8] sm:$0xf]
        %736 = vrot.lane.b32.xlu0 %v622, 120
        %v737 = vpop.permute.xlu0 %736
        %738 = vrot.lane.b32.xlu0 %v622, 88
        %v739 = vpop.permute.xlu0 %738
        %v741 = vsel %vm626, %v737, 0
        %v744 = vsel %vm626, %v739, 0
        %746 = vmatprep.subr.bf16.mxu0 0
        %747 = vmatpush1.bf16.xpose.msra.mxu0 %v744
        %748 = vmatprep.subr.bf16.mxu0 0
        %749 = vmatpush1.bf16.xpose.msra.mxu0 0
        %750 = vmatprep.subr.bf16.mxu0 0
        %751 = vmatpush1.bf16.xpose.msra.mxu0 0
        %752 = vmatprep.subr.bf16.mxu0 0
        %753 = vmatpush1.bf16.xpose.msra.mxu0 0
        %754 = vmatprep.subr.bf16.mxu0 0
        %755 = vmatpush1.bf16.xpose.msra.mxu0 0
        %756 = vmatprep.subr.bf16.mxu0 0
        %757 = vmatpush1.bf16.xpose.msra.mxu0 0
        %758 = vmatprep.subr.bf16.mxu0 0
        %759 = vmatpush1.bf16.xpose.msra.mxu0 0
        %760 = vmatprep.subr.bf16.mxu0 0
        %761 = vmatpush1.bf16.xpose.msra.mxu0 0
        %762 = vmatprep.subr.bf16.mxu0 0
        %763 = vmatpush1.bf16.xpose.msra.mxu0 0
        %764 = vmatprep.subr.bf16.mxu0 0
        %765 = vmatpush1.bf16.xpose.msra.mxu0 0
        %766 = vmatprep.subr.bf16.mxu0 0
        %767 = vmatpush1.bf16.xpose.msra.mxu0 0
        %768 = vmatprep.subr.bf16.mxu0 0
        %769 = vmatpush1.bf16.xpose.msra.mxu0 0
        %770 = vmatprep.subr.bf16.mxu0 0
        %771 = vmatpush1.bf16.xpose.msra.mxu0 0
        %772 = vmatprep.subr.bf16.mxu0 0
        %773 = vmatpush1.bf16.xpose.msra.mxu0 0
        %774 = vmatprep.subr.bf16.mxu0 0
        %775 = vmatpush1.bf16.xpose.msra.mxu0 0
        %776 = vmatprep.subr.bf16.mxu0 0
        %777 = vmatpush1.bf16.xpose.msra.mxu0 0
        %778 = vmatprep.mubr.bf16.mxu0 0
        %779 = vmatmul.mubr.bf16.gmra.mrb[0].mxu0 %v741
        %v780 = vpop.f32.mrb[0].mxu0
        %v781 = vadd.f32 %v621, %v780
        %v782 = vpop.f32.mrb[0].mxu0
        %v783 = vpop.f32.mrb[0].mxu0
        %v784 = vpop.f32.mrb[0].mxu0
        %785 = vdwg.mxu0
        %v786 = vsel %vm626, %v781, -inf
        %787 = vmax.xlane.f32.xlu0 %v786
        %v788 = vpop.xlane.xlu0 %787
        %v789 = vsub.f32 %v781, %v788
        %v790 = vmul.f32 %v789, 1.442695
        %v791 = vpow.pop %v790
        %v792 = vsel %vm626, %v791, 0.0
        %793 = vadd.xlane.f32.xlu0 %v792
        %v794 = vpop.xlane.xlu0 %793
        %v795 = vrcp.pop %v794
        %v796 = vmul.f32 %v791, %v795
        %v797 = vpack.c.bf16 %v796, %v796
        %798 = vrot.lane.b32.xlu0 %v622, 56
        %v799 = vpop.permute.xlu0 %798
        %v801 = vsel %vm626, %v797, 0
        %v804 = vsel %vm690, %v799, 0
        %806 = vmatprep.subr.bf16.mxu0 0
        %807 = vmatpush1.bf16.msra.mxu0 %v804
        %808 = vmatprep.subr.bf16.mxu0 0
        %809 = vmatpush1.bf16.msra.mxu0 0
        %810 = vmatprep.subr.bf16.mxu0 0
        %811 = vmatpush1.bf16.msra.mxu0 0
        %812 = vmatprep.subr.bf16.mxu0 0
        %813 = vmatpush1.bf16.msra.mxu0 0
        %814 = vmatprep.subr.bf16.mxu0 0
        %815 = vmatpush1.bf16.msra.mxu0 0
        %816 = vmatprep.subr.bf16.mxu0 0
        %817 = vmatpush1.bf16.msra.mxu0 0
        %818 = vmatprep.subr.bf16.mxu0 0
        %819 = vmatpush1.bf16.msra.mxu0 0
        %820 = vmatprep.subr.bf16.mxu0 0
        %821 = vmatpush1.bf16.msra.mxu0 0
        %822 = vmatprep.subr.bf16.mxu0 0
        %823 = vmatpush1.bf16.msra.mxu0 0
        %824 = vmatprep.subr.bf16.mxu0 0
        %825 = vmatpush1.bf16.msra.mxu0 0
        %826 = vmatprep.subr.bf16.mxu0 0
        %827 = vmatpush1.bf16.msra.mxu0 0
        %828 = vmatprep.subr.bf16.mxu0 0
        %829 = vmatpush1.bf16.msra.mxu0 0
        %830 = vmatprep.subr.bf16.mxu0 0
        %831 = vmatpush1.bf16.msra.mxu0 0
        %832 = vmatprep.subr.bf16.mxu0 0
        %833 = vmatpush1.bf16.msra.mxu0 0
        %834 = vmatprep.subr.bf16.mxu0 0
        %835 = vmatpush1.bf16.msra.mxu0 0
        %836 = vmatprep.subr.bf16.mxu0 0
        %837 = vmatpush1.bf16.msra.mxu0 0
        %838 = vmatprep.mubr.bf16.mxu0 0
        %839 = vmatmul.mubr.bf16.gmra.mrb[0].mxu0 %v801
        %v840 = vpop.f32.mrb[0].mxu0
        %v841 = vadd.f32 0.0, %v840
        %v842 = vpop.f32.mrb[0].mxu0
        %v843 = vpop.f32.mrb[0].mxu0
        %v844 = vpop.f32.mrb[0].mxu0
        %845 = vdwg.mxu0
        %v846 = vpack.c.bf16 %v841, %v841
        %s847 = scalar_lea.vmem [#allocation8], 4
        %v848 = vld [vmem:[%s847] sm:$0xf]
        %v850 = vsel %vm626, %v846, 0
        %v853 = vsel %vm690, %v848, 0
        %855 = vmatprep.subr.bf16.mxu0 0
        %856 = vmatpush1.bf16.msra.mxu0 %v853
        %857 = vmatprep.subr.bf16.mxu0 0
        %858 = vmatpush1.bf16.msra.mxu0 0
        %859 = vmatprep.subr.bf16.mxu0 0
        %860 = vmatpush1.bf16.msra.mxu0 0
        %861 = vmatprep.subr.bf16.mxu0 0
        %862 = vmatpush1.bf16.msra.mxu0 0
        %863 = vmatprep.subr.bf16.mxu0 0
        %864 = vmatpush1.bf16.msra.mxu0 0
        %865 = vmatprep.subr.bf16.mxu0 0
        %866 = vmatpush1.bf16.msra.mxu0 0
        %867 = vmatprep.subr.bf16.mxu0 0
        %868 = vmatpush1.bf16.msra.mxu0 0
        %869 = vmatprep.subr.bf16.mxu0 0
        %870 = vmatpush1.bf16.msra.mxu0 0
        %871 = vmatprep.subr.bf16.mxu0 0
        %872 = vmatpush1.bf16.msra.mxu0 0
        %873 = vmatprep.subr.bf16.mxu0 0
        %874 = vmatpush1.bf16.msra.mxu0 0
        %875 = vmatprep.subr.bf16.mxu0 0
        %876 = vmatpush1.bf16.msra.mxu0 0
        %877 = vmatprep.subr.bf16.mxu0 0
        %878 = vmatpush1.bf16.msra.mxu0 0
        %879 = vmatprep.subr.bf16.mxu0 0
        %880 = vmatpush1.bf16.msra.mxu0 0
        %881 = vmatprep.subr.bf16.mxu0 0
        %882 = vmatpush1.bf16.msra.mxu0 0
        %883 = vmatprep.subr.bf16.mxu0 0
        %884 = vmatpush1.bf16.msra.mxu0 0
        %885 = vmatprep.subr.bf16.mxu0 0
        %886 = vmatpush1.bf16.msra.mxu0 0
        %887 = vmatprep.mubr.bf16.mxu0 0
        %888 = vmatmul.mubr.bf16.gmra.mrb[0].mxu0 %v850
        %v889 = vpop.f32.mrb[0].mxu0
        %v890 = vadd.f32 0.0, %v889
        %v891 = vpop.f32.mrb[0].mxu0
        %v892 = vpop.f32.mrb[0].mxu0
        %v893 = vpop.f32.mrb[0].mxu0
        %894 = vdwg.mxu0
        %v896 = vsel %vm626, %v734, 0
        %v899 = vsel %vm690, %v735, 0
        %901 = vmatprep.subr.bf16.mxu0 0
        %902 = vmatpush1.bf16.msra.mxu0 %v899
        %903 = vmatprep.subr.bf16.mxu0 0
        %904 = vmatpush1.bf16.msra.mxu0 0
        %905 = vmatprep.subr.bf16.mxu0 0
        %906 = vmatpush1.bf16.msra.mxu0 0
        %907 = vmatprep.subr.bf16.mxu0 0
        %908 = vmatpush1.bf16.msra.mxu0 0
        %909 = vmatprep.subr.bf16.mxu0 0
        %910 = vmatpush1.bf16.msra.mxu0 0
        %911 = vmatprep.subr.bf16.mxu0 0
        %912 = vmatpush1.bf16.msra.mxu0 0
        %913 = vmatprep.subr.bf16.mxu0 0
        %914 = vmatpush1.bf16.msra.mxu0 0
        %915 = vmatprep.subr.bf16.mxu0 0
        %916 = vmatpush1.bf16.msra.mxu0 0
        %917 = vmatprep.subr.bf16.mxu0 0
        %918 = vmatpush1.bf16.msra.mxu0 0
        %919 = vmatprep.subr.bf16.mxu0 0
        %920 = vmatpush1.bf16.msra.mxu0 0
        %921 = vmatprep.subr.bf16.mxu0 0
        %922 = vmatpush1.bf16.msra.mxu0 0
        %923 = vmatprep.subr.bf16.mxu0 0
        %924 = vmatpush1.bf16.msra.mxu0 0
        %925 = vmatprep.subr.bf16.mxu0 0
        %926 = vmatpush1.bf16.msra.mxu0 0
        %927 = vmatprep.subr.bf16.mxu0 0
        %928 = vmatpush1.bf16.msra.mxu0 0
        %929 = vmatprep.subr.bf16.mxu0 0
        %930 = vmatpush1.bf16.msra.mxu0 0
        %931 = vmatprep.subr.bf16.mxu0 0
        %932 = vmatpush1.bf16.msra.mxu0 0
        %933 = vmatprep.mubr.bf16.mxu0 0
        %934 = vmatmul.mubr.bf16.gmra.mrb[0].mxu0 %v896
        %v935 = vpop.f32.mrb[0].mxu0
        %v936 = vadd.f32 %v890, %v935
        %v937 = vpop.f32.mrb[0].mxu0
        %v938 = vpop.f32.mrb[0].mxu0
        %v939 = vpop.f32.mrb[0].mxu0
        %940 = vdwg.mxu0
        %941 = vrot.lane.b32.xlu0 %v622, 112
        %v942 = vpop.permute.xlu0 %941
        %943 = vrot.lane.b32.xlu0 %v622, 80
        %v944 = vpop.permute.xlu0 %943
        %v946 = vsel %vm626, %v942, 0
        %v949 = vsel %vm626, %v944, 0
        %951 = vmatprep.subr.bf16.mxu0 0
        %952 = vmatpush1.bf16.xpose.msra.mxu0 %v949
        %953 = vmatprep.subr.bf16.mxu0 0
        %954 = vmatpush1.bf16.xpose.msra.mxu0 0
        %955 = vmatprep.subr.bf16.mxu0 0
        %956 = vmatpush1.bf16.xpose.msra.mxu0 0
        %957 = vmatprep.subr.bf16.mxu0 0
        %958 = vmatpush1.bf16.xpose.msra.mxu0 0
        %959 = vmatprep.subr.bf16.mxu0 0
        %960 = vmatpush1.bf16.xpose.msra.mxu0 0
        %961 = vmatprep.subr.bf16.mxu0 0
        %962 = vmatpush1.bf16.xpose.msra.mxu0 0
        %963 = vmatprep.subr.bf16.mxu0 0
        %964 = vmatpush1.bf16.xpose.msra.mxu0 0
        %965 = vmatprep.subr.bf16.mxu0 0
        %966 = vmatpush1.bf16.xpose.msra.mxu0 0
        %967 = vmatprep.subr.bf16.mxu0 0
        %968 = vmatpush1.bf16.xpose.msra.mxu0 0
        %969 = vmatprep.subr.bf16.mxu0 0
        %970 = vmatpush1.bf16.xpose.msra.mxu0 0
        %971 = vmatprep.subr.bf16.mxu0 0
        %972 = vmatpush1.bf16.xpose.msra.mxu0 0
        %973 = vmatprep.subr.bf16.mxu0 0
        %974 = vmatpush1.bf16.xpose.msra.mxu0 0
        %975 = vmatprep.subr.bf16.mxu0 0
        %976 = vmatpush1.bf16.xpose.msra.mxu0 0
        %977 = vmatprep.subr.bf16.mxu0 0
        %978 = vmatpush1.bf16.xpose.msra.mxu0 0
        %979 = vmatprep.subr.bf16.mxu0 0
        %980 = vmatpush1.bf16.xpose.msra.mxu0 0
        %981 = vmatprep.subr.bf16.mxu0 0
        %982 = vmatpush1.bf16.xpose.msra.mxu0 0
        %983 = vmatprep.mubr.bf16.mxu0 0
        %984 = vmatmul.mubr.bf16.gmra.mrb[0].mxu0 %v946
        %v985 = vpop.f32.mrb[0].mxu0
        %v986 = vadd.f32 %v621, %v985
        %v987 = vpop.f32.mrb[0].mxu0
        %v988 = vpop.f32.mrb[0].mxu0
        %v989 = vpop.f32.mrb[0].mxu0
        %990 = vdwg.mxu0
        %v991 = vsel %vm626, %v986, -inf
        %992 = vmax.xlane.f32.xlu0 %v991
        %v993 = vpop.xlane.xlu0 %992
        %v994 = vsub.f32 %v986, %v993
        %v995 = vmul.f32 %v994, 1.442695
        %v996 = vpow.pop %v995
        %v997 = vsel %vm626, %v996, 0.0
        %998 = vadd.xlane.f32.xlu0 %v997
        %v999 = vpop.xlane.xlu0 %998
        %v1000 = vrcp.pop %v999
        %v1001 = vmul.f32 %v996, %v1000
        %v1002 = vpack.c.bf16 %v1001, %v1001
        %1003 = vrot.lane.b32.xlu0 %v622, 48
        %v1004 = vpop.permute.xlu0 %1003
        %v1006 = vsel %vm626, %v1002, 0
        %v1009 = vsel %vm690, %v1004, 0
        %1011 = vmatprep.subr.bf16.mxu0 0
        %1012 = vmatpush1.bf16.msra.mxu0 %v1009
        %1013 = vmatprep.subr.bf16.mxu0 0
        %1014 = vmatpush1.bf16.msra.mxu0 0
        %1015 = vmatprep.subr.bf16.mxu0 0
        %1016 = vmatpush1.bf16.msra.mxu0 0
        %1017 = vmatprep.subr.bf16.mxu0 0
        %1018 = vmatpush1.bf16.msra.mxu0 0
        %1019 = vmatprep.subr.bf16.mxu0 0
        %1020 = vmatpush1.bf16.msra.mxu0 0
        %1021 = vmatprep.subr.bf16.mxu0 0
        %1022 = vmatpush1.bf16.msra.mxu0 0
        %1023 = vmatprep.subr.bf16.mxu0 0
        %1024 = vmatpush1.bf16.msra.mxu0 0
        %1025 = vmatprep.subr.bf16.mxu0 0
        %1026 = vmatpush1.bf16.msra.mxu0 0
        %1027 = vmatprep.subr.bf16.mxu0 0
        %1028 = vmatpush1.bf16.msra.mxu0 0
        %1029 = vmatprep.subr.bf16.mxu0 0
        %1030 = vmatpush1.bf16.msra.mxu0 0
        %1031 = vmatprep.subr.bf16.mxu0 0
        %1032 = vmatpush1.bf16.msra.mxu0 0
        %1033 = vmatprep.subr.bf16.mxu0 0
        %1034 = vmatpush1.bf16.msra.mxu0 0
        %1035 = vmatprep.subr.bf16.mxu0 0
        %1036 = vmatpush1.bf16.msra.mxu0 0
        %1037 = vmatprep.subr.bf16.mxu0 0
        %1038 = vmatpush1.bf16.msra.mxu0 0
        %1039 = vmatprep.subr.bf16.mxu0 0
        %1040 = vmatpush1.bf16.msra.mxu0 0
        %1041 = vmatprep.subr.bf16.mxu0 0
        %1042 = vmatpush1.bf16.msra.mxu0 0
        %1043 = vmatprep.mubr.bf16.mxu0 0
        %1044 = vmatmul.mubr.bf16.gmra.mrb[0].mxu0 %v1006
        %v1045 = vpop.f32.mrb[0].mxu0
        %v1046 = vadd.f32 0.0, %v1045
        %v1047 = vpop.f32.mrb[0].mxu0
        %v1048 = vpop.f32.mrb[0].mxu0
        %v1049 = vpop.f32.mrb[0].mxu0
        %1050 = vdwg.mxu0
        %v1051 = vpack.c.bf16 %v1046, %v1046
        %s1052 = scalar_lea.vmem [#allocation8], 8
        %v1053 = vld [vmem:[%s1052] sm:$0xf]
        %v1055 = vsel %vm626, %v1051, 0
        %v1058 = vsel %vm690, %v1053, 0
        %1060 = vmatprep.subr.bf16.mxu0 0
        %1061 = vmatpush1.bf16.msra.mxu0 %v1058
        %1062 = vmatprep.subr.bf16.mxu0 0
        %1063 = vmatpush1.bf16.msra.mxu0 0
        %1064 = vmatprep.subr.bf16.mxu0 0
        %1065 = vmatpush1.bf16.msra.mxu0 0
        %1066 = vmatprep.subr.bf16.mxu0 0
        %1067 = vmatpush1.bf16.msra.mxu0 0
        %1068 = vmatprep.subr.bf16.mxu0 0
        %1069 = vmatpush1.bf16.msra.mxu0 0
        %1070 = vmatprep.subr.bf16.mxu0 0
        %1071 = vmatpush1.bf16.msra.mxu0 0
        %1072 = vmatprep.subr.bf16.mxu0 0
        %1073 = vmatpush1.bf16.msra.mxu0 0
        %1074 = vmatprep.subr.bf16.mxu0 0
        %1075 = vmatpush1.bf16.msra.mxu0 0
        %1076 = vmatprep.subr.bf16.mxu0 0
        %1077 = vmatpush1.bf16.msra.mxu0 0
        %1078 = vmatprep.subr.bf16.mxu0 0
        %1079 = vmatpush1.bf16.msra.mxu0 0
        %1080 = vmatprep.subr.bf16.mxu0 0
        %1081 = vmatpush1.bf16.msra.mxu0 0
        %1082 = vmatprep.subr.bf16.mxu0 0
        %1083 = vmatpush1.bf16.msra.mxu0 0
        %1084 = vmatprep.subr.bf16.mxu0 0
        %1085 = vmatpush1.bf16.msra.mxu0 0
        %1086 = vmatprep.subr.bf16.mxu0 0
        %1087 = vmatpush1.bf16.msra.mxu0 0
        %1088 = vmatprep.subr.bf16.mxu0 0
        %1089 = vmatpush1.bf16.msra.mxu0 0
        %1090 = vmatprep.subr.bf16.mxu0 0
        %1091 = vmatpush1.bf16.msra.mxu0 0
        %1092 = vmatprep.mubr.bf16.mxu0 0
        %1093 = vmatmul.mubr.bf16.gmra.mrb[0].mxu0 %v1055
        %v1094 = vpop.f32.mrb[0].mxu0
        %v1095 = vadd.f32 0.0, %v1094
        %v1096 = vpop.f32.mrb[0].mxu0
        %v1097 = vpop.f32.mrb[0].mxu0
        %v1098 = vpop.f32.mrb[0].mxu0
        %1099 = vdwg.mxu0
        %v1100 = vadd.f32 %v936, %v1095
        %1101 = vrot.lane.b32.xlu0 %v622, 104
        %v1102 = vpop.permute.xlu0 %1101
        %1103 = vrot.lane.b32.xlu0 %v622, 72
        %v1104 = vpop.permute.xlu0 %1103
        %v1106 = vsel %vm626, %v1102, 0
        %v1109 = vsel %vm626, %v1104, 0
        %1111 = vmatprep.subr.bf16.mxu0 0
        %1112 = vmatpush1.bf16.xpose.msra.mxu0 %v1109
        %1113 = vmatprep.subr.bf16.mxu0 0
        %1114 = vmatpush1.bf16.xpose.msra.mxu0 0
        %1115 = vmatprep.subr.bf16.mxu0 0
        %1116 = vmatpush1.bf16.xpose.msra.mxu0 0
        %1117 = vmatprep.subr.bf16.mxu0 0
        %1118 = vmatpush1.bf16.xpose.msra.mxu0 0
        %1119 = vmatprep.subr.bf16.mxu0 0
        %1120 = vmatpush1.bf16.xpose.msra.mxu0 0
        %1121 = vmatprep.subr.bf16.mxu0 0
        %1122 = vmatpush1.bf16.xpose.msra.mxu0 0
        %1123 = vmatprep.subr.bf16.mxu0 0
        %1124 = vmatpush1.bf16.xpose.msra.mxu0 0
        %1125 = vmatprep.subr.bf16.mxu0 0
        %1126 = vmatpush1.bf16.xpose.msra.mxu0 0
        %1127 = vmatprep.subr.bf16.mxu0 0
        %1128 = vmatpush1.bf16.xpose.msra.mxu0 0
        %1129 = vmatprep.subr.bf16.mxu0 0
        %1130 = vmatpush1.bf16.xpose.msra.mxu0 0
        %1131 = vmatprep.subr.bf16.mxu0 0
        %1132 = vmatpush1.bf16.xpose.msra.mxu0 0
        %1133 = vmatprep.subr.bf16.mxu0 0
        %1134 = vmatpush1.bf16.xpose.msra.mxu0 0
        %1135 = vmatprep.subr.bf16.mxu0 0
        %1136 = vmatpush1.bf16.xpose.msra.mxu0 0
        %1137 = vmatprep.subr.bf16.mxu0 0
        %1138 = vmatpush1.bf16.xpose.msra.mxu0 0
        %1139 = vmatprep.subr.bf16.mxu0 0
        %1140 = vmatpush1.bf16.xpose.msra.mxu0 0
        %1141 = vmatprep.subr.bf16.mxu0 0
        %1142 = vmatpush1.bf16.xpose.msra.mxu0 0
        %1143 = vmatprep.mubr.bf16.mxu0 0
        %1144 = vmatmul.mubr.bf16.gmra.mrb[0].mxu0 %v1106
        %v1145 = vpop.f32.mrb[0].mxu0
        %v1146 = vadd.f32 %v621, %v1145
        %v1147 = vpop.f32.mrb[0].mxu0
        %v1148 = vpop.f32.mrb[0].mxu0
        %v1149 = vpop.f32.mrb[0].mxu0
        %1150 = vdwg.mxu0
        %v1151 = vsel %vm626, %v1146, -inf
        %1152 = vmax.xlane.f32.xlu0 %v1151
        %v1153 = vpop.xlane.xlu0 %1152
        %v1154 = vsub.f32 %v1146, %v1153
        %v1155 = vmul.f32 %v1154, 1.442695
        %v1156 = vpow.pop %v1155
        %v1157 = vsel %vm626, %v1156, 0.0
        %1158 = vadd.xlane.f32.xlu0 %v1157
        %v1159 = vpop.xlane.xlu0 %1158
        %v1160 = vrcp.pop %v1159
        %v1161 = vmul.f32 %v1156, %v1160
        %v1162 = vpack.c.bf16 %v1161, %v1161
        %1163 = vrot.lane.b32.xlu0 %v622, 40
        %v1164 = vpop.permute.xlu0 %1163
        %v1166 = vsel %vm626, %v1162, 0
        %v1169 = vsel %vm690, %v1164, 0
        %1171 = vmatprep.subr.bf16.mxu0 0
        %1172 = vmatpush1.bf16.msra.mxu0 %v1169
        %1173 = vmatprep.subr.bf16.mxu0 0
        %1174 = vmatpush1.bf16.msra.mxu0 0
        %1175 = vmatprep.subr.bf16.mxu0 0
        %1176 = vmatpush1.bf16.msra.mxu0 0
        %1177 = vmatprep.subr.bf16.mxu0 0
        %1178 = vmatpush1.bf16.msra.mxu0 0
        %1179 = vmatprep.subr.bf16.mxu0 0
        %1180 = vmatpush1.bf16.msra.mxu0 0
        %1181 = vmatprep.subr.bf16.mxu0 0
        %1182 = vmatpush1.bf16.msra.mxu0 0
        %1183 = vmatprep.subr.bf16.mxu0 0
        %1184 = vmatpush1.bf16.msra.mxu0 0
        %1185 = vmatprep.subr.bf16.mxu0 0
        %1186 = vmatpush1.bf16.msra.mxu0 0
        %1187 = vmatprep.subr.bf16.mxu0 0
        %1188 = vmatpush1.bf16.msra.mxu0 0
        %1189 = vmatprep.subr.bf16.mxu0 0
        %1190 = vmatpush1.bf16.msra.mxu0 0
        %1191 = vmatprep.subr.bf16.mxu0 0
        %1192 = vmatpush1.bf16.msra.mxu0 0
        %1193 = vmatprep.subr.bf16.mxu0 0
        %1194 = vmatpush1.bf16.msra.mxu0 0
        %1195 = vmatprep.subr.bf16.mxu0 0
        %1196 = vmatpush1.bf16.msra.mxu0 0
        %1197 = vmatprep.subr.bf16.mxu0 0
        %1198 = vmatpush1.bf16.msra.mxu0 0
        %1199 = vmatprep.subr.bf16.mxu0 0
        %1200 = vmatpush1.bf16.msra.mxu0 0
        %1201 = vmatprep.subr.bf16.mxu0 0
        %1202 = vmatpush1.bf16.msra.mxu0 0
        %1203 = vmatprep.mubr.bf16.mxu0 0
        %1204 = vmatmul.mubr.bf16.gmra.mrb[0].mxu0 %v1166
        %v1205 = vpop.f32.mrb[0].mxu0
        %v1206 = vadd.f32 0.0, %v1205
        %v1207 = vpop.f32.mrb[0].mxu0
        %v1208 = vpop.f32.mrb[0].mxu0
        %v1209 = vpop.f32.mrb[0].mxu0
        %1210 = vdwg.mxu0
        %v1211 = vpack.c.bf16 %v1206, %v1206
        %s1212 = scalar_lea.vmem [#allocation8], 12
        %v1213 = vld [vmem:[%s1212] sm:$0xf]
        %v1215 = vsel %vm626, %v1211, 0
        %v1218 = vsel %vm690, %v1213, 0
        %1220 = vmatprep.subr.bf16.mxu0 0
        %1221 = vmatpush1.bf16.msra.mxu0 %v1218
        %1222 = vmatprep.subr.bf16.mxu0 0
        %1223 = vmatpush1.bf16.msra.mxu0 0
        %1224 = vmatprep.subr.bf16.mxu0 0
        %1225 = vmatpush1.bf16.msra.mxu0 0
        %1226 = vmatprep.subr.bf16.mxu0 0
        %1227 = vmatpush1.bf16.msra.mxu0 0
        %1228 = vmatprep.subr.bf16.mxu0 0
        %1229 = vmatpush1.bf16.msra.mxu0 0
        %1230 = vmatprep.subr.bf16.mxu0 0
        %1231 = vmatpush1.bf16.msra.mxu0 0
        %1232 = vmatprep.subr.bf16.mxu0 0
        %1233 = vmatpush1.bf16.msra.mxu0 0
        %1234 = vmatprep.subr.bf16.mxu0 0
        %1235 = vmatpush1.bf16.msra.mxu0 0
        %1236 = vmatprep.subr.bf16.mxu0 0
        %1237 = vmatpush1.bf16.msra.mxu0 0
        %1238 = vmatprep.subr.bf16.mxu0 0
        %1239 = vmatpush1.bf16.msra.mxu0 0
        %1240 = vmatprep.subr.bf16.mxu0 0
        %1241 = vmatpush1.bf16.msra.mxu0 0
        %1242 = vmatprep.subr.bf16.mxu0 0
        %1243 = vmatpush1.bf16.msra.mxu0 0
        %1244 = vmatprep.subr.bf16.mxu0 0
        %1245 = vmatpush1.bf16.msra.mxu0 0
        %1246 = vmatprep.subr.bf16.mxu0 0
        %1247 = vmatpush1.bf16.msra.mxu0 0
        %1248 = vmatprep.subr.bf16.mxu0 0
        %1249 = vmatpush1.bf16.msra.mxu0 0
        %1250 = vmatprep.subr.bf16.mxu0 0
        %1251 = vmatpush1.bf16.msra.mxu0 0
        %1252 = vmatprep.mubr.bf16.mxu0 0
        %1253 = vmatmul.mubr.bf16.gmra.mrb[0].mxu0 %v1215
        %v1254 = vpop.f32.mrb[0].mxu0
        %v1255 = vadd.f32 0.0, %v1254
        %v1256 = vpop.f32.mrb[0].mxu0
        %v1257 = vpop.f32.mrb[0].mxu0
        %v1258 = vpop.f32.mrb[0].mxu0
        %1259 = vdwg.mxu0
        %v1260 = vadd.f32 %v1100, %v1255
        %v1261 = vld [vmem:[#allocation10] sm:$0x1]
        %v1263 = vlaneseq
        %v1264 = vshrl.u32 %v1263, 7
        %v1265 = vsub.s32 0, %v1264
        %v1266 = vrot.slane %v1261, %v1265
        %v1268 = vadd.f32 %v1260, %v1266
        %v1269 = vadd.f32 %v1268, %v538
        %v1270 = vmul.f32 %v1269, %v1269
        %v1271 = vsel %vm540, %v1270, 0.0
        %1272 = vadd.xlane.f32.xlu0 %v1271
        %v1273 = vpop.xlane.xlu0 %1272
        %v1274 = vmul.f32 %v1273, %v544
        %v1275 = vadd.f32 %v1274, 1e-06
        %v1276 = vrsqrt.pop %v1275
        %v1277 = vmul.f32 %v1269, %v1276
        %v1278 = vpack.c.bf16 %v1277, %v1277
        %v1279 = vld [vmem:[#allocation11] sm:$0xf]
        %v1280 = vld [vmem:[#allocation11 + $0x4] sm:$0xf]
        %v1281 = vld [vmem:[#allocation11 + $0x8] sm:$0xf]
        %v1282 = vld [vmem:[#allocation11 + $0xc] sm:$0xf]
        %v1283 = vld [vmem:[#allocation13] sm:$0x1]
        %v1285 = vlaneseq
        %v1286 = vshrl.u32 %v1285, 7
        %v1287 = vsub.s32 0, %v1286
        %v1288 = vrot.slane %v1283, %v1287
        %v1294 = vunpack.c.l.b16 %v1279
        %v1295 = vunpack.c.l.b16 %v1280
        %v1296 = vunpack.c.l.b16 %v1281
        %v1297 = vunpack.c.l.b16 %v1282
        %v1298 = vpack.c.b16 %v1295, %v1294
        %v1299 = vpack.c.b16 %v1297, %v1296
        %v1303 = vsel %vm540, %v1278, 0
        %1305 = vmatprep.subr.bf16.mxu0 0
        %1306 = vmatpush1.bf16.msra.mxu0 %v1298
        %1307 = vmatprep.subr.bf16.mxu0 0
        %1308 = vmatpush1.bf16.msra.mxu0 %v1299
        %1309 = vmatprep.subr.bf16.mxu0 0
        %1310 = vmatpush1.bf16.msra.mxu0 0
        %1311 = vmatprep.subr.bf16.mxu0 0
        %1312 = vmatpush1.bf16.msra.mxu0 0
        %1313 = vmatprep.subr.bf16.mxu0 0
        %1314 = vmatpush1.bf16.msra.mxu0 0
        %1315 = vmatprep.subr.bf16.mxu0 0
        %1316 = vmatpush1.bf16.msra.mxu0 0
        %1317 = vmatprep.subr.bf16.mxu0 0
        %1318 = vmatpush1.bf16.msra.mxu0 0
        %1319 = vmatprep.subr.bf16.mxu0 0
        %1320 = vmatpush1.bf16.msra.mxu0 0
        %1321 = vmatprep.subr.bf16.mxu0 0
        %1322 = vmatpush1.bf16.msra.mxu0 0
        %1323 = vmatprep.subr.bf16.mxu0 0
        %1324 = vmatpush1.bf16.msra.mxu0 0
        %1325 = vmatprep.subr.bf16.mxu0 0
        %1326 = vmatpush1.bf16.msra.mxu0 0
        %1327 = vmatprep.subr.bf16.mxu0 0
        %1328 = vmatpush1.bf16.msra.mxu0 0
        %1329 = vmatprep.subr.bf16.mxu0 0
        %1330 = vmatpush1.bf16.msra.mxu0 0
        %1331 = vmatprep.subr.bf16.mxu0 0
        %1332 = vmatpush1.bf16.msra.mxu0 0
        %1333 = vmatprep.subr.bf16.mxu0 0
        %1334 = vmatpush1.bf16.msra.mxu0 0
        %1335 = vmatprep.subr.bf16.mxu0 0
        %1336 = vmatpush1.bf16.msra.mxu0 0
        %1337 = vmatprep.mubr.bf16.mxu0 0
        %1338 = vmatmul.mubr.bf16.gmra.mrb[0].mxu0 %v1303
        %v1339 = vpop.f32.mrb[0].mxu0
        %v1340 = vadd.f32 %v1288, %v1339
        %v1341 = vpop.f32.mrb[0].mxu0
        %v1342 = vpop.f32.mrb[0].mxu0
        %v1343 = vpop.f32.mrb[0].mxu0
        %1344 = vdwg.mxu0
        %v1345 = vxor.u32 %v1340, 2147483648
        %v1346 = vmul.f32 %v1345, 1.442695
        %v1347 = vpow.pop %v1346
        %v1348 = vadd.f32 %v1347, 1.0
        %v1349 = vrcp.pop %v1348
        %v1350 = vmul.f32 1.0, %v1349
        %v1351 = vmul.f32 %v1340, %v1350
        %v1352 = vld [vmem:[#allocation14] sm:$0xf]
        %v1353 = vld [vmem:[#allocation14 + $0x4] sm:$0xf]
        %v1354 = vld [vmem:[#allocation14 + $0x8] sm:$0xf]
        %v1355 = vld [vmem:[#allocation14 + $0xc] sm:$0xf]
        %v1356 = vld [vmem:[#allocation16] sm:$0x1]
        %v1358 = vlaneseq
        %v1359 = vshrl.u32 %v1358, 7
        %v1360 = vsub.s32 0, %v1359
        %v1361 = vrot.slane %v1356, %v1360
        %v1367 = vunpack.c.l.b16 %v1352
        %v1368 = vunpack.c.l.b16 %v1353
        %v1369 = vunpack.c.l.b16 %v1354
        %v1370 = vunpack.c.l.b16 %v1355
        %v1371 = vpack.c.b16 %v1368, %v1367
        %v1372 = vpack.c.b16 %v1370, %v1369
        %1375 = vmatprep.subr.bf16.mxu0 0
        %1376 = vmatpush1.bf16.msra.mxu0 %v1371
        %1377 = vmatprep.subr.bf16.mxu0 0
        %1378 = vmatpush1.bf16.msra.mxu0 %v1372
        %1379 = vmatprep.subr.bf16.mxu0 0
        %1380 = vmatpush1.bf16.msra.mxu0 0
        %1381 = vmatprep.subr.bf16.mxu0 0
        %1382 = vmatpush1.bf16.msra.mxu0 0
        %1383 = vmatprep.subr.bf16.mxu0 0
        %1384 = vmatpush1.bf16.msra.mxu0 0
        %1385 = vmatprep.subr.bf16.mxu0 0
        %1386 = vmatpush1.bf16.msra.mxu0 0
        %1387 = vmatprep.subr.bf16.mxu0 0
        %1388 = vmatpush1.bf16.msra.mxu0 0
        %1389 = vmatprep.subr.bf16.mxu0 0
        %1390 = vmatpush1.bf16.msra.mxu0 0
        %1391 = vmatprep.subr.bf16.mxu0 0
        %1392 = vmatpush1.bf16.msra.mxu0 0
        %1393 = vmatprep.subr.bf16.mxu0 0
        %1394 = vmatpush1.bf16.msra.mxu0 0
        %1395 = vmatprep.subr.bf16.mxu0 0
        %1396 = vmatpush1.bf16.msra.mxu0 0
        %1397 = vmatprep.subr.bf16.mxu0 0
        %1398 = vmatpush1.bf16.msra.mxu0 0
        %1399 = vmatprep.subr.bf16.mxu0 0
        %1400 = vmatpush1.bf16.msra.mxu0 0
        %1401 = vmatprep.subr.bf16.mxu0 0
        %1402 = vmatpush1.bf16.msra.mxu0 0
        %1403 = vmatprep.subr.bf16.mxu0 0
        %1404 = vmatpush1.bf16.msra.mxu0 0
        %1405 = vmatprep.subr.bf16.mxu0 0
        %1406 = vmatpush1.bf16.msra.mxu0 0
        %1407 = vmatprep.mubr.bf16.mxu0 0
        %1408 = vmatmul.mubr.bf16.gmra.mrb[0].mxu0 %v1303
        %v1409 = vpop.f32.mrb[0].mxu0
        %v1410 = vadd.f32 %v1361, %v1409
        %v1411 = vpop.f32.mrb[0].mxu0
        %v1412 = vpop.f32.mrb[0].mxu0
        %v1413 = vpop.f32.mrb[0].mxu0
        %1414 = vdwg.mxu0
        %v1415 = vmul.f32 %v1410, %v1351
        %v1416 = vpack.c.bf16 %v1415, %v1415
        %v1417 = vld [vmem:[#allocation17] sm:$0xf]
        %v1418 = vld [vmem:[#allocation17 + $0x4] sm:$0xf]
        %v1419 = vld [vmem:[#allocation17 + $0x8] sm:$0xf]
        %v1420 = vld [vmem:[#allocation17 + $0xc] sm:$0xf]
        %v1421 = vld [vmem:[#allocation17 + $0x10] sm:$0xf]
        %v1422 = vld [vmem:[#allocation17 + $0x14] sm:$0xf]
        %v1423 = vld [vmem:[#allocation17 + $0x18] sm:$0xf]
        %v1424 = vld [vmem:[#allocation17 + $0x1c] sm:$0xf]
        %v1425 = vld [vmem:[#allocation19] sm:$0x1]
        %v1427 = vlaneseq
        %v1428 = vshrl.u32 %v1427, 7
        %v1429 = vsub.s32 0, %v1428
        %v1430 = vrot.slane %v1425, %v1429
        %v1440 = vunpack.c.l.b16 %v1417
        %v1441 = vunpack.c.l.b16 %v1418
        %v1442 = vunpack.c.l.b16 %v1419
        %v1443 = vunpack.c.l.b16 %v1420
        %v1444 = vunpack.c.l.b16 %v1421
        %v1445 = vunpack.c.l.b16 %v1422
        %v1446 = vunpack.c.l.b16 %v1423
        %v1447 = vunpack.c.l.b16 %v1424
        %v1448 = vpack.c.b16 %v1441, %v1440
        %v1449 = vpack.c.b16 %v1443, %v1442
        %v1450 = vpack.c.b16 %v1445, %v1444
        %v1451 = vpack.c.b16 %v1447, %v1446
        %vm1456 = vcmask 523264
        %v1458 = vsel %vm1456, %v1416, 0
        %1460 = vmatprep.subr.bf16.mxu0 0
        %1461 = vmatpush1.bf16.msra.mxu0 %v1448
        %1462 = vmatprep.subr.bf16.mxu0 0
        %1463 = vmatpush1.bf16.msra.mxu0 %v1449
        %1464 = vmatprep.subr.bf16.mxu0 0
        %1465 = vmatpush1.bf16.msra.mxu0 %v1450
        %1466 = vmatprep.subr.bf16.mxu0 0
        %1467 = vmatpush1.bf16.msra.mxu0 %v1451
        %1468 = vmatprep.subr.bf16.mxu0 0
        %1469 = vmatpush1.bf16.msra.mxu0 0
        %1470 = vmatprep.subr.bf16.mxu0 0
        %1471 = vmatpush1.bf16.msra.mxu0 0
        %1472 = vmatprep.subr.bf16.mxu0 0
        %1473 = vmatpush1.bf16.msra.mxu0 0
        %1474 = vmatprep.subr.bf16.mxu0 0
        %1475 = vmatpush1.bf16.msra.mxu0 0
        %1476 = vmatprep.subr.bf16.mxu0 0
        %1477 = vmatpush1.bf16.msra.mxu0 0
        %1478 = vmatprep.subr.bf16.mxu0 0
        %1479 = vmatpush1.bf16.msra.mxu0 0
        %1480 = vmatprep.subr.bf16.mxu0 0
        %1481 = vmatpush1.bf16.msra.mxu0 0
        %1482 = vmatprep.subr.bf16.mxu0 0
        %1483 = vmatpush1.bf16.msra.mxu0 0
        %1484 = vmatprep.subr.bf16.mxu0 0
        %1485 = vmatpush1.bf16.msra.mxu0 0
        %1486 = vmatprep.subr.bf16.mxu0 0
        %1487 = vmatpush1.bf16.msra.mxu0 0
        %1488 = vmatprep.subr.bf16.mxu0 0
        %1489 = vmatpush1.bf16.msra.mxu0 0
        %1490 = vmatprep.subr.bf16.mxu0 0
        %1491 = vmatpush1.bf16.msra.mxu0 0
        %1492 = vmatprep.mubr.bf16.mxu0 0
        %1493 = vmatmul.mubr.bf16.gmra.mrb[0].mxu0 %v1458
        %v1494 = vpop.f32.mrb[0].mxu0
        %v1495 = vadd.f32 %v1430, %v1494
        %v1496 = vpop.f32.mrb[0].mxu0
        %v1497 = vpop.f32.mrb[0].mxu0
        %v1498 = vpop.f32.mrb[0].mxu0
        %1499 = vdwg.mxu0
        %v1500 = vadd.f32 %v1495, %v1269
        %1501 = vst.msk [vmem:[%s536] sm:$0xff] %vm540, %v1500
        %s1502 = sand.u32 %s277, 1
        %s1503 = scalar_lea.sflag [#allocation4], %s1502
        %s1504 = sand.u32 %s277, 1
        %s1505 = smul.addr %s1504, 8
        %s1506 = scalar_lea.vmem [#allocation20], %s1505
        // Predicated region
        $region109: #{tpu_custom_call.1} parent=63 // pred_check
          %p1507 = pneg %p287
        $region110: #{tpu_custom_call.1} parent=63 // pred_check_branch
          %1509 = sbr.rel (%p1507) target = $region112
        $region111: #{tpu_custom_call.1} parent=63 // pred_region
          %s1511 = ssub.s32 128, 128
          %1512 = vsyncadd %s1503, %s1511
          %s1513 = smul.addr %s33, 128
          %s1514 = scalar_lea.hbm %s11, %s1513
          %s1516 = sshll.u32 %s1506, 4
          %s1517 = int_to_ptr.vmem [resolvable:$true] %s1516
          %1519 = dma.vmem_to_hbm [thread:$0]  %s1517, 128, %s1514, %s1503
        $region112: #{tpu_custom_call.1} parent=63 // pred_fallthru
          _
      $region64: #{tpu_custom_call.1} parent=5 // pred_fallthru
        _
      %p1520 = scmp.le.s32.totalorder 2, %s28
      // Predicated region
      $region113: #{tpu_custom_call.1} parent=5 // pred_check
        %p1521 = pneg %p1520
      $region114: #{tpu_custom_call.1} parent=5 // pred_check_branch
        %1523 = sbr.rel (%p1521) target = $region116
      $region115: #{tpu_custom_call.1} parent=5 // pred_region
        %s1524 = ssub.s32 %s28, 2
        // Predicated region
        $region117: #{tpu_custom_call.1} parent=115 // pred_check
          %p1525 = pneg %p293
        $region118: #{tpu_custom_call.1} parent=115 // pred_check_branch
          %1527 = sbr.rel (%p1525) target = $region120
        $region119: #{tpu_custom_call.1} parent=115 // pred_region
          %s1528 = sand.u32 %s278, 1
          %s1529 = scalar_lea.sflag [#allocation4], %s1528
          %s1530 = sand.u32 %s278, 1
          %s1531 = smul.addr %s1530, 8
          %s1532 = scalar_lea.vmem [#allocation20], %s1531
          %1533 = dma.done %s1529, 128
        $region120: #{tpu_custom_call.1} parent=115 // pred_fallthru
          _
      $region116: #{tpu_custom_call.1} parent=5 // pred_fallthru
        _
    $region6: #{tpu_custom_call.1} parent=1 // loop_footer
      %s32 = sadd.s32 1, %s28
    $region7: #{tpu_custom_call.1} parent=1 // loop_footer_branch
      %27 = sbr.rel target = $region3
    $region8: #{tpu_custom_call.1} parent=1 // loop_exit
      _
    %1534 = vsyncpa [#allocation3], 1
    %s1535 = scalar_lea.sflag [#allocation3], 1
    %1536 = vsyncpa %s1535, 1
    %1537 = vsyncpa [#allocation6], 1
    %1538 = vsyncpa [#allocation9], 1
    %1539 = vsyncpa [#allocation12], 1
    %1540 = vsyncpa [#allocation15], 1
    %1541 = vsyncpa [#allocation18], 1
    %1542 = vsyncpa [#allocation4], 1
    %s1543 = scalar_lea.sflag [#allocation4], 1
    %1544 = vsyncpa %s1543, 1

// kernel: tpu_custom_call.1
$region0: #{tpu_custom_call.1}
  #allocation0 [shape = 'u32[]', space=smem, size = 0x4, offset = 0x4, fixed_abs, tag = 'smem constant byte address 0x4 - core index']
  #allocation1 [shape = 'u32[144,128]{1,0:T(1,128)}', space=vmem, size = 0x12000, scoped, tag = 'internal scratch']
  %s0 = inlined_call_operand.hbm [shape: f32[2,8,32], index: 0, kind: input, shape index: {}]
  %s1 = inlined_call_operand.hbm [shape: bf16[32,96], index: 1, kind: input, shape index: {}]
  %s2 = inlined_call_operand.hbm [shape: f32[1,96], index: 2, kind: input, shape index: {}]
  %s3 = inlined_call_operand.hbm [shape: bf16[4,8,32], index: 3, kind: input, shape index: {}]
  %s4 = inlined_call_operand.hbm [shape: f32[1,32], index: 4, kind: input, shape index: {}]
  %s5 = inlined_call_operand.hbm [shape: bf16[32,64], index: 5, kind: input, shape index: {}]
  %s6 = inlined_call_operand.hbm [shape: f32[1,64], index: 6, kind: input, shape index: {}]
  %s7 = inlined_call_operand.hbm [shape: bf16[32,64], index: 7, kind: input, shape index: {}]
  %s8 = inlined_call_operand.hbm [shape: f32[1,64], index: 8, kind: input, shape index: {}]
  %s9 = inlined_call_operand.hbm [shape: bf16[64,32], index: 9, kind: input, shape index: {}]
  %s10 = inlined_call_operand.hbm [shape: f32[1,32], index: 10, kind: input, shape index: {}]
  %s11 = inlined_call_operand.hbm [shape: f32[2,8,32], index: 11, kind: output, shape index: {}]
  %s12 = sld [smem:[#allocation0]]
  $region121: #{tpu_custom_call.1} parent=0
    _
  %s14 = ssub.s32 1, %s12
  %s15 = scalar_select 0, %s14, %s12
  $region1: #{tpu_custom_call.1} parent=0
    #allocation2 [shape = 'u8[8192]{0}', space=vmem, size = 0x2000, scoped, tag = 'input window, operand 0']
    #allocation3 [shape = 's32[2]{0}', space=sflag, size = 0x8, scoped, tag = 'scoped memory for tpu_custom_call.1']
    #allocation4 [shape = 's32[2]{0}', space=sflag, size = 0x8, scoped, tag = 'scoped memory for tpu_custom_call.1']
    #allocation5 [shape = 'u8[8192]{0}', space=vmem, size = 0x2000, scoped, tag = 'input window, operand 1, single buffered']
    #allocation6 [shape = 's32[1]{0}', space=sflag, size = 0x4, scoped, tag = 'scoped memory for tpu_custom_call.1']
    #allocation7 [shape = 'u8[512]{0}', space=vmem, size = 0x400, scoped, tag = 'input window, operand 2, single buffered']
    #allocation8 [shape = 'u8[8192]{0}', space=vmem, size = 0x2000, scoped, tag = 'input window, operand 3, single buffered']
    #allocation9 [shape = 's32[1]{0}', space=sflag, size = 0x4, scoped, tag = 'scoped memory for tpu_custom_call.1']
    #allocation10 [shape = 'u8[512]{0}', space=vmem, size = 0x400, scoped, tag = 'input window, operand 4, single buffered']
    #allocation11 [shape = 'u8[8192]{0}', space=vmem, size = 0x2000, scoped, tag = 'input window, operand 5, single buffered']
    #allocation12 [shape = 's32[1]{0}', space=sflag, size = 0x4, scoped, tag = 'scoped memory for tpu_custom_call.1']
    #allocation13 [shape = 'u8[512]{0}', space=vmem, size = 0x400, scoped, tag = 'input window, operand 6, single buffered']
    #allocation14 [shape = 'u8[8192]{0}', space=vmem, size = 0x2000, scoped, tag = 'input window, operand 7, single buffered']
    #allocation15 [shape = 's32[1]{0}', space=sflag, size = 0x4, scoped, tag = 'scoped memory for tpu_custom_call.1']
    #allocation16 [shape = 'u8[512]{0}', space=vmem, size = 0x400, scoped, tag = 'input window, operand 8, single buffered']
    #allocation17 [shape = 'u8[16384]{0}', space=vmem, size = 0x4000, scoped, tag = 'input window, operand 9, single buffered']
    #allocation18 [shape = 's32[1]{0}', space=sflag, size = 0x4, scoped, tag = 'scoped memory for tpu_custom_call.1']
    #allocation19 [shape = 'u8[512]{0}', space=vmem, size = 0x400, scoped, tag = 'input window, operand 10, single buffered']
    #allocation20 [shape = 'u8[8192]{0}', space=vmem, size = 0x2000, scoped, tag = 'output window, operand 0']
    %16 = vsyncpa [#allocation3], 0
    %s17 = scalar_lea.sflag [#allocation3], 1
    %18 = vsyncpa %s17, 0
    %19 = vsyncpa [#allocation6], 0
    %20 = vsyncpa [#allocation9], 0
    %21 = vsyncpa [#allocation12], 0
    %22 = vsyncpa [#allocation15], 0
    %23 = vsyncpa [#allocation18], 0
    %24 = vsyncpa [#allocation4], 0
    %s25 = scalar_lea.sflag [#allocation4], 1
    %26 = vsyncpa %s25, 0
    loop: start=0, step=1, limit=4
    $region2: #{tpu_custom_call.1} parent=1 // loop_pre_header
      _
    $region3: #{tpu_custom_call.1} parent=1 // loop_header
      %s28 = sphi 0, %s32
      %p29 = scmp.ge.s32.totalorder %s28, 4
      %s38 = sphi 0, %s40
      %s41 = sphi 0, %s38
      %s42 = sphi 0, %s41
      %s58 = sphi 0, %s42
      %s62 = sphi 0, %s62
      %s64 = sphi 0, %s62
      %s65 = sphi 0, %s64
      %s79 = sphi 0, %s65
      %s83 = sphi 0, %s83
      %s85 = sphi 0, %s83
      %s86 = sphi 0, %s85
      %s100 = sphi 0, %s86
      %s104 = sphi 0, %s104
      %s106 = sphi 0, %s104
      %s107 = sphi 0, %s106
      %s121 = sphi 0, %s107
      %s125 = sphi 0, %s125
      %s127 = sphi 0, %s125
      %s128 = sphi 0, %s127
      %s142 = sphi 0, %s128
      %s146 = sphi 0, %s146
      %s148 = sphi 0, %s146
      %s149 = sphi 0, %s148
      %s163 = sphi 0, %s149
      %s167 = sphi 0, %s167
      %s169 = sphi 0, %s167
      %s170 = sphi 0, %s169
      %s184 = sphi 0, %s170
      %s188 = sphi 0, %s188
      %s190 = sphi 0, %s188
      %s191 = sphi 0, %s190
      %s205 = sphi 0, %s191
      %s209 = sphi 0, %s209
      %s211 = sphi 0, %s209
      %s212 = sphi 0, %s211
      %s226 = sphi 0, %s212
      %s230 = sphi 0, %s230
      %s232 = sphi 0, %s230
      %s233 = sphi 0, %s232
      %s247 = sphi 0, %s233
      %s251 = sphi 0, %s251
      %s253 = sphi 0, %s251
      %s254 = sphi 0, %s253
      %s268 = sphi 0, %s254
      %s274 = sphi 0, %s276
      %s277 = sphi 0, %s274
      %s278 = sphi 0, %s277
      %s294 = sphi 0, %s278
    $region4: #{tpu_custom_call.1} parent=1 // loop_header_branch
      %31 = sbr.rel (%p29) target = $region8
    $region5: #{tpu_custom_call.1} parent=1 // loop_body
      %s33 = ssub.s32 %s28, 1
      %s34 = ssub.s32 %s28, 2
      %s35 = sadd.s32 %s28, 1
      %s36 = ssub.s32 %s28, %s35
      %p37 = scmp.eq.s32.totalorder %s36, 0
      %s39 = sadd.s32 %s38, 1
      %s40 = scalar_select %p37, %s38, %s39
      %p43 = pneg %p37
      %p44 = scmp.eq.s32.totalorder %s28, 1
      %p45 = por %p43, %p44
      %p46 = scmp.ne.s32.totalorder %s38, %s41
      %p47 = scmp.eq.s32.totalorder %s28, 0
      %p48 = por %p46, %p47
      %p49 = scmp.ne.s32.totalorder %s38, %s41
      %p50 = scmp.eq.s32.totalorder %s33, 1
      %p51 = por %p49, %p50
      %p52 = scmp.ne.s32.totalorder %s41, %s42
      %p53 = scmp.eq.s32.totalorder %s33, 0
      %p54 = por %p52, %p53
      %p55 = scmp.ne.s32.totalorder %s41, %s42
      %p56 = scmp.eq.s32.totalorder %s34, 1
      %p57 = por %p55, %p56
      %p59 = scmp.ne.s32.totalorder %s42, %s58
      %p60 = scmp.eq.s32.totalorder %s34, 0
      %p61 = por %p59, %p60
      %s63 = sadd.s32 %s62, 1
      %p66 = scmp.eq.s32.totalorder %s28, 1
      %p67 = scmp.ne.s32.totalorder %s62, %s64
      %p68 = scmp.eq.s32.totalorder %s28, 0
      %p69 = por %p67, %p68
      %p70 = scmp.ne.s32.totalorder %s62, %s64
      %p71 = scmp.eq.s32.totalorder %s33, 1
      %p72 = por %p70, %p71
      %p73 = scmp.ne.s32.totalorder %s64, %s65
      %p74 = scmp.eq.s32.totalorder %s33, 0
      %p75 = por %p73, %p74
      %p76 = scmp.ne.s32.totalorder %s64, %s65
      %p77 = scmp.eq.s32.totalorder %s34, 1
      %p78 = por %p76, %p77
      %p80 = scmp.ne.s32.totalorder %s65, %s79
      %p81 = scmp.eq.s32.totalorder %s34, 0
      %p82 = por %p80, %p81
      %s84 = sadd.s32 %s83, 1
      %p87 = scmp.eq.s32.totalorder %s28, 1
      %p88 = scmp.ne.s32.totalorder %s83, %s85
      %p89 = scmp.eq.s32.totalorder %s28, 0
      %p90 = por %p88, %p89
      %p91 = scmp.ne.s32.totalorder %s83, %s85
      %p92 = scmp.eq.s32.totalorder %s33, 1
      %p93 = por %p91, %p92
      %p94 = scmp.ne.s32.totalorder %s85, %s86
      %p95 = scmp.eq.s32.totalorder %s33, 0
      %p96 = por %p94, %p95
      %p97 = scmp.ne.s32.totalorder %s85, %s86
      %p98 = scmp.eq.s32.totalorder %s34, 1
      %p99 = por %p97, %p98
      %p101 = scmp.ne.s32.totalorder %s86, %s100
      %p102 = scmp.eq.s32.totalorder %s34, 0
      %p103 = por %p101, %p102
      %s105 = sadd.s32 %s104, 1
      %p108 = scmp.eq.s32.totalorder %s28, 1
      %p109 = scmp.ne.s32.totalorder %s104, %s106
      %p110 = scmp.eq.s32.totalorder %s28, 0
      %p111 = por %p109, %p110
      %p112 = scmp.ne.s32.totalorder %s104, %s106
      %p113 = scmp.eq.s32.totalorder %s33, 1
      %p114 = por %p112, %p113
      %p115 = scmp.ne.s32.totalorder %s106, %s107
      %p116 = scmp.eq.s32.totalorder %s33, 0
      %p117 = por %p115, %p116
      %p118 = scmp.ne.s32.totalorder %s106, %s107
      %p119 = scmp.eq.s32.totalorder %s34, 1
      %p120 = por %p118, %p119
      %p122 = scmp.ne.s32.totalorder %s107, %s121
      %p123 = scmp.eq.s32.totalorder %s34, 0
      %p124 = por %p122, %p123
      %s126 = sadd.s32 %s125, 1
      %p129 = scmp.eq.s32.totalorder %s28, 1
      %p130 = scmp.ne.s32.totalorder %s125, %s127
      %p131 = scmp.eq.s32.totalorder %s28, 0
      %p132 = por %p130, %p131
      %p133 = scmp.ne.s32.totalorder %s125, %s127
      %p134 = scmp.eq.s32.totalorder %s33, 1
      %p135 = por %p133, %p134
      %p136 = scmp.ne.s32.totalorder %s127, %s128
      %p137 = scmp.eq.s32.totalorder %s33, 0
      %p138 = por %p136, %p137
      %p139 = scmp.ne.s32.totalorder %s127, %s128
      %p140 = scmp.eq.s32.totalorder %s34, 1
      %p141 = por %p139, %p140
      %p143 = scmp.ne.s32.totalorder %s128, %s142
      %p144 = scmp.eq.s32.totalorder %s34, 0
      %p145 = por %p143, %p144
      %s147 = sadd.s32 %s146, 1
      %p150 = scmp.eq.s32.totalorder %s28, 1
      %p151 = scmp.ne.s32.totalorder %s146, %s148
      %p152 = scmp.eq.s32.totalorder %s28, 0
      %p153 = por %p151, %p152
      %p154 = scmp.ne.s32.totalorder %s146, %s148
      %p155 = scmp.eq.s32.totalorder %s33, 1
      %p156 = por %p154, %p155
      %p157 = scmp.ne.s32.totalorder %s148, %s149
      %p158 = scmp.eq.s32.totalorder %s33, 0
      %p159 = por %p157, %p158
      %p160 = scmp.ne.s32.totalorder %s148, %s149
      %p161 = scmp.eq.s32.totalorder %s34, 1
      %p162 = por %p160, %p161
      %p164 = scmp.ne.s32.totalorder %s149, %s163
      %p165 = scmp.eq.s32.totalorder %s34, 0
      %p166 = por %p164, %p165
      %s168 = sadd.s32 %s167, 1
      %p171 = scmp.eq.s32.totalorder %s28, 1
      %p172 = scmp.ne.s32.totalorder %s167, %s169
      %p173 = scmp.eq.s32.totalorder %s28, 0
      %p174 = por %p172, %p173
      %p175 = scmp.ne.s32.totalorder %s167, %s169
      %p176 = scmp.eq.s32.totalorder %s33, 1
      %p177 = por %p175, %p176
      %p178 = scmp.ne.s32.totalorder %s169, %s170
      %p179 = scmp.eq.s32.totalorder %s33, 0
      %p180 = por %p178, %p179
      %p181 = scmp.ne.s32.totalorder %s169, %s170
      %p182 = scmp.eq.s32.totalorder %s34, 1
      %p183 = por %p181, %p182
      %p185 = scmp.ne.s32.totalorder %s170, %s184
      %p186 = scmp.eq.s32.totalorder %s34, 0
      %p187 = por %p185, %p186
      %s189 = sadd.s32 %s188, 1
      %p192 = scmp.eq.s32.totalorder %s28, 1
      %p193 = scmp.ne.s32.totalorder %s188, %s190
      %p194 = scmp.eq.s32.totalorder %s28, 0
      %p195 = por %p193, %p194
      %p196 = scmp.ne.s32.totalorder %s188, %s190
      %p197 = scmp.eq.s32.totalorder %s33, 1
      %p198 = por %p196, %p197
      %p199 = scmp.ne.s32.totalorder %s190, %s191
      %p200 = scmp.eq.s32.totalorder %s33, 0
      %p201 = por %p199, %p200
      %p202 = scmp.ne.s32.totalorder %s190, %s191
      %p203 = scmp.eq.s32.totalorder %s34, 1
      %p204 = por %p202, %p203
      %p206 = scmp.ne.s32.totalorder %s191, %s205
      %p207 = scmp.eq.s32.totalorder %s34, 0
      %p208 = por %p206, %p207
      %s210 = sadd.s32 %s209, 1
      %p213 = scmp.eq.s32.totalorder %s28, 1
      %p214 = scmp.ne.s32.totalorder %s209, %s211
      %p215 = scmp.eq.s32.totalorder %s28, 0
      %p216 = por %p214, %p215
      %p217 = scmp.ne.s32.totalorder %s209, %s211
      %p218 = scmp.eq.s32.totalorder %s33, 1
      %p219 = por %p217, %p218
      %p220 = scmp.ne.s32.totalorder %s211, %s212
      %p221 = scmp.eq.s32.totalorder %s33, 0
      %p222 = por %p220, %p221
      %p223 = scmp.ne.s32.totalorder %s211, %s212
      %p224 = scmp.eq.s32.totalorder %s34, 1
      %p225 = por %p223, %p224
      %p227 = scmp.ne.s32.totalorder %s212, %s226
      %p228 = scmp.eq.s32.totalorder %s34, 0
      %p229 = por %p227, %p228
      %s231 = sadd.s32 %s230, 1
      %p234 = scmp.eq.s32.totalorder %s28, 1
      %p235 = scmp.ne.s32.totalorder %s230, %s232
      %p236 = scmp.eq.s32.totalorder %s28, 0
      %p237 = por %p235, %p236
      %p238 = scmp.ne.s32.totalorder %s230, %s232
      %p239 = scmp.eq.s32.totalorder %s33, 1
      %p240 = por %p238, %p239
      %p241 = scmp.ne.s32.totalorder %s232, %s233
      %p242 = scmp.eq.s32.totalorder %s33, 0
      %p243 = por %p241, %p242
      %p244 = scmp.ne.s32.totalorder %s232, %s233
      %p245 = scmp.eq.s32.totalorder %s34, 1
      %p246 = por %p244, %p245
      %p248 = scmp.ne.s32.totalorder %s233, %s247
      %p249 = scmp.eq.s32.totalorder %s34, 0
      %p250 = por %p248, %p249
      %s252 = sadd.s32 %s251, 1
      %p255 = scmp.eq.s32.totalorder %s28, 1
      %p256 = scmp.ne.s32.totalorder %s251, %s253
      %p257 = scmp.eq.s32.totalorder %s28, 0
      %p258 = por %p256, %p257
      %p259 = scmp.ne.s32.totalorder %s251, %s253
      %p260 = scmp.eq.s32.totalorder %s33, 1
      %p261 = por %p259, %p260
      %p262 = scmp.ne.s32.totalorder %s253, %s254
      %p263 = scmp.eq.s32.totalorder %s33, 0
      %p264 = por %p262, %p263
      %p265 = scmp.ne.s32.totalorder %s253, %s254
      %p266 = scmp.eq.s32.totalorder %s34, 1
      %p267 = por %p265, %p266
      %p269 = scmp.ne.s32.totalorder %s254, %s268
      %p270 = scmp.eq.s32.totalorder %s34, 0
      %p271 = por %p269, %p270
      %s272 = ssub.s32 %s28, %s35
      %p273 = scmp.eq.s32.totalorder %s272, 0
      %s275 = sadd.s32 %s274, 1
      %s276 = scalar_select %p273, %s274, %s275
      %p279 = pneg %p273
      %p280 = scmp.eq.s32.totalorder %s28, 1
      %p281 = por %p279, %p280
      %p282 = scmp.ne.s32.totalorder %s274, %s277
      %p283 = scmp.eq.s32.totalorder %s28, 0
      %p284 = por %p282, %p283
      %p285 = scmp.ne.s32.totalorder %s274, %s277
      %p286 = scmp.eq.s32.totalorder %s33, 1
      %p287 = por %p285, %p286
      %p288 = scmp.ne.s32.totalorder %s277, %s278
      %p289 = scmp.eq.s32.totalorder %s33, 0
      %p290 = por %p288, %p289
      %p291 = scmp.ne.s32.totalorder %s277, %s278
      %p292 = scmp.eq.s32.totalorder %s34, 1
      %p293 = por %p291, %p292
      %p295 = scmp.ne.s32.totalorder %s278, %s294
      %p296 = scmp.eq.s32.totalorder %s34, 0
      %p297 = por %p295, %p296
      %p298 = scmp.le.s32.totalorder 1, %s28
      %p299 = scmp.lt.s32.totalorder %s28, 3
      %p300 = pnand %p298, %p299
      %p301 = pneg %p300
      // Predicated region
      $region9: #{tpu_custom_call.1} parent=5 // pred_check
        _
      $region10: #{tpu_custom_call.1} parent=5 // pred_check_branch
        %303 = sbr.rel (%p300) target = $region12
      $region11: #{tpu_custom_call.1} parent=5 // pred_region
        %s304 = ssub.s32 %s28, 1
        // Predicated region
        $region13: #{tpu_custom_call.1} parent=11 // pred_check
          %p305 = pneg %p75
        $region14: #{tpu_custom_call.1} parent=11 // pred_check_branch
          %307 = sbr.rel (%p305) target = $region16
        $region15: #{tpu_custom_call.1} parent=11 // pred_region
          %s309 = ssub.s32 256, 256
          %310 = vsyncadd [#allocation6], %s309
          %s311 = sshll.u32 [#allocation5], 4
          %s312 = int_to_ptr.vmem [resolvable:$true] %s311
          %317 = dma.hbm_to_vmem [thread:$0]  %s1, 256, %s312, [#allocation6], 64, 64, 4
        $region16: #{tpu_custom_call.1} parent=11 // pred_fallthru
          _
        // Predicated region
        $region17: #{tpu_custom_call.1} parent=11 // pred_check
          %p318 = pneg %p96
        $region18: #{tpu_custom_call.1} parent=11 // pred_check_branch
          %320 = sbr.rel (%p318) target = $region20
        $region19: #{tpu_custom_call.1} parent=11 // pred_region
          %s322 = ssub.s32 16, 16
          %323 = vsyncadd [#allocation6], %s322
          %s325 = sshll.u32 [#allocation7], 4
          %s326 = int_to_ptr.vmem [resolvable:$true] %s325
          %328 = dma.hbm_to_vmem [thread:$0]  %s2, 16, %s326, [#allocation6]
        $region20: #{tpu_custom_call.1} parent=11 // pred_fallthru
          _
        // Predicated region
        $region21: #{tpu_custom_call.1} parent=11 // pred_check
          %p329 = pneg %p117
        $region22: #{tpu_custom_call.1} parent=11 // pred_check_branch
          %331 = sbr.rel (%p329) target = $region24
        $region23: #{tpu_custom_call.1} parent=11 // pred_region
          %s333 = ssub.s32 256, 256
          %334 = vsyncadd [#allocation9], %s333
          %s335 = sshll.u32 [#allocation8], 4
          %s336 = int_to_ptr.vmem [resolvable:$true] %s335
          %341 = dma.hbm_to_vmem [thread:$0]  %s3, 256, %s336, [#allocation9], 64, 64, 4
        $region24: #{tpu_custom_call.1} parent=11 // pred_fallthru
          _
        // Predicated region
        $region25: #{tpu_custom_call.1} parent=11 // pred_check
          %p342 = pneg %p138
        $region26: #{tpu_custom_call.1} parent=11 // pred_check_branch
          %344 = sbr.rel (%p342) target = $region28
        $region27: #{tpu_custom_call.1} parent=11 // pred_region
          %s346 = ssub.s32 16, 16
          %347 = vsyncadd [#allocation9], %s346
          %s349 = sshll.u32 [#allocation10], 4
          %s350 = int_to_ptr.vmem [resolvable:$true] %s349
          %352 = dma.hbm_to_vmem [thread:$0]  %s4, 16, %s350, [#allocation9]
        $region28: #{tpu_custom_call.1} parent=11 // pred_fallthru
          _
        // Predicated region
        $region29: #{tpu_custom_call.1} parent=11 // pred_check
          %p353 = pneg %p159
        $region30: #{tpu_custom_call.1} parent=11 // pred_check_branch
          %355 = sbr.rel (%p353) target = $region32
        $region31: #{tpu_custom_call.1} parent=11 // pred_region
          %s357 = ssub.s32 256, 256
          %358 = vsyncadd [#allocation12], %s357
          %s359 = sshll.u32 [#allocation11], 4
          %s360 = int_to_ptr.vmem [resolvable:$true] %s359
          %365 = dma.hbm_to_vmem [thread:$0]  %s5, 256, %s360, [#allocation12], 64, 64, 4
        $region32: #{tpu_custom_call.1} parent=11 // pred_fallthru
          _
        // Predicated region
        $region33: #{tpu_custom_call.1} parent=11 // pred_check
          %p366 = pneg %p180
        $region34: #{tpu_custom_call.1} parent=11 // pred_check_branch
          %368 = sbr.rel (%p366) target = $region36
        $region35: #{tpu_custom_call.1} parent=11 // pred_region
          %s370 = ssub.s32 16, 16
          %371 = vsyncadd [#allocation12], %s370
          %s373 = sshll.u32 [#allocation13], 4
          %s374 = int_to_ptr.vmem [resolvable:$true] %s373
          %376 = dma.hbm_to_vmem [thread:$0]  %s6, 16, %s374, [#allocation12]
        $region36: #{tpu_custom_call.1} parent=11 // pred_fallthru
          _
        // Predicated region
        $region37: #{tpu_custom_call.1} parent=11 // pred_check
          %p377 = pneg %p201
        $region38: #{tpu_custom_call.1} parent=11 // pred_check_branch
          %379 = sbr.rel (%p377) target = $region40
        $region39: #{tpu_custom_call.1} parent=11 // pred_region
          %s381 = ssub.s32 256, 256
          %382 = vsyncadd [#allocation15], %s381
          %s383 = sshll.u32 [#allocation14], 4
          %s384 = int_to_ptr.vmem [resolvable:$true] %s383
          %389 = dma.hbm_to_vmem [thread:$0]  %s7, 256, %s384, [#allocation15], 64, 64, 4
        $region40: #{tpu_custom_call.1} parent=11 // pred_fallthru
          _
        // Predicated region
        $region41: #{tpu_custom_call.1} parent=11 // pred_check
          %p390 = pneg %p222
        $region42: #{tpu_custom_call.1} parent=11 // pred_check_branch
          %392 = sbr.rel (%p390) target = $region44
        $region43: #{tpu_custom_call.1} parent=11 // pred_region
          %s394 = ssub.s32 16, 16
          %395 = vsyncadd [#allocation15], %s394
          %s397 = sshll.u32 [#allocation16], 4
          %s398 = int_to_ptr.vmem [resolvable:$true] %s397
          %400 = dma.hbm_to_vmem [thread:$0]  %s8, 16, %s398, [#allocation15]
        $region44: #{tpu_custom_call.1} parent=11 // pred_fallthru
          _
        // Predicated region
        $region45: #{tpu_custom_call.1} parent=11 // pred_check
          %p401 = pneg %p243
        $region46: #{tpu_custom_call.1} parent=11 // pred_check_branch
          %403 = sbr.rel (%p401) target = $region48
        $region47: #{tpu_custom_call.1} parent=11 // pred_region
          %s405 = ssub.s32 512, 512
          %406 = vsyncadd [#allocation18], %s405
          %s407 = sshll.u32 [#allocation17], 4
          %s408 = int_to_ptr.vmem [resolvable:$true] %s407
          %413 = dma.hbm_to_vmem [thread:$0]  %s9, 512, %s408, [#allocation18], 64, 64, 4
        $region48: #{tpu_custom_call.1} parent=11 // pred_fallthru
          _
        // Predicated region
        $region49: #{tpu_custom_call.1} parent=11 // pred_check
          %p414 = pneg %p264
        $region50: #{tpu_custom_call.1} parent=11 // pred_check_branch
          %416 = sbr.rel (%p414) target = $region52
        $region51: #{tpu_custom_call.1} parent=11 // pred_region
          %s418 = ssub.s32 16, 16
          %419 = vsyncadd [#allocation18], %s418
          %s421 = sshll.u32 [#allocation19], 4
          %s422 = int_to_ptr.vmem [resolvable:$true] %s421
          %424 = dma.hbm_to_vmem [thread:$0]  %s10, 16, %s422, [#allocation18]
        $region52: #{tpu_custom_call.1} parent=11 // pred_fallthru
          _
      $region12: #{tpu_custom_call.1} parent=5 // pred_fallthru
        _
      %p425 = scmp.lt.s32.totalorder %s28, 2
      // Predicated region
      $region53: #{tpu_custom_call.1} parent=5 // pred_check
        %p426 = pneg %p425
      $region54: #{tpu_custom_call.1} parent=5 // pred_check_branch
        %428 = sbr.rel (%p426) target = $region56
      $region55: #{tpu_custom_call.1} parent=5 // pred_region
        // Predicated region
        $region57: #{tpu_custom_call.1} parent=55 // pred_check
          %p429 = pneg %p48
        $region58: #{tpu_custom_call.1} parent=55 // pred_check_branch
          %431 = sbr.rel (%p429) target = $region60
        $region59: #{tpu_custom_call.1} parent=55 // pred_region
          %s432 = sand.u32 %s38, 1
          %s433 = scalar_lea.sflag [#allocation3], %s432
          %s434 = sand.u32 %s38, 1
          %s435 = smul.addr %s434, 8
          %s436 = scalar_lea.vmem [#allocation2], %s435
          %s438 = ssub.s32 128, 128
          %439 = vsyncadd %s433, %s438
          %s440 = smul.addr %s28, 128
          %s441 = scalar_lea.hbm %s0, %s440
          %s443 = sshll.u32 %s436, 4
          %s444 = int_to_ptr.vmem [resolvable:$true] %s443
          %446 = dma.hbm_to_vmem [thread:$0]  %s441, 128, %s444, %s433
        $region60: #{tpu_custom_call.1} parent=55 // pred_fallthru
          _
      $region56: #{tpu_custom_call.1} parent=5 // pred_fallthru
        _
      %p447 = scmp.le.s32.totalorder 1, %s28
      %p448 = scmp.lt.s32.totalorder %s28, 3
      %p449 = pnand %p447, %p448
      %p450 = pneg %p449
      // Predicated region
      $region61: #{tpu_custom_call.1} parent=5 // pred_check
        _
      $region62: #{tpu_custom_call.1} parent=5 // pred_check_branch
        %452 = sbr.rel (%p449) target = $region64
      $region63: #{tpu_custom_call.1} parent=5 // pred_region
        %s453 = ssub.s32 %s28, 1
        %s454 = sand.u32 %s41, 1
        %s455 = scalar_lea.sflag [#allocation3], %s454
        %s456 = sand.u32 %s41, 1
        %s457 = smul.addr %s456, 8
        %s458 = scalar_lea.vmem [#allocation2], %s457
        // Predicated region
        $region65: #{tpu_custom_call.1} parent=63 // pred_check
          %p459 = pneg %p54
        $region66: #{tpu_custom_call.1} parent=63 // pred_check_branch
          %461 = sbr.rel (%p459) target = $region68
        $region67: #{tpu_custom_call.1} parent=63 // pred_region
          %462 = dma.done %s455, 128
        $region68: #{tpu_custom_call.1} parent=63 // pred_fallthru
          _
        // Predicated region
        $region69: #{tpu_custom_call.1} parent=63 // pred_check
          %p463 = pneg %p75
        $region70: #{tpu_custom_call.1} parent=63 // pred_check_branch
          %465 = sbr.rel (%p463) target = $region72
        $region71: #{tpu_custom_call.1} parent=63 // pred_region
          %466 = dma.done [#allocation6], 256
        $region72: #{tpu_custom_call.1} parent=63 // pred_fallthru
          _
        // Predicated region
        $region73: #{tpu_custom_call.1} parent=63 // pred_check
          %p467 = pneg %p96
        $region74: #{tpu_custom_call.1} parent=63 // pred_check_branch
          %469 = sbr.rel (%p467) target = $region76
        $region75: #{tpu_custom_call.1} parent=63 // pred_region
          %470 = dma.done [#allocation6], 16
        $region76: #{tpu_custom_call.1} parent=63 // pred_fallthru
          _
        // Predicated region
        $region77: #{tpu_custom_call.1} parent=63 // pred_check
          %p471 = pneg %p117
        $region78: #{tpu_custom_call.1} parent=63 // pred_check_branch
          %473 = sbr.rel (%p471) target = $region80
        $region79: #{tpu_custom_call.1} parent=63 // pred_region
          %474 = dma.done [#allocation9], 256
        $region80: #{tpu_custom_call.1} parent=63 // pred_fallthru
          _
        // Predicated region
        $region81: #{tpu_custom_call.1} parent=63 // pred_check
          %p475 = pneg %p138
        $region82: #{tpu_custom_call.1} parent=63 // pred_check_branch
          %477 = sbr.rel (%p475) target = $region84
        $region83: #{tpu_custom_call.1} parent=63 // pred_region
          %478 = dma.done [#allocation9], 16
        $region84: #{tpu_custom_call.1} parent=63 // pred_fallthru
          _
        // Predicated region
        $region85: #{tpu_custom_call.1} parent=63 // pred_check
          %p479 = pneg %p159
        $region86: #{tpu_custom_call.1} parent=63 // pred_check_branch
          %481 = sbr.rel (%p479) target = $region88
        $region87: #{tpu_custom_call.1} parent=63 // pred_region
          %482 = dma.done [#allocation12], 256
        $region88: #{tpu_custom_call.1} parent=63 // pred_fallthru
          _
        // Predicated region
        $region89: #{tpu_custom_call.1} parent=63 // pred_check
          %p483 = pneg %p180
        $region90: #{tpu_custom_call.1} parent=63 // pred_check_branch
          %485 = sbr.rel (%p483) target = $region92
        $region91: #{tpu_custom_call.1} parent=63 // pred_region
          %486 = dma.done [#allocation12], 16
        $region92: #{tpu_custom_call.1} parent=63 // pred_fallthru
          _
        // Predicated region
        $region93: #{tpu_custom_call.1} parent=63 // pred_check
          %p487 = pneg %p201
        $region94: #{tpu_custom_call.1} parent=63 // pred_check_branch
          %489 = sbr.rel (%p487) target = $region96
        $region95: #{tpu_custom_call.1} parent=63 // pred_region
          %490 = dma.done [#allocation15], 256
        $region96: #{tpu_custom_call.1} parent=63 // pred_fallthru
          _
        // Predicated region
        $region97: #{tpu_custom_call.1} parent=63 // pred_check
          %p491 = pneg %p222
        $region98: #{tpu_custom_call.1} parent=63 // pred_check_branch
          %493 = sbr.rel (%p491) target = $region100
        $region99: #{tpu_custom_call.1} parent=63 // pred_region
          %494 = dma.done [#allocation15], 16
        $region100: #{tpu_custom_call.1} parent=63 // pred_fallthru
          _
        // Predicated region
        $region101: #{tpu_custom_call.1} parent=63 // pred_check
          %p495 = pneg %p243
        $region102: #{tpu_custom_call.1} parent=63 // pred_check_branch
          %497 = sbr.rel (%p495) target = $region104
        $region103: #{tpu_custom_call.1} parent=63 // pred_region
          %498 = dma.done [#allocation18], 512
        $region104: #{tpu_custom_call.1} parent=63 // pred_fallthru
          _
        // Predicated region
        $region105: #{tpu_custom_call.1} parent=63 // pred_check
          %p499 = pneg %p264
        $region106: #{tpu_custom_call.1} parent=63 // pred_check_branch
          %501 = sbr.rel (%p499) target = $region108
        $region107: #{tpu_custom_call.1} parent=63 // pred_region
          %502 = dma.done [#allocation18], 16
        $region108: #{tpu_custom_call.1} parent=63 // pred_fallthru
          _
        %s503 = sand.u32 %s41, 1
        %s504 = scalar_lea.sflag [#allocation3], %s503
        %s505 = sand.u32 %s41, 1
        %s506 = smul.addr %s505, 8
        %s507 = scalar_lea.vmem [#allocation2], %s506
        %p508 = pneg %p54
        %p509 = pneg %p51
        %p510 = pneg %p75
        %p511 = pneg %p72
        %p512 = pneg %p96
        %p513 = pneg %p93
        %p514 = pneg %p117
        %p515 = pneg %p114
        %p516 = pneg %p138
        %p517 = pneg %p135
        %p518 = pneg %p159
        %p519 = pneg %p156
        %p520 = pneg %p180
        %p521 = pneg %p177
        %p522 = pneg %p201
        %p523 = pneg %p198
        %p524 = pneg %p222
        %p525 = pneg %p219
        %p526 = pneg %p243
        %p527 = pneg %p240
        %p528 = pneg %p264
        %p529 = pneg %p261
        %p530 = pneg %p290
        %p531 = pneg %p287
        %s532 = sand.u32 %s277, 1
        %s533 = scalar_lea.sflag [#allocation4], %s532
        %s534 = sand.u32 %s277, 1
        %s535 = smul.addr %s534, 8
        %s536 = scalar_lea.vmem [#allocation20], %s535
        %v538 = vld [vmem:[%s458] sm:$0xff]
        %v539 = vmul.f32 %v538, %v538
        %vm540 = vcmask 261120
        %v541 = vsel %vm540, %v539, 0.0
        %542 = vadd.xlane.f32.xlu0 %v541
        %v543 = vpop.xlane.xlu0 %542
        %v544 = vrcp.pop 32.0
        %v545 = vmul.f32 %v543, %v544
        %v546 = vadd.f32 %v545, 1e-06
        %v547 = vrsqrt.pop %v546
        %v548 = vmul.f32 %v538, %v547
        %v549 = vpack.c.bf16 %v548, %v548
        %v550 = vld [vmem:[#allocation5] sm:$0xf]
        %v551 = vld [vmem:[#allocation5 + $0x4] sm:$0xf]
        %v552 = vld [vmem:[#allocation5 + $0x8] sm:$0xf]
        %v553 = vld [vmem:[#allocation5 + $0xc] sm:$0xf]
        %v554 = vld [vmem:[#allocation7] sm:$0x1]
        %v556 = vlaneseq
        %v557 = vshrl.u32 %v556, 7
        %v558 = vsub.s32 0, %v557
        %v559 = vrot.slane %v554, %v558
        %v565 = vunpack.c.l.b16 %v550
        %v566 = vunpack.c.l.b16 %v551
        %v567 = vunpack.c.l.b16 %v552
        %v568 = vunpack.c.l.b16 %v553
        %v569 = vpack.c.b16 %v566, %v565
        %v570 = vpack.c.b16 %v568, %v567
        %v574 = vsel %vm540, %v549, 0
        %576 = vmatprep.subr.bf16.mxu0 0
        %577 = vmatpush1.bf16.msra.mxu0 %v569
        %578 = vmatprep.subr.bf16.mxu0 0
        %579 = vmatpush1.bf16.msra.mxu0 %v570
        %580 = vmatprep.subr.bf16.mxu0 0
        %581 = vmatpush1.bf16.msra.mxu0 0
        %582 = vmatprep.subr.bf16.mxu0 0
        %583 = vmatpush1.bf16.msra.mxu0 0
        %584 = vmatprep.subr.bf16.mxu0 0
        %585 = vmatpush1.bf16.msra.mxu0 0
        %586 = vmatprep.subr.bf16.mxu0 0
        %587 = vmatpush1.bf16.msra.mxu0 0
        %588 = vmatprep.subr.bf16.mxu0 0
        %589 = vmatpush1.bf16.msra.mxu0 0
        %590 = vmatprep.subr.bf16.mxu0 0
        %591 = vmatpush1.bf16.msra.mxu0 0
        %592 = vmatprep.subr.bf16.mxu0 0
        %593 = vmatpush1.bf16.msra.mxu0 0
        %594 = vmatprep.subr.bf16.mxu0 0
        %595 = vmatpush1.bf16.msra.mxu0 0
        %596 = vmatprep.subr.bf16.mxu0 0
        %597 = vmatpush1.bf16.msra.mxu0 0
        %598 = vmatprep.subr.bf16.mxu0 0
        %599 = vmatpush1.bf16.msra.mxu0 0
        %600 = vmatprep.subr.bf16.mxu0 0
        %601 = vmatpush1.bf16.msra.mxu0 0
        %602 = vmatprep.subr.bf16.mxu0 0
        %603 = vmatpush1.bf16.msra.mxu0 0
        %604 = vmatprep.subr.bf16.mxu0 0
        %605 = vmatpush1.bf16.msra.mxu0 0
        %606 = vmatprep.subr.bf16.mxu0 0
        %607 = vmatpush1.bf16.msra.mxu0 0
        %608 = vmatprep.mubr.bf16.mxu0 0
        %609 = vmatmul.mubr.bf16.gmra.mrb[0].mxu0 %v574
        %v610 = vpop.f32.mrb[0].mxu0
        %v611 = vadd.f32 %v559, %v610
        %v612 = vpop.f32.mrb[0].mxu0
        %v613 = vpop.f32.mrb[0].mxu0
        %v614 = vpop.f32.mrb[0].mxu0
        %615 = vdwg.mxu0
        %v616 = vlaneseq
        %v617 = vshrl.u32 %v616, 7
        %v618 = vlaneseq
        %v619 = vand.u32 %v618, 127
        %vm620 = vcmp.ge.s32.totalorder %v617, %v619
        %v621 = vsel %vm620, 0.0, -1e+09
        %v622 = vpack.c.bf16 %v611, %v611
        %624 = vrot.lane.b32.xlu0 %v622, 96
        %v625 = vpop.permute.xlu0 %624
        %vm626 = vcmask 64512
        %v628 = vsel %vm626, %v622, 0
        %v631 = vsel %vm626, %v625, 0
        %633 = vmatprep.subr.bf16.mxu0 0
        %634 = vmatpush1.bf16.xpose.msra.mxu0 %v631
        %635 = vmatprep.subr.bf16.mxu0 0
        %636 = vmatpush1.bf16.xpose.msra.mxu0 0
        %637 = vmatprep.subr.bf16.mxu0 0
        %638 = vmatpush1.bf16.xpose.msra.mxu0 0
        %639 = vmatprep.subr.bf16.mxu0 0
        %640 = vmatpush1.bf16.xpose.msra.mxu0 0
        %641 = vmatprep.subr.bf16.mxu0 0
        %642 = vmatpush1.bf16.xpose.msra.mxu0 0
        %643 = vmatprep.subr.bf16.mxu0 0
        %644 = vmatpush1.bf16.xpose.msra.mxu0 0
        %645 = vmatprep.subr.bf16.mxu0 0
        %646 = vmatpush1.bf16.xpose.msra.mxu0 0
        %647 = vmatprep.subr.bf16.mxu0 0
        %648 = vmatpush1.bf16.xpose.msra.mxu0 0
        %649 = vmatprep.subr.bf16.mxu0 0
        %650 = vmatpush1.bf16.xpose.msra.mxu0 0
        %651 = vmatprep.subr.bf16.mxu0 0
        %652 = vmatpush1.bf16.xpose.msra.mxu0 0
        %653 = vmatprep.subr.bf16.mxu0 0
        %654 = vmatpush1.bf16.xpose.msra.mxu0 0
        %655 = vmatprep.subr.bf16.mxu0 0
        %656 = vmatpush1.bf16.xpose.msra.mxu0 0
        %657 = vmatprep.subr.bf16.mxu0 0
        %658 = vmatpush1.bf16.xpose.msra.mxu0 0
        %659 = vmatprep.subr.bf16.mxu0 0
        %660 = vmatpush1.bf16.xpose.msra.mxu0 0
        %661 = vmatprep.subr.bf16.mxu0 0
        %662 = vmatpush1.bf16.xpose.msra.mxu0 0
        %663 = vmatprep.subr.bf16.mxu0 0
        %664 = vmatpush1.bf16.xpose.msra.mxu0 0
        %665 = vmatprep.mubr.bf16.mxu0 0
        %666 = vmatmul.mubr.bf16.gmra.mrb[0].mxu0 %v628
        %v667 = vpop.f32.mrb[0].mxu0
        %v668 = vadd.f32 %v621, %v667
        %v669 = vpop.f32.mrb[0].mxu0
        %v670 = vpop.f32.mrb[0].mxu0
        %v671 = vpop.f32.mrb[0].mxu0
        %672 = vdwg.mxu0
        %v673 = vsel %vm626, %v668, -inf
        %674 = vmax.xlane.f32.xlu0 %v673
        %v675 = vpop.xlane.xlu0 %674
        %v676 = vsub.f32 %v668, %v675
        %v677 = vmul.f32 %v676, 1.442695
        %v678 = vpow.pop %v677
        %v679 = vsel %vm626, %v678, 0.0
        %680 = vadd.xlane.f32.xlu0 %v679
        %v681 = vpop.xlane.xlu0 %680
        %v682 = vrcp.pop %v681
        %v683 = vmul.f32 %v678, %v682
        %v684 = vpack.c.bf16 %v683, %v683
        %685 = vrot.lane.b32.xlu0 %v622, 64
        %v686 = vpop.permute.xlu0 %685
        %v688 = vsel %vm626, %v684, 0
        %vm690 = vcmask 1043456
        %v692 = vsel %vm690, %v686, 0
        %694 = vmatprep.subr.bf16.mxu0 0
        %695 = vmatpush1.bf16.msra.mxu0 %v692
        %696 = vmatprep.subr.bf16.mxu0 0
        %697 = vmatpush1.bf16.msra.mxu0 0
        %698 = vmatprep.subr.bf16.mxu0 0
        %699 = vmatpush1.bf16.msra.mxu0 0
        %700 = vmatprep.subr.bf16.mxu0 0
        %701 = vmatpush1.bf16.msra.mxu0 0
        %702 = vmatprep.subr.bf16.mxu0 0
        %703 = vmatpush1.bf16.msra.mxu0 0
        %704 = vmatprep.subr.bf16.mxu0 0
        %705 = vmatpush1.bf16.msra.mxu0 0
        %706 = vmatprep.subr.bf16.mxu0 0
        %707 = vmatpush1.bf16.msra.mxu0 0
        %708 = vmatprep.subr.bf16.mxu0 0
        %709 = vmatpush1.bf16.msra.mxu0 0
        %710 = vmatprep.subr.bf16.mxu0 0
        %711 = vmatpush1.bf16.msra.mxu0 0
        %712 = vmatprep.subr.bf16.mxu0 0
        %713 = vmatpush1.bf16.msra.mxu0 0
        %714 = vmatprep.subr.bf16.mxu0 0
        %715 = vmatpush1.bf16.msra.mxu0 0
        %716 = vmatprep.subr.bf16.mxu0 0
        %717 = vmatpush1.bf16.msra.mxu0 0
        %718 = vmatprep.subr.bf16.mxu0 0
        %719 = vmatpush1.bf16.msra.mxu0 0
        %720 = vmatprep.subr.bf16.mxu0 0
        %721 = vmatpush1.bf16.msra.mxu0 0
        %722 = vmatprep.subr.bf16.mxu0 0
        %723 = vmatpush1.bf16.msra.mxu0 0
        %724 = vmatprep.subr.bf16.mxu0 0
        %725 = vmatpush1.bf16.msra.mxu0 0
        %726 = vmatprep.mubr.bf16.mxu0 0
        %727 = vmatmul.mubr.bf16.gmra.mrb[0].mxu0 %v688
        %v728 = vpop.f32.mrb[0].mxu0
        %v729 = vadd.f32 0.0, %v728
        %v730 = vpop.f32.mrb[0].mxu0
        %v731 = vpop.f32.mrb[0].mxu0
        %v732 = vpop.f32.mrb[0].mxu0
        %733 = vdwg.mxu0
        %v734 = vpack.c.bf16 %v729, %v729
        %v735 = vld [vmem:[#allocation8] sm:$0xf]
        %736 = vrot.lane.b32.xlu0 %v622, 120
        %v737 = vpop.permute.xlu0 %736
        %738 = vrot.lane.b32.xlu0 %v622, 88
        %v739 = vpop.permute.xlu0 %738
        %v741 = vsel %vm626, %v737, 0
        %v744 = vsel %vm626, %v739, 0
        %746 = vmatprep.subr.bf16.mxu0 0
        %747 = vmatpush1.bf16.xpose.msra.mxu0 %v744
        %748 = vmatprep.subr.bf16.mxu0 0
        %749 = vmatpush1.bf16.xpose.msra.mxu0 0
        %750 = vmatprep.subr.bf16.mxu0 0
        %751 = vmatpush1.bf16.xpose.msra.mxu0 0
        %752 = vmatprep.subr.bf16.mxu0 0
        %753 = vmatpush1.bf16.xpose.msra.mxu0 0
        %754 = vmatprep.subr.bf16.mxu0 0
        %755 = vmatpush1.bf16.xpose.msra.mxu0 0
        %756 = vmatprep.subr.bf16.mxu0 0
        %757 = vmatpush1.bf16.xpose.msra.mxu0 0
        %758 = vmatprep.subr.bf16.mxu0 0
        %759 = vmatpush1.bf16.xpose.msra.mxu0 0
        %760 = vmatprep.subr.bf16.mxu0 0
        %761 = vmatpush1.bf16.xpose.msra.mxu0 0
        %762 = vmatprep.subr.bf16.mxu0 0
        %763 = vmatpush1.bf16.xpose.msra.mxu0 0
        %764 = vmatprep.subr.bf16.mxu0 0
        %765 = vmatpush1.bf16.xpose.msra.mxu0 0
        %766 = vmatprep.subr.bf16.mxu0 0
        %767 = vmatpush1.bf16.xpose.msra.mxu0 0
        %768 = vmatprep.subr.bf16.mxu0 0
        %769 = vmatpush1.bf16.xpose.msra.mxu0 0
        %770 = vmatprep.subr.bf16.mxu0 0
        %771 = vmatpush1.bf16.xpose.msra.mxu0 0
        %772 = vmatprep.subr.bf16.mxu0 0
        %773 = vmatpush1.bf16.xpose.msra.mxu0 0
        %774 = vmatprep.subr.bf16.mxu0 0
        %775 = vmatpush1.bf16.xpose.msra.mxu0 0
        %776 = vmatprep.subr.bf16.mxu0 0
        %777 = vmatpush1.bf16.xpose.msra.mxu0 0
        %778 = vmatprep.mubr.bf16.mxu0 0
        %779 = vmatmul.mubr.bf16.gmra.mrb[0].mxu0 %v741
        %v780 = vpop.f32.mrb[0].mxu0
        %v781 = vadd.f32 %v621, %v780
        %v782 = vpop.f32.mrb[0].mxu0
        %v783 = vpop.f32.mrb[0].mxu0
        %v784 = vpop.f32.mrb[0].mxu0
        %785 = vdwg.mxu0
        %v786 = vsel %vm626, %v781, -inf
        %787 = vmax.xlane.f32.xlu0 %v786
        %v788 = vpop.xlane.xlu0 %787
        %v789 = vsub.f32 %v781, %v788
        %v790 = vmul.f32 %v789, 1.442695
        %v791 = vpow.pop %v790
        %v792 = vsel %vm626, %v791, 0.0
        %793 = vadd.xlane.f32.xlu0 %v792
        %v794 = vpop.xlane.xlu0 %793
        %v795 = vrcp.pop %v794
        %v796 = vmul.f32 %v791, %v795
        %v797 = vpack.c.bf16 %v796, %v796
        %798 = vrot.lane.b32.xlu0 %v622, 56
        %v799 = vpop.permute.xlu0 %798
        %v801 = vsel %vm626, %v797, 0
        %v804 = vsel %vm690, %v799, 0
        %806 = vmatprep.subr.bf16.mxu0 0
        %807 = vmatpush1.bf16.msra.mxu0 %v804
        %808 = vmatprep.subr.bf16.mxu0 0
        %809 = vmatpush1.bf16.msra.mxu0 0
        %810 = vmatprep.subr.bf16.mxu0 0
        %811 = vmatpush1.bf16.msra.mxu0 0
        %812 = vmatprep.subr.bf16.mxu0 0
        %813 = vmatpush1.bf16.msra.mxu0 0
        %814 = vmatprep.subr.bf16.mxu0 0
        %815 = vmatpush1.bf16.msra.mxu0 0
        %816 = vmatprep.subr.bf16.mxu0 0
        %817 = vmatpush1.bf16.msra.mxu0 0
        %818 = vmatprep.subr.bf16.mxu0 0
        %819 = vmatpush1.bf16.msra.mxu0 0
        %820 = vmatprep.subr.bf16.mxu0 0
        %821 = vmatpush1.bf16.msra.mxu0 0
        %822 = vmatprep.subr.bf16.mxu0 0
        %823 = vmatpush1.bf16.msra.mxu0 0
        %824 = vmatprep.subr.bf16.mxu0 0
        %825 = vmatpush1.bf16.msra.mxu0 0
        %826 = vmatprep.subr.bf16.mxu0 0
        %827 = vmatpush1.bf16.msra.mxu0 0
        %828 = vmatprep.subr.bf16.mxu0 0
        %829 = vmatpush1.bf16.msra.mxu0 0
        %830 = vmatprep.subr.bf16.mxu0 0
        %831 = vmatpush1.bf16.msra.mxu0 0
        %832 = vmatprep.subr.bf16.mxu0 0
        %833 = vmatpush1.bf16.msra.mxu0 0
        %834 = vmatprep.subr.bf16.mxu0 0
        %835 = vmatpush1.bf16.msra.mxu0 0
        %836 = vmatprep.subr.bf16.mxu0 0
        %837 = vmatpush1.bf16.msra.mxu0 0
        %838 = vmatprep.mubr.bf16.mxu0 0
        %839 = vmatmul.mubr.bf16.gmra.mrb[0].mxu0 %v801
        %v840 = vpop.f32.mrb[0].mxu0
        %v841 = vadd.f32 0.0, %v840
        %v842 = vpop.f32.mrb[0].mxu0
        %v843 = vpop.f32.mrb[0].mxu0
        %v844 = vpop.f32.mrb[0].mxu0
        %845 = vdwg.mxu0
        %v846 = vpack.c.bf16 %v841, %v841
        %s847 = scalar_lea.vmem [#allocation8], 4
        %v848 = vld [vmem:[%s847] sm:$0xf]
        %v850 = vsel %vm626, %v846, 0
        %v853 = vsel %vm690, %v848, 0
        %855 = vmatprep.subr.bf16.mxu0 0
        %856 = vmatpush1.bf16.msra.mxu0 %v853
        %857 = vmatprep.subr.bf16.mxu0 0
        %858 = vmatpush1.bf16.msra.mxu0 0
        %859 = vmatprep.subr.bf16.mxu0 0
        %860 = vmatpush1.bf16.msra.mxu0 0
        %861 = vmatprep.subr.bf16.mxu0 0
        %862 = vmatpush1.bf16.msra.mxu0 0
        %863 = vmatprep.subr.bf16.mxu0 0
        %864 = vmatpush1.bf16.msra.mxu0 0
        %865 = vmatprep.subr.bf16.mxu0 0
        %866 = vmatpush1.bf16.msra.mxu0 0
        %867 = vmatprep.subr.bf16.mxu0 0
        %868 = vmatpush1.bf16.msra.mxu0 0
        %869 = vmatprep.subr.bf16.mxu0 0
        %870 = vmatpush1.bf16.msra.mxu0 0
        %871 = vmatprep.subr.bf16.mxu0 0
        %872 = vmatpush1.bf16.msra.mxu0 0
        %873 = vmatprep.subr.bf16.mxu0 0
        %874 = vmatpush1.bf16.msra.mxu0 0
        %875 = vmatprep.subr.bf16.mxu0 0
        %876 = vmatpush1.bf16.msra.mxu0 0
        %877 = vmatprep.subr.bf16.mxu0 0
        %878 = vmatpush1.bf16.msra.mxu0 0
        %879 = vmatprep.subr.bf16.mxu0 0
        %880 = vmatpush1.bf16.msra.mxu0 0
        %881 = vmatprep.subr.bf16.mxu0 0
        %882 = vmatpush1.bf16.msra.mxu0 0
        %883 = vmatprep.subr.bf16.mxu0 0
        %884 = vmatpush1.bf16.msra.mxu0 0
        %885 = vmatprep.subr.bf16.mxu0 0
        %886 = vmatpush1.bf16.msra.mxu0 0
        %887 = vmatprep.mubr.bf16.mxu0 0
        %888 = vmatmul.mubr.bf16.gmra.mrb[0].mxu0 %v850
        %v889 = vpop.f32.mrb[0].mxu0
        %v890 = vadd.f32 0.0, %v889
        %v891 = vpop.f32.mrb[0].mxu0
        %v892 = vpop.f32.mrb[0].mxu0
        %v893 = vpop.f32.mrb[0].mxu0
        %894 = vdwg.mxu0
        %v896 = vsel %vm626, %v734, 0
        %v899 = vsel %vm690, %v735, 0
        %901 = vmatprep.subr.bf16.mxu0 0
        %902 = vmatpush1.bf16.msra.mxu0 %v899
        %903 = vmatprep.subr.bf16.mxu0 0
        %904 = vmatpush1.bf16.msra.mxu0 0
        %905 = vmatprep.subr.bf16.mxu0 0
        %906 = vmatpush1.bf16.msra.mxu0 0
        %907 = vmatprep.subr.bf16.mxu0 0
        %908 = vmatpush1.bf16.msra.mxu0 0
        %909 = vmatprep.subr.bf16.mxu0 0
        %910 = vmatpush1.bf16.msra.mxu0 0
        %911 = vmatprep.subr.bf16.mxu0 0
        %912 = vmatpush1.bf16.msra.mxu0 0
        %913 = vmatprep.subr.bf16.mxu0 0
        %914 = vmatpush1.bf16.msra.mxu0 0
        %915 = vmatprep.subr.bf16.mxu0 0
        %916 = vmatpush1.bf16.msra.mxu0 0
        %917 = vmatprep.subr.bf16.mxu0 0
        %918 = vmatpush1.bf16.msra.mxu0 0
        %919 = vmatprep.subr.bf16.mxu0 0
        %920 = vmatpush1.bf16.msra.mxu0 0
        %921 = vmatprep.subr.bf16.mxu0 0
        %922 = vmatpush1.bf16.msra.mxu0 0
        %923 = vmatprep.subr.bf16.mxu0 0
        %924 = vmatpush1.bf16.msra.mxu0 0
        %925 = vmatprep.subr.bf16.mxu0 0
        %926 = vmatpush1.bf16.msra.mxu0 0
        %927 = vmatprep.subr.bf16.mxu0 0
        %928 = vmatpush1.bf16.msra.mxu0 0
        %929 = vmatprep.subr.bf16.mxu0 0
        %930 = vmatpush1.bf16.msra.mxu0 0
        %931 = vmatprep.subr.bf16.mxu0 0
        %932 = vmatpush1.bf16.msra.mxu0 0
        %933 = vmatprep.mubr.bf16.mxu0 0
        %934 = vmatmul.mubr.bf16.gmra.mrb[0].mxu0 %v896
        %v935 = vpop.f32.mrb[0].mxu0
        %v936 = vadd.f32 %v890, %v935
        %v937 = vpop.f32.mrb[0].mxu0
        %v938 = vpop.f32.mrb[0].mxu0
        %v939 = vpop.f32.mrb[0].mxu0
        %940 = vdwg.mxu0
        %941 = vrot.lane.b32.xlu0 %v622, 112
        %v942 = vpop.permute.xlu0 %941
        %943 = vrot.lane.b32.xlu0 %v622, 80
        %v944 = vpop.permute.xlu0 %943
        %v946 = vsel %vm626, %v942, 0
        %v949 = vsel %vm626, %v944, 0
        %951 = vmatprep.subr.bf16.mxu0 0
        %952 = vmatpush1.bf16.xpose.msra.mxu0 %v949
        %953 = vmatprep.subr.bf16.mxu0 0
        %954 = vmatpush1.bf16.xpose.msra.mxu0 0
        %955 = vmatprep.subr.bf16.mxu0 0
        %956 = vmatpush1.bf16.xpose.msra.mxu0 0
        %957 = vmatprep.subr.bf16.mxu0 0
        %958 = vmatpush1.bf16.xpose.msra.mxu0 0
        %959 = vmatprep.subr.bf16.mxu0 0
        %960 = vmatpush1.bf16.xpose.msra.mxu0 0
        %961 = vmatprep.subr.bf16.mxu0 0
        %962 = vmatpush1.bf16.xpose.msra.mxu0 0
        %963 = vmatprep.subr.bf16.mxu0 0
        %964 = vmatpush1.bf16.xpose.msra.mxu0 0
        %965 = vmatprep.subr.bf16.mxu0 0
        %966 = vmatpush1.bf16.xpose.msra.mxu0 0
        %967 = vmatprep.subr.bf16.mxu0 0
        %968 = vmatpush1.bf16.xpose.msra.mxu0 0
        %969 = vmatprep.subr.bf16.mxu0 0
        %970 = vmatpush1.bf16.xpose.msra.mxu0 0
        %971 = vmatprep.subr.bf16.mxu0 0
        %972 = vmatpush1.bf16.xpose.msra.mxu0 0
        %973 = vmatprep.subr.bf16.mxu0 0
        %974 = vmatpush1.bf16.xpose.msra.mxu0 0
        %975 = vmatprep.subr.bf16.mxu0 0
        %976 = vmatpush1.bf16.xpose.msra.mxu0 0
        %977 = vmatprep.subr.bf16.mxu0 0
        %978 = vmatpush1.bf16.xpose.msra.mxu0 0
        %979 = vmatprep.subr.bf16.mxu0 0
        %980 = vmatpush1.bf16.xpose.msra.mxu0 0
        %981 = vmatprep.subr.bf16.mxu0 0
        %982 = vmatpush1.bf16.xpose.msra.mxu0 0
        %983 = vmatprep.mubr.bf16.mxu0 0
        %984 = vmatmul.mubr.bf16.gmra.mrb[0].mxu0 %v946
        %v985 = vpop.f32.mrb[0].mxu0
        %v986 = vadd.f32 %v621, %v985
        %v987 = vpop.f32.mrb[0].mxu0
        %v988 = vpop.f32.mrb[0].mxu0
        %v989 = vpop.f32.mrb[0].mxu0
        %990 = vdwg.mxu0
        %v991 = vsel %vm626, %v986, -inf
        %992 = vmax.xlane.f32.xlu0 %v991
        %v993 = vpop.xlane.xlu0 %992
        %v994 = vsub.f32 %v986, %v993
        %v995 = vmul.f32 %v994, 1.442695
        %v996 = vpow.pop %v995
        %v997 = vsel %vm626, %v996, 0.0
        %998 = vadd.xlane.f32.xlu0 %v997
        %v999 = vpop.xlane.xlu0 %998
        %v1000 = vrcp.pop %v999
        %v1001 = vmul.f32 %v996, %v1000
        %v1002 = vpack.c.bf16 %v1001, %v1001
        %1003 = vrot.lane.b32.xlu0 %v622, 48
        %v1004 = vpop.permute.xlu0 %1003
        %v1006 = vsel %vm626, %v1002, 0
        %v1009 = vsel %vm690, %v1004, 0
        %1011 = vmatprep.subr.bf16.mxu0 0
        %1012 = vmatpush1.bf16.msra.mxu0 %v1009
        %1013 = vmatprep.subr.bf16.mxu0 0
        %1014 = vmatpush1.bf16.msra.mxu0 0
        %1015 = vmatprep.subr.bf16.mxu0 0
        %1016 = vmatpush1.bf16.msra.mxu0 0
        %1017 = vmatprep.subr.bf16.mxu0 0
        %1018 = vmatpush1.bf16.msra.mxu0 0
        %1019 = vmatprep.subr.bf16.mxu0 0
        %1020 = vmatpush1.bf16.msra.mxu0 0
        %1021 = vmatprep.subr.bf16.mxu0 0
        %1022 = vmatpush1.bf16.msra.mxu0 0
        %1023 = vmatprep.subr.bf16.mxu0 0
        %1024 = vmatpush1.bf16.msra.mxu0 0
        %1025 = vmatprep.subr.bf16.mxu0 0
        %1026 = vmatpush1.bf16.msra.mxu0 0
        %1027 = vmatprep.subr.bf16.mxu0 0
        %1028 = vmatpush1.bf16.msra.mxu0 0
        %1029 = vmatprep.subr.bf16.mxu0 0
        %1030 = vmatpush1.bf16.msra.mxu0 0
        %1031 = vmatprep.subr.bf16.mxu0 0
        %1032 = vmatpush1.bf16.msra.mxu0 0
        %1033 = vmatprep.subr.bf16.mxu0 0
        %1034 = vmatpush1.bf16.msra.mxu0 0
        %1035 = vmatprep.subr.bf16.mxu0 0
        %1036 = vmatpush1.bf16.msra.mxu0 0
        %1037 = vmatprep.subr.bf16.mxu0 0
        %1038 = vmatpush1.bf16.msra.mxu0 0
        %1039 = vmatprep.subr.bf16.mxu0 0
        %1040 = vmatpush1.bf16.msra.mxu0 0
        %1041 = vmatprep.subr.bf16.mxu0 0
        %1042 = vmatpush1.bf16.msra.mxu0 0
        %1043 = vmatprep.mubr.bf16.mxu0 0
        %1044 = vmatmul.mubr.bf16.gmra.mrb[0].mxu0 %v1006
        %v1045 = vpop.f32.mrb[0].mxu0
        %v1046 = vadd.f32 0.0, %v1045
        %v1047 = vpop.f32.mrb[0].mxu0
        %v1048 = vpop.f32.mrb[0].mxu0
        %v1049 = vpop.f32.mrb[0].mxu0
        %1050 = vdwg.mxu0
        %v1051 = vpack.c.bf16 %v1046, %v1046
        %s1052 = scalar_lea.vmem [#allocation8], 8
        %v1053 = vld [vmem:[%s1052] sm:$0xf]
        %v1055 = vsel %vm626, %v1051, 0
        %v1058 = vsel %vm690, %v1053, 0
        %1060 = vmatprep.subr.bf16.mxu0 0
        %1061 = vmatpush1.bf16.msra.mxu0 %v1058
        %1062 = vmatprep.subr.bf16.mxu0 0
        %1063 = vmatpush1.bf16.msra.mxu0 0
        %1064 = vmatprep.subr.bf16.mxu0 0
        %1065 = vmatpush1.bf16.msra.mxu0 0
        %1066 = vmatprep.subr.bf16.mxu0 0
        %1067 = vmatpush1.bf16.msra.mxu0 0
        %1068 = vmatprep.subr.bf16.mxu0 0
        %1069 = vmatpush1.bf16.msra.mxu0 0
        %1070 = vmatprep.subr.bf16.mxu0 0
        %1071 = vmatpush1.bf16.msra.mxu0 0
        %1072 = vmatprep.subr.bf16.mxu0 0
        %1073 = vmatpush1.bf16.msra.mxu0 0
        %1074 = vmatprep.subr.bf16.mxu0 0
        %1075 = vmatpush1.bf16.msra.mxu0 0
        %1076 = vmatprep.subr.bf16.mxu0 0
        %1077 = vmatpush1.bf16.msra.mxu0 0
        %1078 = vmatprep.subr.bf16.mxu0 0
        %1079 = vmatpush1.bf16.msra.mxu0 0
        %1080 = vmatprep.subr.bf16.mxu0 0
        %1081 = vmatpush1.bf16.msra.mxu0 0
        %1082 = vmatprep.subr.bf16.mxu0 0
        %1083 = vmatpush1.bf16.msra.mxu0 0
        %1084 = vmatprep.subr.bf16.mxu0 0
        %1085 = vmatpush1.bf16.msra.mxu0 0
        %1086 = vmatprep.subr.bf16.mxu0 0
        %1087 = vmatpush1.bf16.msra.mxu0 0
        %1088 = vmatprep.subr.bf16.mxu0 0
        %1089 = vmatpush1.bf16.msra.mxu0 0
        %1090 = vmatprep.subr.bf16.mxu0 0
        %1091 = vmatpush1.bf16.msra.mxu0 0
        %1092 = vmatprep.mubr.bf16.mxu0 0
        %1093 = vmatmul.mubr.bf16.gmra.mrb[0].mxu0 %v1055
        %v1094 = vpop.f32.mrb[0].mxu0
        %v1095 = vadd.f32 0.0, %v1094
        %v1096 = vpop.f32.mrb[0].mxu0
        %v1097 = vpop.f32.mrb[0].mxu0
        %v1098 = vpop.f32.mrb[0].mxu0
        %1099 = vdwg.mxu0
        %v1100 = vadd.f32 %v936, %v1095
        %1101 = vrot.lane.b32.xlu0 %v622, 104
        %v1102 = vpop.permute.xlu0 %1101
        %1103 = vrot.lane.b32.xlu0 %v622, 72
        %v1104 = vpop.permute.xlu0 %1103
        %v1106 = vsel %vm626, %v1102, 0
        %v1109 = vsel %vm626, %v1104, 0
        %1111 = vmatprep.subr.bf16.mxu0 0
        %1112 = vmatpush1.bf16.xpose.msra.mxu0 %v1109
        %1113 = vmatprep.subr.bf16.mxu0 0
        %1114 = vmatpush1.bf16.xpose.msra.mxu0 0
        %1115 = vmatprep.subr.bf16.mxu0 0
        %1116 = vmatpush1.bf16.xpose.msra.mxu0 0
        %1117 = vmatprep.subr.bf16.mxu0 0
        %1118 = vmatpush1.bf16.xpose.msra.mxu0 0
        %1119 = vmatprep.subr.bf16.mxu0 0
        %1120 = vmatpush1.bf16.xpose.msra.mxu0 0
        %1121 = vmatprep.subr.bf16.mxu0 0
        %1122 = vmatpush1.bf16.xpose.msra.mxu0 0
        %1123 = vmatprep.subr.bf16.mxu0 0
        %1124 = vmatpush1.bf16.xpose.msra.mxu0 0
        %1125 = vmatprep.subr.bf16.mxu0 0
        %1126 = vmatpush1.bf16.xpose.msra.mxu0 0
        %1127 = vmatprep.subr.bf16.mxu0 0
        %1128 = vmatpush1.bf16.xpose.msra.mxu0 0
        %1129 = vmatprep.subr.bf16.mxu0 0
        %1130 = vmatpush1.bf16.xpose.msra.mxu0 0
        %1131 = vmatprep.subr.bf16.mxu0 0
        %1132 = vmatpush1.bf16.xpose.msra.mxu0 0
        %1133 = vmatprep.subr.bf16.mxu0 0
        %1134 = vmatpush1.bf16.xpose.msra.mxu0 0
        %1135 = vmatprep.subr.bf16.mxu0 0
        %1136 = vmatpush1.bf16.xpose.msra.mxu0 0
        %1137 = vmatprep.subr.bf16.mxu0 0
        %1138 = vmatpush1.bf16.xpose.msra.mxu0 0
        %1139 = vmatprep.subr.bf16.mxu0 0
        %1140 = vmatpush1.bf16.xpose.msra.mxu0 0
        %1141 = vmatprep.subr.bf16.mxu0 0
        %1142 = vmatpush1.bf16.xpose.msra.mxu0 0
        %1143 = vmatprep.mubr.bf16.mxu0 0
        %1144 = vmatmul.mubr.bf16.gmra.mrb[0].mxu0 %v1106
        %v1145 = vpop.f32.mrb[0].mxu0
        %v1146 = vadd.f32 %v621, %v1145
        %v1147 = vpop.f32.mrb[0].mxu0
        %v1148 = vpop.f32.mrb[0].mxu0
        %v1149 = vpop.f32.mrb[0].mxu0
        %1150 = vdwg.mxu0
        %v1151 = vsel %vm626, %v1146, -inf
        %1152 = vmax.xlane.f32.xlu0 %v1151
        %v1153 = vpop.xlane.xlu0 %1152
        %v1154 = vsub.f32 %v1146, %v1153
        %v1155 = vmul.f32 %v1154, 1.442695
        %v1156 = vpow.pop %v1155
        %v1157 = vsel %vm626, %v1156, 0.0
        %1158 = vadd.xlane.f32.xlu0 %v1157
        %v1159 = vpop.xlane.xlu0 %1158
        %v1160 = vrcp.pop %v1159
        %v1161 = vmul.f32 %v1156, %v1160
        %v1162 = vpack.c.bf16 %v1161, %v1161
        %1163 = vrot.lane.b32.xlu0 %v622, 40
        %v1164 = vpop.permute.xlu0 %1163
        %v1166 = vsel %vm626, %v1162, 0
        %v1169 = vsel %vm690, %v1164, 0
        %1171 = vmatprep.subr.bf16.mxu0 0
        %1172 = vmatpush1.bf16.msra.mxu0 %v1169
        %1173 = vmatprep.subr.bf16.mxu0 0
        %1174 = vmatpush1.bf16.msra.mxu0 0
        %1175 = vmatprep.subr.bf16.mxu0 0
        %1176 = vmatpush1.bf16.msra.mxu0 0
        %1177 = vmatprep.subr.bf16.mxu0 0
        %1178 = vmatpush1.bf16.msra.mxu0 0
        %1179 = vmatprep.subr.bf16.mxu0 0
        %1180 = vmatpush1.bf16.msra.mxu0 0
        %1181 = vmatprep.subr.bf16.mxu0 0
        %1182 = vmatpush1.bf16.msra.mxu0 0
        %1183 = vmatprep.subr.bf16.mxu0 0
        %1184 = vmatpush1.bf16.msra.mxu0 0
        %1185 = vmatprep.subr.bf16.mxu0 0
        %1186 = vmatpush1.bf16.msra.mxu0 0
        %1187 = vmatprep.subr.bf16.mxu0 0
        %1188 = vmatpush1.bf16.msra.mxu0 0
        %1189 = vmatprep.subr.bf16.mxu0 0
        %1190 = vmatpush1.bf16.msra.mxu0 0
        %1191 = vmatprep.subr.bf16.mxu0 0
        %1192 = vmatpush1.bf16.msra.mxu0 0
        %1193 = vmatprep.subr.bf16.mxu0 0
        %1194 = vmatpush1.bf16.msra.mxu0 0
        %1195 = vmatprep.subr.bf16.mxu0 0
        %1196 = vmatpush1.bf16.msra.mxu0 0
        %1197 = vmatprep.subr.bf16.mxu0 0
        %1198 = vmatpush1.bf16.msra.mxu0 0
        %1199 = vmatprep.subr.bf16.mxu0 0
        %1200 = vmatpush1.bf16.msra.mxu0 0
        %1201 = vmatprep.subr.bf16.mxu0 0
        %1202 = vmatpush1.bf16.msra.mxu0 0
        %1203 = vmatprep.mubr.bf16.mxu0 0
        %1204 = vmatmul.mubr.bf16.gmra.mrb[0].mxu0 %v1166
        %v1205 = vpop.f32.mrb[0].mxu0
        %v1206 = vadd.f32 0.0, %v1205
        %v1207 = vpop.f32.mrb[0].mxu0
        %v1208 = vpop.f32.mrb[0].mxu0
        %v1209 = vpop.f32.mrb[0].mxu0
        %1210 = vdwg.mxu0
        %v1211 = vpack.c.bf16 %v1206, %v1206
        %s1212 = scalar_lea.vmem [#allocation8], 12
        %v1213 = vld [vmem:[%s1212] sm:$0xf]
        %v1215 = vsel %vm626, %v1211, 0
        %v1218 = vsel %vm690, %v1213, 0
        %1220 = vmatprep.subr.bf16.mxu0 0
        %1221 = vmatpush1.bf16.msra.mxu0 %v1218
        %1222 = vmatprep.subr.bf16.mxu0 0
        %1223 = vmatpush1.bf16.msra.mxu0 0
        %1224 = vmatprep.subr.bf16.mxu0 0
        %1225 = vmatpush1.bf16.msra.mxu0 0
        %1226 = vmatprep.subr.bf16.mxu0 0
        %1227 = vmatpush1.bf16.msra.mxu0 0
        %1228 = vmatprep.subr.bf16.mxu0 0
        %1229 = vmatpush1.bf16.msra.mxu0 0
        %1230 = vmatprep.subr.bf16.mxu0 0
        %1231 = vmatpush1.bf16.msra.mxu0 0
        %1232 = vmatprep.subr.bf16.mxu0 0
        %1233 = vmatpush1.bf16.msra.mxu0 0
        %1234 = vmatprep.subr.bf16.mxu0 0
        %1235 = vmatpush1.bf16.msra.mxu0 0
        %1236 = vmatprep.subr.bf16.mxu0 0
        %1237 = vmatpush1.bf16.msra.mxu0 0
        %1238 = vmatprep.subr.bf16.mxu0 0
        %1239 = vmatpush1.bf16.msra.mxu0 0
        %1240 = vmatprep.subr.bf16.mxu0 0
        %1241 = vmatpush1.bf16.msra.mxu0 0
        %1242 = vmatprep.subr.bf16.mxu0 0
        %1243 = vmatpush1.bf16.msra.mxu0 0
        %1244 = vmatprep.subr.bf16.mxu0 0
        %1245 = vmatpush1.bf16.msra.mxu0 0
        %1246 = vmatprep.subr.bf16.mxu0 0
        %1247 = vmatpush1.bf16.msra.mxu0 0
        %1248 = vmatprep.subr.bf16.mxu0 0
        %1249 = vmatpush1.bf16.msra.mxu0 0
        %1250 = vmatprep.subr.bf16.mxu0 0
        %1251 = vmatpush1.bf16.msra.mxu0 0
        %1252 = vmatprep.mubr.bf16.mxu0 0
        %1253 = vmatmul.mubr.bf16.gmra.mrb[0].mxu0 %v1215
        %v1254 = vpop.f32.mrb[0].mxu0
        %v1255 = vadd.f32 0.0, %v1254
        %v1256 = vpop.f32.mrb[0].mxu0
        %v1257 = vpop.f32.mrb[0].mxu0
        %v1258 = vpop.f32.mrb[0].mxu0
        %1259 = vdwg.mxu0
        %v1260 = vadd.f32 %v1100, %v1255
        %v1261 = vld [vmem:[#allocation10] sm:$0x1]
        %v1263 = vlaneseq
        %v1264 = vshrl.u32 %v1263, 7
        %v1265 = vsub.s32 0, %v1264
        %v1266 = vrot.slane %v1261, %v1265
        %v1268 = vadd.f32 %v1260, %v1266
        %v1269 = vadd.f32 %v1268, %v538
        %v1270 = vmul.f32 %v1269, %v1269
        %v1271 = vsel %vm540, %v1270, 0.0
        %1272 = vadd.xlane.f32.xlu0 %v1271
        %v1273 = vpop.xlane.xlu0 %1272
        %v1274 = vmul.f32 %v1273, %v544
        %v1275 = vadd.f32 %v1274, 1e-06
        %v1276 = vrsqrt.pop %v1275
        %v1277 = vmul.f32 %v1269, %v1276
        %v1278 = vpack.c.bf16 %v1277, %v1277
        %v1279 = vld [vmem:[#allocation11] sm:$0xf]
        %v1280 = vld [vmem:[#allocation11 + $0x4] sm:$0xf]
        %v1281 = vld [vmem:[#allocation11 + $0x8] sm:$0xf]
        %v1282 = vld [vmem:[#allocation11 + $0xc] sm:$0xf]
        %v1283 = vld [vmem:[#allocation13] sm:$0x1]
        %v1285 = vlaneseq
        %v1286 = vshrl.u32 %v1285, 7
        %v1287 = vsub.s32 0, %v1286
        %v1288 = vrot.slane %v1283, %v1287
        %v1294 = vunpack.c.l.b16 %v1279
        %v1295 = vunpack.c.l.b16 %v1280
        %v1296 = vunpack.c.l.b16 %v1281
        %v1297 = vunpack.c.l.b16 %v1282
        %v1298 = vpack.c.b16 %v1295, %v1294
        %v1299 = vpack.c.b16 %v1297, %v1296
        %v1303 = vsel %vm540, %v1278, 0
        %1305 = vmatprep.subr.bf16.mxu0 0
        %1306 = vmatpush1.bf16.msra.mxu0 %v1298
        %1307 = vmatprep.subr.bf16.mxu0 0
        %1308 = vmatpush1.bf16.msra.mxu0 %v1299
        %1309 = vmatprep.subr.bf16.mxu0 0
        %1310 = vmatpush1.bf16.msra.mxu0 0
        %1311 = vmatprep.subr.bf16.mxu0 0
        %1312 = vmatpush1.bf16.msra.mxu0 0
        %1313 = vmatprep.subr.bf16.mxu0 0
        %1314 = vmatpush1.bf16.msra.mxu0 0
        %1315 = vmatprep.subr.bf16.mxu0 0
        %1316 = vmatpush1.bf16.msra.mxu0 0
        %1317 = vmatprep.subr.bf16.mxu0 0
        %1318 = vmatpush1.bf16.msra.mxu0 0
        %1319 = vmatprep.subr.bf16.mxu0 0
        %1320 = vmatpush1.bf16.msra.mxu0 0
        %1321 = vmatprep.subr.bf16.mxu0 0
        %1322 = vmatpush1.bf16.msra.mxu0 0
        %1323 = vmatprep.subr.bf16.mxu0 0
        %1324 = vmatpush1.bf16.msra.mxu0 0
        %1325 = vmatprep.subr.bf16.mxu0 0
        %1326 = vmatpush1.bf16.msra.mxu0 0
        %1327 = vmatprep.subr.bf16.mxu0 0
        %1328 = vmatpush1.bf16.msra.mxu0 0
        %1329 = vmatprep.subr.bf16.mxu0 0
        %1330 = vmatpush1.bf16.msra.mxu0 0
        %1331 = vmatprep.subr.bf16.mxu0 0
        %1332 = vmatpush1.bf16.msra.mxu0 0
        %1333 = vmatprep.subr.bf16.mxu0 0
        %1334 = vmatpush1.bf16.msra.mxu0 0
        %1335 = vmatprep.subr.bf16.mxu0 0
        %1336 = vmatpush1.bf16.msra.mxu0 0
        %1337 = vmatprep.mubr.bf16.mxu0 0
        %1338 = vmatmul.mubr.bf16.gmra.mrb[0].mxu0 %v1303
        %v1339 = vpop.f32.mrb[0].mxu0
        %v1340 = vadd.f32 %v1288, %v1339
        %v1341 = vpop.f32.mrb[0].mxu0
        %v1342 = vpop.f32.mrb[0].mxu0
        %v1343 = vpop.f32.mrb[0].mxu0
        %1344 = vdwg.mxu0
        %v1345 = vxor.u32 %v1340, 2147483648
        %v1346 = vmul.f32 %v1345, 1.442695
        %v1347 = vpow.pop %v1346
        %v1348 = vadd.f32 %v1347, 1.0
        %v1349 = vrcp.pop %v1348
        %v1350 = vmul.f32 1.0, %v1349
        %v1351 = vmul.f32 %v1340, %v1350
        %v1352 = vld [vmem:[#allocation14] sm:$0xf]
        %v1353 = vld [vmem:[#allocation14 + $0x4] sm:$0xf]
        %v1354 = vld [vmem:[#allocation14 + $0x8] sm:$0xf]
        %v1355 = vld [vmem:[#allocation14 + $0xc] sm:$0xf]
        %v1356 = vld [vmem:[#allocation16] sm:$0x1]
        %v1358 = vlaneseq
        %v1359 = vshrl.u32 %v1358, 7
        %v1360 = vsub.s32 0, %v1359
        %v1361 = vrot.slane %v1356, %v1360
        %v1367 = vunpack.c.l.b16 %v1352
        %v1368 = vunpack.c.l.b16 %v1353
        %v1369 = vunpack.c.l.b16 %v1354
        %v1370 = vunpack.c.l.b16 %v1355
        %v1371 = vpack.c.b16 %v1368, %v1367
        %v1372 = vpack.c.b16 %v1370, %v1369
        %1375 = vmatprep.subr.bf16.mxu0 0
        %1376 = vmatpush1.bf16.msra.mxu0 %v1371
        %1377 = vmatprep.subr.bf16.mxu0 0
        %1378 = vmatpush1.bf16.msra.mxu0 %v1372
        %1379 = vmatprep.subr.bf16.mxu0 0
        %1380 = vmatpush1.bf16.msra.mxu0 0
        %1381 = vmatprep.subr.bf16.mxu0 0
        %1382 = vmatpush1.bf16.msra.mxu0 0
        %1383 = vmatprep.subr.bf16.mxu0 0
        %1384 = vmatpush1.bf16.msra.mxu0 0
        %1385 = vmatprep.subr.bf16.mxu0 0
        %1386 = vmatpush1.bf16.msra.mxu0 0
        %1387 = vmatprep.subr.bf16.mxu0 0
        %1388 = vmatpush1.bf16.msra.mxu0 0
        %1389 = vmatprep.subr.bf16.mxu0 0
        %1390 = vmatpush1.bf16.msra.mxu0 0
        %1391 = vmatprep.subr.bf16.mxu0 0
        %1392 = vmatpush1.bf16.msra.mxu0 0
        %1393 = vmatprep.subr.bf16.mxu0 0
        %1394 = vmatpush1.bf16.msra.mxu0 0
        %1395 = vmatprep.subr.bf16.mxu0 0
        %1396 = vmatpush1.bf16.msra.mxu0 0
        %1397 = vmatprep.subr.bf16.mxu0 0
        %1398 = vmatpush1.bf16.msra.mxu0 0
        %1399 = vmatprep.subr.bf16.mxu0 0
        %1400 = vmatpush1.bf16.msra.mxu0 0
        %1401 = vmatprep.subr.bf16.mxu0 0
        %1402 = vmatpush1.bf16.msra.mxu0 0
        %1403 = vmatprep.subr.bf16.mxu0 0
        %1404 = vmatpush1.bf16.msra.mxu0 0
        %1405 = vmatprep.subr.bf16.mxu0 0
        %1406 = vmatpush1.bf16.msra.mxu0 0
        %1407 = vmatprep.mubr.bf16.mxu0 0
        %1408 = vmatmul.mubr.bf16.gmra.mrb[0].mxu0 %v1303
        %v1409 = vpop.f32.mrb[0].mxu0
        %v1410 = vadd.f32 %v1361, %v1409
        %v1411 = vpop.f32.mrb[0].mxu0
        %v1412 = vpop.f32.mrb[0].mxu0
        %v1413 = vpop.f32.mrb[0].mxu0
        %1414 = vdwg.mxu0
        %v1415 = vmul.f32 %v1410, %v1351
        %v1416 = vpack.c.bf16 %v1415, %v1415
        %v1417 = vld [vmem:[#allocation17] sm:$0xf]
        %v1418 = vld [vmem:[#allocation17 + $0x4] sm:$0xf]
        %v1419 = vld [vmem:[#allocation17 + $0x8] sm:$0xf]
        %v1420 = vld [vmem:[#allocation17 + $0xc] sm:$0xf]
        %v1421 = vld [vmem:[#allocation17 + $0x10] sm:$0xf]
        %v1422 = vld [vmem:[#allocation17 + $0x14] sm:$0xf]
        %v1423 = vld [vmem:[#allocation17 + $0x18] sm:$0xf]
        %v1424 = vld [vmem:[#allocation17 + $0x1c] sm:$0xf]
        %v1425 = vld [vmem:[#allocation19] sm:$0x1]
        %v1427 = vlaneseq
        %v1428 = vshrl.u32 %v1427, 7
        %v1429 = vsub.s32 0, %v1428
        %v1430 = vrot.slane %v1425, %v1429
        %v1440 = vunpack.c.l.b16 %v1417
        %v1441 = vunpack.c.l.b16 %v1418
        %v1442 = vunpack.c.l.b16 %v1419
        %v1443 = vunpack.c.l.b16 %v1420
        %v1444 = vunpack.c.l.b16 %v1421
        %v1445 = vunpack.c.l.b16 %v1422
        %v1446 = vunpack.c.l.b16 %v1423
        %v1447 = vunpack.c.l.b16 %v1424
        %v1448 = vpack.c.b16 %v1441, %v1440
        %v1449 = vpack.c.b16 %v1443, %v1442
        %v1450 = vpack.c.b16 %v1445, %v1444
        %v1451 = vpack.c.b16 %v1447, %v1446
        %vm1456 = vcmask 523264
        %v1458 = vsel %vm1456, %v1416, 0
        %1460 = vmatprep.subr.bf16.mxu0 0
        %1461 = vmatpush1.bf16.msra.mxu0 %v1448
        %1462 = vmatprep.subr.bf16.mxu0 0
        %1463 = vmatpush1.bf16.msra.mxu0 %v1449
        %1464 = vmatprep.subr.bf16.mxu0 0
        %1465 = vmatpush1.bf16.msra.mxu0 %v1450
        %1466 = vmatprep.subr.bf16.mxu0 0
        %1467 = vmatpush1.bf16.msra.mxu0 %v1451
        %1468 = vmatprep.subr.bf16.mxu0 0
        %1469 = vmatpush1.bf16.msra.mxu0 0
        %1470 = vmatprep.subr.bf16.mxu0 0
        %1471 = vmatpush1.bf16.msra.mxu0 0
        %1472 = vmatprep.subr.bf16.mxu0 0
        %1473 = vmatpush1.bf16.msra.mxu0 0
        %1474 = vmatprep.subr.bf16.mxu0 0
        %1475 = vmatpush1.bf16.msra.mxu0 0
        %1476 = vmatprep.subr.bf16.mxu0 0
        %1477 = vmatpush1.bf16.msra.mxu0 0
        %1478 = vmatprep.subr.bf16.mxu0 0
        %1479 = vmatpush1.bf16.msra.mxu0 0
        %1480 = vmatprep.subr.bf16.mxu0 0
        %1481 = vmatpush1.bf16.msra.mxu0 0
        %1482 = vmatprep.subr.bf16.mxu0 0
        %1483 = vmatpush1.bf16.msra.mxu0 0
        %1484 = vmatprep.subr.bf16.mxu0 0
        %1485 = vmatpush1.bf16.msra.mxu0 0
        %1486 = vmatprep.subr.bf16.mxu0 0
        %1487 = vmatpush1.bf16.msra.mxu0 0
        %1488 = vmatprep.subr.bf16.mxu0 0
        %1489 = vmatpush1.bf16.msra.mxu0 0
        %1490 = vmatprep.subr.bf16.mxu0 0
        %1491 = vmatpush1.bf16.msra.mxu0 0
        %1492 = vmatprep.mubr.bf16.mxu0 0
        %1493 = vmatmul.mubr.bf16.gmra.mrb[0].mxu0 %v1458
        %v1494 = vpop.f32.mrb[0].mxu0
        %v1495 = vadd.f32 %v1430, %v1494
        %v1496 = vpop.f32.mrb[0].mxu0
        %v1497 = vpop.f32.mrb[0].mxu0
        %v1498 = vpop.f32.mrb[0].mxu0
        %1499 = vdwg.mxu0
        %v1500 = vadd.f32 %v1495, %v1269
        %1501 = vst.msk [vmem:[%s536] sm:$0xff] %vm540, %v1500
        %s1502 = sand.u32 %s277, 1
        %s1503 = scalar_lea.sflag [#allocation4], %s1502
        %s1504 = sand.u32 %s277, 1
        %s1505 = smul.addr %s1504, 8
        %s1506 = scalar_lea.vmem [#allocation20], %s1505
        // Predicated region
        $region109: #{tpu_custom_call.1} parent=63 // pred_check
          %p1507 = pneg %p287
        $region110: #{tpu_custom_call.1} parent=63 // pred_check_branch
          %1509 = sbr.rel (%p1507) target = $region112
        $region111: #{tpu_custom_call.1} parent=63 // pred_region
          %s1511 = ssub.s32 128, 128
          %1512 = vsyncadd %s1503, %s1511
          %s1513 = smul.addr %s33, 128
          %s1514 = scalar_lea.hbm %s11, %s1513
          %s1516 = sshll.u32 %s1506, 4
          %s1517 = int_to_ptr.vmem [resolvable:$true] %s1516
          %1519 = dma.vmem_to_hbm [thread:$0]  %s1517, 128, %s1514, %s1503
        $region112: #{tpu_custom_call.1} parent=63 // pred_fallthru
          _
      $region64: #{tpu_custom_call.1} parent=5 // pred_fallthru
        _
      %p1520 = scmp.le.s32.totalorder 2, %s28
      // Predicated region
      $region113: #{tpu_custom_call.1} parent=5 // pred_check
        %p1521 = pneg %p1520
      $region114: #{tpu_custom_call.1} parent=5 // pred_check_branch
        %1523 = sbr.rel (%p1521) target = $region116
      $region115: #{tpu_custom_call.1} parent=5 // pred_region
        %s1524 = ssub.s32 %s28, 2
        // Predicated region
        $region117: #{tpu_custom_call.1} parent=115 // pred_check
          %p1525 = pneg %p293
        $region118: #{tpu_custom_call.1} parent=115 // pred_check_branch
          %1527 = sbr.rel (%p1525) target = $region120
        $region119: #{tpu_custom_call.1} parent=115 // pred_region
          %s1528 = sand.u32 %s278, 1
          %s1529 = scalar_lea.sflag [#allocation4], %s1528
          %s1530 = sand.u32 %s278, 1
          %s1531 = smul.addr %s1530, 8
          %s1532 = scalar_lea.vmem [#allocation20], %s1531
          %1533 = dma.done %s1529, 128
        $region120: #{tpu_custom_call.1} parent=115 // pred_fallthru
          _
      $region116: #{tpu_custom_call.1} parent=5 // pred_fallthru
        _
    $region6: #{tpu_custom_call.1} parent=1 // loop_footer
      %s32 = sadd.s32 1, %s28
    $region7: #{tpu_custom_call.1} parent=1 // loop_footer_branch
      %27 = sbr.rel target = $region3
    $region8: #{tpu_custom_call.1} parent=1 // loop_exit
      _
    %1534 = vsyncpa [#allocation3], 1
    %s1535 = scalar_lea.sflag [#allocation3], 1
    %1536 = vsyncpa %s1535, 1
    %1537 = vsyncpa [#allocation6], 1
    %1538 = vsyncpa [#allocation9], 1
    %1539 = vsyncpa [#allocation12], 1
    %1540 = vsyncpa [#allocation15], 1
    %1541 = vsyncpa [#allocation18], 1
    %1542 = vsyncpa [#allocation4], 1
    %s1543 = scalar_lea.sflag [#allocation4], 1
    %1544 = vsyncpa %s1543, 1

</llo_original>
